<compile_context>
chip_gen: v7x
topology: tpu7x:2x2x1
jax: 0.10.0
libtpu: 0.0.40
codegen_flags: <defaults>
</compile_context>

<pallas_src>
import functools

import jax
import jax.numpy as jnp
from jax.experimental import pallas as pl
from jax.experimental.pallas import tpu as pltpu

# ---------------- configuration ----------------
INPUT_DIM = 4          # input_dim_features_extractor
HIDDEN = 32            # hidden_dim_features_extractor
N_LAYERS = 2           # n_layers_features_extractor
N_HEADS = 2            # n_attention_heads
MAX_N_NODES = 12
MAX_N_RESOURCES = 4
BATCH = 2
N_NODES = 8            # nodes per graph in the synthetic batch
HD = N_HEADS * HIDDEN                              # 64
ATT_IN = 8                                         # rc(2) + rp(3), zero-padded to 8
FEATS_PER = INPUT_DIM + HIDDEN * (N_LAYERS + 1)    # layer_pooling=='all' -> 100
OUT_DIM = 2 * FEATS_PER                            # features_dim *= 2    -> 200
PAD_BLK = 128          # 128-lane stride for the padded fused weight blocks
OUT_HALF = 128         # lane offset of the repeated graph embedding in the padded output
OUT_PAD = 2 * OUT_HALF # padded kernel output width (sliced back to OUT_DIM in the wrapper)


# ---------------- fused forward kernel (G graphs per grid step) ----------------
def _fused_forward_kernel(
    node_ref, e_ref, att_ref, adj_ref,
    fe_w1_ref, fe_b1_ref, fe_w2_ref, fe_b2_ref,
    w_att_ref, b_att_ref,
    wx_ref, wfij_ref, bf_ref, attn_bd_ref,
    whm_ref, bhm_ref, bm1_ref, wm2_ref, bm2_ref,
    o_ref,
    *, n, g, d, heads, n_layers, max_n, in_dim,
):
    nt = g * n                      # total nodes handled in this grid step
    hd = heads * d
    f_total = in_dim + d * (n_layers + 1)

    # ---- features_list[0] = raw node features ----
    x0 = node_ref[...]                                              # (nt, in_dim)
    feats = [x0]

    # ---- features_embedder MLP: Linear -> ReLU -> Linear ----
    h1 = jnp.maximum(
        jnp.dot(x0, fe_w1_ref[...], preferred_element_type=jnp.float32) + fe_b1_ref[...], 0.0)
    x = jnp.dot(h1, fe_w2_ref[...], preferred_element_type=jnp.float32) + fe_b2_ref[...]
    feats.append(x)                                                 # features_list[1]

    # ---- edge embedding ('sum'): (type+rid gather precomputed) + fused rc/rp linear ----
    e = (e_ref[...]
         + jnp.dot(att_ref[...], w_att_ref[...], preferred_element_type=jnp.float32)
         + b_att_ref[...])                                          # (nt*nt, d), row = dst*nt + src

    adj = adj_ref[...]                                              # (nt, nt)  adj[dst, src]
    adj2 = jnp.concatenate([adj] * heads, axis=0)                   # heads stacked along sublanes
    mask2 = adj2 > 0.0

    # ---- EGATConv layers + per-layer MLP + residual (unrolled, weights resident) ----
    for l in range(n_layers):
        # fused fc_ni | fc_nj projection, each block 128-lane aligned (bias=False in DGL)
        proj = jnp.dot(x, wx_ref[l], preferred_element_type=jnp.float32)        # (nt, 2*PAD_BLK)
        f_ni = proj[:, 0:hd]                                        # src projection
        f_nj = proj[:, PAD_BLK:PAD_BLK + hd]                        # dst projection
        # fc_node folded with the first per-layer MLP linear (per head), 128-lane aligned blocks
        hm = jnp.dot(x, whm_ref[l], preferred_element_type=jnp.float32) + bhm_ref[l]  # (nt, heads*PAD_BLK)

        f_e = jnp.dot(e, wfij_ref[l], preferred_element_type=jnp.float32)       # (nt*nt, hd)
        f_sum = (f_nj[:, None, :] + f_ni[None, :, :]
                 + f_e.reshape(nt, nt, hd) + bf_ref[l][None, :, :])             # (dst, src, hd)
        f_out = jnp.where(f_sum > 0.0, f_sum, 0.01 * f_sum)                     # LeakyReLU (DGL 0.01)

        # both heads' attention logits in a single MXU push (block-diag attn weights)
        logit_e = jnp.dot(f_out.reshape(nt * nt, hd), attn_bd_ref[l],
                          preferred_element_type=jnp.float32)                    # (nt*nt, heads)
        l3 = logit_e.reshape(nt, nt, heads)
        lst = jnp.concatenate([l3[:, :, h] for h in range(heads)], axis=0)       # (heads*nt, nt)

        # masked edge-softmax over incoming edges of each dst node, both heads at once
        lst = jnp.where(mask2, lst, -1e30)
        m = jnp.max(lst, axis=1, keepdims=True)
        p = jnp.exp(lst - m) * adj2
        den = jnp.sum(p, axis=1, keepdims=True)
        # nodes with zero in-edges get an all-zero attention row (matches DGL: no messages).
        # NOTE: approx reciprocal (EUP slot) -> ~1e-3 relative error vs exact softmax.
        inv = pl.reciprocal(jnp.where(den > 0.0, den, 1.0), approx=True)
        alpha = p * inv                                                            # (heads*nt, nt)

        # per-head aggregation (fc_node already fused with MLP linear 1 inside whm)
        zsum = None
        for h in range(heads):
            contrib = jnp.dot(alpha[h * nt:(h + 1) * nt, :],
                              hm[:, h * PAD_BLK:(h + 1) * PAD_BLK],
                              preferred_element_type=jnp.float32)                 # (nt, PAD_BLK)
            zsum = contrib if zsum is None else zsum + contrib
        z = jnp.maximum(zsum + bm1_ref[l], 0.0)                                   # MLP hidden + ReLU
        y = jnp.dot(z, wm2_ref[l], preferred_element_type=jnp.float32) + bm2_ref[l]
        x = y + x                                                                  # residual
        feats.append(x)                                                            # features_list.append

    # ---- graph max-pool + pad to max_n_nodes + concat repeated graph embedding ----
    allf = jnp.concatenate(feats, axis=1)                             # (nt, f_total)
    o_ref[...] = jnp.zeros((g, max_n, OUT_PAD), jnp.float32)          # single full-block zero init
    for gg in range(g):
        nf = allf[gg * n:(gg + 1) * n, :]                             # this graph's node features
        gemb = jnp.max(nf, axis=0, keepdims=True)                     # (1, f_total) max-pool
        o_ref[gg, 0:n, 0:f_total] = nf
        o_ref[gg, :, OUT_HALF:OUT_HALF + f_total] = jnp.broadcast_to(gemb, (max_n, f_total))


# ---------------- pallas_call wrapper ----------------
def _rep_spec(arr):
    nd = arr.ndim
    return pl.BlockSpec(arr.shape, lambda *_: (0,) * nd)


WEIGHT_ORDER = ("fe_w1", "fe_b1", "fe_w2", "fe_b2", "w_att", "b_att",
                "wx", "wfij", "bf", "attn_bd", "whm", "bhm", "bm1", "wm2", "bm2")


def psp_gnn_fused(node_m, e_m, att_m, adj_m, fused, *, n, g):
    S, nt, in_dim = node_m.shape
    assert nt == g * n
    kern = functools.partial(
        _fused_forward_kernel, n=n, g=g, d=HIDDEN, heads=N_HEADS,
        n_layers=N_LAYERS, max_n=MAX_N_NODES, in_dim=in_dim)
    weights = [fused[k] for k in WEIGHT_ORDER]
    return pl.pallas_call(
        kern,
        grid=(S,),
        in_specs=[
            pl.BlockSpec((None, nt, in_dim), lambda s: (s, 0, 0)),
            pl.BlockSpec((None, nt * nt, HIDDEN), lambda s: (s, 0, 0)),
            pl.BlockSpec((None, nt * nt, ATT_IN), lambda s: (s, 0, 0)),
            pl.BlockSpec((None, nt, nt), lambda s: (s, 0, 0)),
        ] + [_rep_spec(w) for w in weights],
        out_specs=pl.BlockSpec((g, MAX_N_NODES, OUT_PAD), lambda s: (s, 0, 0)),
        out_shape=jax.ShapeDtypeStruct((S * g, MAX_N_NODES, OUT_PAD), jnp.float32),
        compiler_params=pltpu.CompilerParams(
            dimension_semantics=("parallel",)),   # v7x: one grid step per TensorCore when g == 1
    )(node_m, e_m, att_m, adj_m, *weights)


# ---------------- parameter init (deterministic, synthetic; mirrors the module) ----------------
def init_params(key):
    def lin(k, din, dout, scale=0.2):
        k1, k2 = jax.random.split(k)
        return (scale * jax.random.normal(k1, (din, dout), jnp.float32),
                scale * jax.random.normal(k2, (1, dout), jnp.float32))

    keys = jax.random.split(key, 6 + N_LAYERS)
    params = {}
    # features_embedder MLP (n_mlp_layers=2): INPUT_DIM -> HIDDEN -> HIDDEN
    params["fe_w1"], params["fe_b1"] = lin(keys[0], INPUT_DIM, HIDDEN)
    params["fe_w2"], params["fe_b2"] = lin(keys[1], HIDDEN, HIDDEN)
    # edge embedder ('sum' flavor)
    params["edge_type_tab"] = 0.2 * jax.random.normal(keys[2], (7, HIDDEN), jnp.float32)
    params["rid_tab"] = 0.2 * jax.random.normal(keys[3], (MAX_N_RESOURCES + 1, HIDDEN), jnp.float32)
    params["w_rc"], params["b_rc"] = lin(keys[4], 2, HIDDEN)
    params["w_rp"], params["b_rp"] = lin(keys[5], 3, HIDDEN)   # factored_rp=False -> 3
    # per-layer EGATConv + MLP
    layers = []
    for l in range(N_LAYERS):
        lk = jax.random.split(keys[6 + l], 7)
        p = {
            "w_ni": 0.2 * jax.random.normal(lk[0], (HIDDEN, HD), jnp.float32),   # bias=False (DGL)
            "w_nj": 0.2 * jax.random.normal(lk[1], (HIDDEN, HD), jnp.float32),   # bias=False (DGL)
            "w_fij": 0.2 * jax.random.normal(lk[2], (HIDDEN, HD), jnp.float32),
            "b_f": jnp.zeros((1, HD), jnp.float32),                              # EGAT bias
            "attn": 0.2 * jax.random.normal(lk[3], (N_HEADS, HIDDEN), jnp.float32),
        }
        p["w_node"], p["b_node"] = lin(lk[4], HIDDEN, HD)
        p["w_m1"], p["b_m1"] = lin(lk[5], HD, HD)
        p["w_m2"], p["b_m2"] = lin(lk[6], HD, HIDDEN)
        layers.append(p)
    params["layers"] = layers
    return params


def fuse_params(params):
    """Repack module parameters into the fused / lane-padded layouts the kernel consumes."""
    d, heads = HIDDEN, N_HEADS
    hd = heads * d

    def pad_cols(w, width):
        return jnp.concatenate(
            [w, jnp.zeros((w.shape[0], width - w.shape[1]), jnp.float32)], axis=1)

    w_att = jnp.concatenate(
        [params["w_rc"], params["w_rp"],
         jnp.zeros((ATT_IN - 5, HIDDEN), jnp.float32)], axis=0)            # (8, HIDDEN)
    b_att = params["b_rc"] + params["b_rp"]                                # (1, HIDDEN)

    wx, wfij, bf, attn_bd, whm, bhm, bm1, wm2, bm2 = ([] for _ in range(9))
    for p in params["layers"]:
        # fc_ni | fc_nj fused, each block padded to a 128-lane boundary
        wx.append(jnp.concatenate([pad_cols(p["w_ni"], PAD_BLK),
                                   pad_cols(p["w_nj"], PAD_BLK)], axis=1))        # (HIDDEN, 256)
        wfij.append(p["w_fij"])                                                    # (HIDDEN, hd)
        bf.append(p["b_f"])                                                        # (1, hd)
        # per-head block-diagonal attention weights -> one matmul for both heads' logits
        attn_bd.append((p["attn"][:, :, None]
                        * jnp.eye(heads, dtype=jnp.float32)[:, None, :]).reshape(hd, heads))
        # fold fc_node (per head) with the rows of the first MLP linear
        whm_h, bhm_h = [], []
        for h in range(heads):
            wnode_h = p["w_node"][:, h * d:(h + 1) * d]          # (HIDDEN, d)
            bnode_h = p["b_node"][:, h * d:(h + 1) * d]          # (1, d)
            wm1_h = p["w_m1"][h * d:(h + 1) * d, :]              # (d, hd)
            whm_h.append(pad_cols(wnode_h @ wm1_h, PAD_BLK))     # (HIDDEN, 128)
            bhm_h.append(pad_cols(bnode_h @ wm1_h, PAD_BLK))     # (1, 128)
        whm.append(jnp.concatenate(whm_h, axis=1))               # (HIDDEN, heads*128)
        bhm.append(jnp.concatenate(bhm_h, axis=1))               # (1, heads*128)
        bm1.append(pad_cols(p["b_m1"], PAD_BLK))                  # (1, 128)
        wm2.append(jnp.concatenate(
            [p["w_m2"], jnp.zeros((PAD_BLK - hd, HIDDEN), jnp.float32)], axis=0))  # (128, HIDDEN)
        bm2.append(p["b_m2"])

    stack = lambda xs: jnp.stack(xs, axis=0)
    return {
        "fe_w1": params["fe_w1"], "fe_b1": params["fe_b1"],
        "fe_w2": params["fe_w2"], "fe_b2": params["fe_b2"],
        "w_att": w_att, "b_att": b_att,
        "wx": stack(wx), "wfij": stack(wfij), "bf": stack(bf),
        "attn_bd": stack(attn_bd), "whm": stack(whm), "bhm": stack(bhm),
        "bm1": stack(bm1), "wm2": stack(wm2), "bm2": stack(bm2),
    }


# ---------------- forward (mirrors PSPGnnDGL.forward) ----------------
def _default_graphs_per_step(batch):
    """Merged batch (1 grid step) on single-TC chips; per-graph grid on v7x (2 TensorCores)."""
    try:
        kind = jax.devices()[0].device_kind.lower()
    except Exception:
        kind = ""
    if "v7" in kind and batch > 1:
        return 1
    return batch


def psp_gnn_forward(params, node_feats, adj, edge_type, edge_rid, att_rc, att_rp,
                    graphs_per_step=None):
    B, n, in_dim = node_feats.shape
    E = n * n
    f_total = in_dim + HIDDEN * (N_LAYERS + 1)
    assert f_total <= OUT_HALF, "increase OUT_HALF (output lane padding)"
    G = _default_graphs_per_step(B) if graphs_per_step is None else graphs_per_step
    assert B % G == 0
    S = B // G
    nt = G * n

    # TODO(synk): graph construction from the gym observation (AgentObservation / DGL batching,
    # 'learn' pool-node insertion) has no Pallas equivalent; the graph arrives as dense
    # [batch, dst, src] tensors.  Embedding-table gathers stay in XLA glue.
    base = (params["edge_type_tab"][edge_type.reshape(B, E)]
            + params["rid_tab"][edge_rid.reshape(B, E)])                   # (B, E, HIDDEN)
    att_cat = jnp.concatenate(
        [att_rc.reshape(B, E, 2), att_rp.reshape(B, E, 3),
         jnp.zeros((B, E, ATT_IN - 5), jnp.float32)], axis=-1)             # (B, E, 8)

    # block-diagonal merge of G graphs per grid step (off-diagonal edges are zero and
    # masked out by the block-diagonal adjacency, so the forward math is unchanged).
    def merge(x4):   # (B, n, n, C) -> (S, nt, nt, C)
        C = x4.shape[-1]
        xg = x4.reshape(S, G, n, n, C)
        eye = jnp.eye(G, dtype=x4.dtype)
        return jnp.einsum("sgijc,gh->sgihjc", xg, eye).reshape(S, nt, nt, C)

    node_m = node_feats.reshape(S, nt, in_dim)
    adj_m = merge(adj[..., None])[..., 0]                                  # (S, nt, nt)
    base_m = merge(base.reshape(B, n, n, HIDDEN)).reshape(S, nt * nt, HIDDEN)
    att_m = merge(att_cat.reshape(B, n, n, ATT_IN)).reshape(S, nt * nt, ATT_IN)

    fused = fuse_params(params)
    out_pad = psp_gnn_fused(node_m, base_m, att_m, adj_m, fused, n=n, g=G)  # (B, MAX_N, OUT_PAD)
    # slice the lane padding back to the module's features_dim (= 2 * f_total)
    return jnp.concatenate(
        [out_pad[:, :, :f_total], out_pad[:, :, OUT_HALF:OUT_HALF + f_total]], axis=-1)


if __name__ == "__main__":
    key = jax.random.PRNGKey(0)
    kp, kf, ka, kt, kr, kc, krp = jax.random.split(key, 7)
    params = init_params(kp)

    node_feats = jax.random.normal(kf, (BATCH, N_NODES, INPUT_DIM), jnp.float32)
    eye = jnp.eye(N_NODES, dtype=jnp.float32)
    rand_adj = (jax.random.uniform(ka, (BATCH, N_NODES, N_NODES)) < 0.4).astype(jnp.float32)
    adj = jnp.maximum(rand_adj, eye[None])   # every node has >=1 incoming edge
    edge_type = jax.random.randint(kt, (BATCH, N_NODES, N_NODES), 0, 7)
    edge_rid = jax.random.randint(kr, (BATCH, N_NODES, N_NODES), 0, MAX_N_RESOURCES + 1)
    att_rc = jax.random.normal(kc, (BATCH, N_NODES, N_NODES, 2), jnp.float32)
    att_rp = jax.random.normal(krp, (BATCH, N_NODES, N_NODES, 3), jnp.float32)

    fwd = jax.jit(psp_gnn_forward, static_argnames=("graphs_per_step",))
    out = jax.block_until_ready(
        fwd(params, node_feats, adj, edge_type, edge_rid, att_rc, att_rp))
    assert out.shape == (BATCH, MAX_N_NODES, OUT_DIM), out.shape
    assert bool(jnp.all(jnp.isfinite(out)))

    # cross-check: per-graph grid (the v7x layout) vs merged-batch grid give the same result
    out_pg = jax.block_until_ready(
        fwd(params, node_feats, adj, edge_type, edge_rid, att_rc, att_rp, graphs_per_step=1))
    assert jnp.allclose(out, out_pg, rtol=1e-4, atol=1e-4)

    print("KERNEL_OK")
</pallas_src>

<mosaic_0001>
module attributes {stable_mosaic.version = 11 : i64} {
  func.func @_fused_forward_kernel(%arg0: i32, %arg1: memref<1x16x4xf32, #tpu.memory_space<vmem>>, %arg2: memref<1x256x32xf32, #tpu.memory_space<vmem>>, %arg3: memref<1x256x8xf32, #tpu.memory_space<vmem>>, %arg4: memref<1x16x16xf32, #tpu.memory_space<vmem>>, %arg5: memref<4x32xf32, #tpu.memory_space<vmem>>, %arg6: memref<1x32xf32, #tpu.memory_space<vmem>>, %arg7: memref<32x32xf32, #tpu.memory_space<vmem>>, %arg8: memref<1x32xf32, #tpu.memory_space<vmem>>, %arg9: memref<8x32xf32, #tpu.memory_space<vmem>>, %arg10: memref<1x32xf32, #tpu.memory_space<vmem>>, %arg11: memref<2x32x256xf32, #tpu.memory_space<vmem>>, %arg12: memref<2x32x64xf32, #tpu.memory_space<vmem>>, %arg13: memref<2x1x64xf32, #tpu.memory_space<vmem>>, %arg14: memref<2x64x2xf32, #tpu.memory_space<vmem>>, %arg15: memref<2x32x256xf32, #tpu.memory_space<vmem>>, %arg16: memref<2x1x256xf32, #tpu.memory_space<vmem>>, %arg17: memref<2x1x128xf32, #tpu.memory_space<vmem>>, %arg18: memref<2x128x32xf32, #tpu.memory_space<vmem>>, %arg19: memref<2x1x32xf32, #tpu.memory_space<vmem>>, %arg20: memref<2x12x256xf32, #tpu.memory_space<vmem>>) attributes {dimension_semantics = [#tpu.dimension_semantics<parallel>], iteration_bounds = array<i64: 1>, scalar_prefetch = 0 : i64, scratch_operands = 0 : i64, tpu.core_type = #tpu.core_type<tc>, window_params = [{transform_indices = @transform_0, window_bounds = array<i64: 1, 16, 4>}, {transform_indices = @transform_1, window_bounds = array<i64: 1, 256, 32>}, {transform_indices = @transform_2, window_bounds = array<i64: 1, 256, 8>}, {transform_indices = @transform_3, window_bounds = array<i64: 1, 16, 16>}, {pipeline_mode = #tpu.pipeline_mode<synchronous>, transform_indices = @transform_4, window_bounds = array<i64: 4, 32>}, {pipeline_mode = #tpu.pipeline_mode<synchronous>, transform_indices = @transform_5, window_bounds = array<i64: 1, 32>}, {pipeline_mode = #tpu.pipeline_mode<synchronous>, transform_indices = @transform_6, window_bounds = array<i64: 32, 32>}, {pipeline_mode = #tpu.pipeline_mode<synchronous>, transform_indices = @transform_7, window_bounds = array<i64: 1, 32>}, {pipeline_mode = #tpu.pipeline_mode<synchronous>, transform_indices = @transform_8, window_bounds = array<i64: 8, 32>}, {pipeline_mode = #tpu.pipeline_mode<synchronous>, transform_indices = @transform_9, window_bounds = array<i64: 1, 32>}, {pipeline_mode = #tpu.pipeline_mode<synchronous>, transform_indices = @transform_10, window_bounds = array<i64: 2, 32, 256>}, {pipeline_mode = #tpu.pipeline_mode<synchronous>, transform_indices = @transform_11, window_bounds = array<i64: 2, 32, 64>}, {pipeline_mode = #tpu.pipeline_mode<synchronous>, transform_indices = @transform_12, window_bounds = array<i64: 2, 1, 64>}, {pipeline_mode = #tpu.pipeline_mode<synchronous>, transform_indices = @transform_13, window_bounds = array<i64: 2, 64, 2>}, {pipeline_mode = #tpu.pipeline_mode<synchronous>, transform_indices = @transform_14, window_bounds = array<i64: 2, 32, 256>}, {pipeline_mode = #tpu.pipeline_mode<synchronous>, transform_indices = @transform_15, window_bounds = array<i64: 2, 1, 256>}, {pipeline_mode = #tpu.pipeline_mode<synchronous>, transform_indices = @transform_16, window_bounds = array<i64: 2, 1, 128>}, {pipeline_mode = #tpu.pipeline_mode<synchronous>, transform_indices = @transform_17, window_bounds = array<i64: 2, 128, 32>}, {pipeline_mode = #tpu.pipeline_mode<synchronous>, transform_indices = @transform_18, window_bounds = array<i64: 2, 1, 32>}, {transform_indices = @transform_19, window_bounds = array<i64: 2, 12, 256>}]} {
    %c0 = arith.constant 0 : index
    %c0_0 = arith.constant 0 : index
    %c0_1 = arith.constant 0 : index
    %0 = vector.load %arg1[%c0, %c0_0, %c0_1] : memref<1x16x4xf32, #tpu.memory_space<vmem>>, vector<1x16x4xf32>
    %1 = vector.shape_cast %0 : vector<1x16x4xf32> to vector<16x4xf32>
    %c0_2 = arith.constant 0 : index
    %c0_3 = arith.constant 0 : index
    %2 = vector.load %arg5[%c0_2, %c0_3] : memref<4x32xf32, #tpu.memory_space<vmem>>, vector<4x32xf32>
    %cst = arith.constant dense<0.000000e+00> : vector<16x32xf32>
    %3 = tpu.matmul %1, %2, %cst {dimension_numbers = #tpu.dot_dimension_numbers<[1], [0], [0], [1], [0, 0, 1, 1], [], []>} : vector<16x4xf32>, vector<4x32xf32>, vector<16x32xf32> -> vector<16x32xf32>
    %c0_4 = arith.constant 0 : index
    %c0_5 = arith.constant 0 : index
    %4 = vector.load %arg6[%c0_4, %c0_5] : memref<1x32xf32, #tpu.memory_space<vmem>>, vector<1x32xf32>
    %5 = vector.broadcast %4 : vector<1x32xf32> to vector<16x32xf32>
    %6 = arith.addf %3, %5 : vector<16x32xf32>
    %cst_6 = arith.constant 0.000000e+00 : f32
    %7 = vector.broadcast %cst_6 : f32 to vector<16x32xf32>
    %8 = arith.maximumf %6, %7 : vector<16x32xf32>
    %c0_7 = arith.constant 0 : index
    %c0_8 = arith.constant 0 : index
    %9 = vector.load %arg7[%c0_7, %c0_8] : memref<32x32xf32, #tpu.memory_space<vmem>>, vector<32x32xf32>
    %cst_9 = arith.constant dense<0.000000e+00> : vector<16x32xf32>
    %10 = tpu.matmul %8, %9, %cst_9 {dimension_numbers = #tpu.dot_dimension_numbers<[1], [0], [0], [1], [0, 0, 1, 1], [], []>} : vector<16x32xf32>, vector<32x32xf32>, vector<16x32xf32> -> vector<16x32xf32>
    %c0_10 = arith.constant 0 : index
    %c0_11 = arith.constant 0 : index
    %11 = vector.load %arg8[%c0_10, %c0_11] : memref<1x32xf32, #tpu.memory_space<vmem>>, vector<1x32xf32>
    %12 = vector.broadcast %11 : vector<1x32xf32> to vector<16x32xf32>
    %13 = arith.addf %10, %12 : vector<16x32xf32>
    %c0_12 = arith.constant 0 : index
    %c0_13 = arith.constant 0 : index
    %c0_14 = arith.constant 0 : index
    %14 = vector.load %arg2[%c0_12, %c0_13, %c0_14] : memref<1x256x32xf32, #tpu.memory_space<vmem>>, vector<1x256x32xf32>
    %15 = vector.shape_cast %14 : vector<1x256x32xf32> to vector<256x32xf32>
    %c0_15 = arith.constant 0 : index
    %c0_16 = arith.constant 0 : index
    %c0_17 = arith.constant 0 : index
    %16 = vector.load %arg3[%c0_15, %c0_16, %c0_17] : memref<1x256x8xf32, #tpu.memory_space<vmem>>, vector<1x256x8xf32>
    %17 = vector.shape_cast %16 : vector<1x256x8xf32> to vector<256x8xf32>
    %c0_18 = arith.constant 0 : index
    %c0_19 = arith.constant 0 : index
    %18 = vector.load %arg9[%c0_18, %c0_19] : memref<8x32xf32, #tpu.memory_space<vmem>>, vector<8x32xf32>
    %cst_20 = arith.constant dense<0.000000e+00> : vector<256x32xf32>
    %19 = tpu.matmul %17, %18, %cst_20 {dimension_numbers = #tpu.dot_dimension_numbers<[1], [0], [0], [1], [0, 0, 1, 1], [], []>} : vector<256x8xf32>, vector<8x32xf32>, vector<256x32xf32> -> vector<256x32xf32>
    %20 = arith.addf %15, %19 : vector<256x32xf32>
    %c0_21 = arith.constant 0 : index
    %c0_22 = arith.constant 0 : index
    %21 = vector.load %arg10[%c0_21, %c0_22] : memref<1x32xf32, #tpu.memory_space<vmem>>, vector<1x32xf32>
    %22 = vector.broadcast %21 : vector<1x32xf32> to vector<256x32xf32>
    %23 = arith.addf %20, %22 : vector<256x32xf32>
    %c0_23 = arith.constant 0 : index
    %c0_24 = arith.constant 0 : index
    %c0_25 = arith.constant 0 : index
    %24 = vector.load %arg4[%c0_23, %c0_24, %c0_25] : memref<1x16x16xf32, #tpu.memory_space<vmem>>, vector<1x16x16xf32>
    %25 = vector.shape_cast %24 : vector<1x16x16xf32> to vector<16x16xf32>
    %26 = tpu.concatenate %25, %25 in 0 : vector<16x16xf32>, vector<16x16xf32> -> vector<32x16xf32>
    %cst_26 = arith.constant 0.000000e+00 : f32
    %27 = vector.broadcast %cst_26 : f32 to vector<32x16xf32>
    %28 = arith.cmpf ogt, %26, %27 : vector<32x16xf32>
    %c0_27 = arith.constant 0 : index
    %c0_28 = arith.constant 0 : index
    %c0_29 = arith.constant 0 : index
    %29 = vector.load %arg11[%c0_27, %c0_28, %c0_29] : memref<2x32x256xf32, #tpu.memory_space<vmem>>, vector<1x32x256xf32>
    %30 = vector.shape_cast %29 : vector<1x32x256xf32> to vector<32x256xf32>
    %cst_30 = arith.constant dense<0.000000e+00> : vector<16x256xf32>
    %31 = tpu.matmul %13, %30, %cst_30 {dimension_numbers = #tpu.dot_dimension_numbers<[1], [0], [0], [1], [0, 0, 1, 1], [], []>} : vector<16x32xf32>, vector<32x256xf32>, vector<16x256xf32> -> vector<16x256xf32>
    %32 = vector.extract_strided_slice %31 {offsets = [0, 0], sizes = [16, 64], strides = [1, 1]} : vector<16x256xf32> to vector<16x64xf32>
    %33 = vector.extract_strided_slice %31 {offsets = [0, 128], sizes = [16, 64], strides = [1, 1]} : vector<16x256xf32> to vector<16x64xf32>
    %c0_31 = arith.constant 0 : index
    %c0_32 = arith.constant 0 : index
    %c0_33 = arith.constant 0 : index
    %34 = vector.load %arg15[%c0_31, %c0_32, %c0_33] : memref<2x32x256xf32, #tpu.memory_space<vmem>>, vector<1x32x256xf32>
    %35 = vector.shape_cast %34 : vector<1x32x256xf32> to vector<32x256xf32>
    %cst_34 = arith.constant dense<0.000000e+00> : vector<16x256xf32>
    %36 = tpu.matmul %13, %35, %cst_34 {dimension_numbers = #tpu.dot_dimension_numbers<[1], [0], [0], [1], [0, 0, 1, 1], [], []>} : vector<16x32xf32>, vector<32x256xf32>, vector<16x256xf32> -> vector<16x256xf32>
    %c0_35 = arith.constant 0 : index
    %c0_36 = arith.constant 0 : index
    %c0_37 = arith.constant 0 : index
    %37 = vector.load %arg16[%c0_35, %c0_36, %c0_37] : memref<2x1x256xf32, #tpu.memory_space<vmem>>, vector<1x1x256xf32>
    %38 = vector.shape_cast %37 : vector<1x1x256xf32> to vector<1x256xf32>
    %39 = vector.broadcast %38 : vector<1x256xf32> to vector<16x256xf32>
    %40 = arith.addf %36, %39 : vector<16x256xf32>
    %c0_38 = arith.constant 0 : index
    %c0_39 = arith.constant 0 : index
    %c0_40 = arith.constant 0 : index
    %41 = vector.load %arg12[%c0_38, %c0_39, %c0_40] : memref<2x32x64xf32, #tpu.memory_space<vmem>>, vector<1x32x64xf32>
    %42 = vector.shape_cast %41 : vector<1x32x64xf32> to vector<32x64xf32>
    %cst_41 = arith.constant dense<0.000000e+00> : vector<256x64xf32>
    %43 = tpu.matmul %23, %42, %cst_41 {dimension_numbers = #tpu.dot_dimension_numbers<[1], [0], [0], [1], [0, 0, 1, 1], [], []>} : vector<256x32xf32>, vector<32x64xf32>, vector<256x64xf32> -> vector<256x64xf32>
    %44 = vector.shape_cast %33 : vector<16x64xf32> to vector<16x1x64xf32>
    %45 = vector.shape_cast %32 : vector<16x64xf32> to vector<1x16x64xf32>
    %46 = vector.broadcast %44 : vector<16x1x64xf32> to vector<16x16x64xf32>
    %47 = vector.broadcast %45 : vector<1x16x64xf32> to vector<16x16x64xf32>
    %48 = arith.addf %46, %47 : vector<16x16x64xf32>
    %49 = vector.shape_cast %43 : vector<256x64xf32> to vector<16x16x64xf32>
    %50 = arith.addf %48, %49 : vector<16x16x64xf32>
    %c0_42 = arith.constant 0 : index
    %c0_43 = arith.constant 0 : index
    %c0_44 = arith.constant 0 : index
    %51 = vector.load %arg13[%c0_42, %c0_43, %c0_44] : memref<2x1x64xf32, #tpu.memory_space<vmem>>, vector<1x1x64xf32>
    %52 = vector.shape_cast %51 : vector<1x1x64xf32> to vector<1x64xf32>
    %53 = vector.shape_cast %52 : vector<1x64xf32> to vector<1x1x64xf32>
    %54 = vector.broadcast %53 : vector<1x1x64xf32> to vector<16x16x64xf32>
    %55 = arith.addf %50, %54 : vector<16x16x64xf32>
    %cst_45 = arith.constant 0.000000e+00 : f32
    %56 = vector.broadcast %cst_45 : f32 to vector<16x16x64xf32>
    %57 = arith.cmpf ogt, %55, %56 : vector<16x16x64xf32>
    %cst_46 = arith.constant 0.00999999977 : f32
    %58 = vector.broadcast %cst_46 : f32 to vector<16x16x64xf32>
    %59 = arith.mulf %58, %55 : vector<16x16x64xf32>
    %60 = arith.select %57, %55, %59 : vector<16x16x64xi1>, vector<16x16x64xf32>
    %61 = vector.shape_cast %60 : vector<16x16x64xf32> to vector<256x64xf32>
    %c0_47 = arith.constant 0 : index
    %c0_48 = arith.constant 0 : index
    %c0_49 = arith.constant 0 : index
    %62 = vector.load %arg14[%c0_47, %c0_48, %c0_49] : memref<2x64x2xf32, #tpu.memory_space<vmem>>, vector<1x64x2xf32>
    %63 = vector.shape_cast %62 : vector<1x64x2xf32> to vector<64x2xf32>
    %cst_50 = arith.constant dense<0.000000e+00> : vector<256x2xf32>
    %64 = tpu.matmul %61, %63, %cst_50 {dimension_numbers = #tpu.dot_dimension_numbers<[1], [0], [0], [1], [0, 0, 1, 1], [], []>} : vector<256x64xf32>, vector<64x2xf32>, vector<256x2xf32> -> vector<256x2xf32>
    %65 = vector.shape_cast %64 : vector<256x2xf32> to vector<16x16x2xf32>
    %66 = vector.extract_strided_slice %65 {offsets = [0, 0, 0], sizes = [16, 16, 1], strides = [1, 1, 1]} : vector<16x16x2xf32> to vector<16x16x1xf32>
    %67 = vector.shape_cast %66 : vector<16x16x1xf32> to vector<16x16xf32>
    %68 = vector.extract_strided_slice %65 {offsets = [0, 0, 1], sizes = [16, 16, 1], strides = [1, 1, 1]} : vector<16x16x2xf32> to vector<16x16x1xf32>
    %69 = vector.shape_cast %68 : vector<16x16x1xf32> to vector<16x16xf32>
    %70 = tpu.concatenate %67, %69 in 0 : vector<16x16xf32>, vector<16x16xf32> -> vector<32x16xf32>
    %cst_51 = arith.constant -1.000000e+30 : f32
    %71 = vector.broadcast %cst_51 : f32 to vector<32x16xf32>
    %72 = arith.select %28, %70, %71 : vector<32x16xi1>, vector<32x16xf32>
    %cst_52 = arith.constant dense<0xFF800000> : vector<32xf32>
    %73 = vector.multi_reduction <maximumf>, %72, %cst_52 [1] : vector<32x16xf32> to vector<32xf32>
    %74 = vector.shape_cast %73 : vector<32xf32> to vector<32x1xf32>
    %75 = vector.broadcast %74 : vector<32x1xf32> to vector<32x16xf32>
    %76 = arith.subf %72, %75 : vector<32x16xf32>
    %77 = math.exp %76 : vector<32x16xf32>
    %78 = arith.mulf %77, %26 : vector<32x16xf32>
    %cst_53 = arith.constant dense<0.000000e+00> : vector<32xf32>
    %79 = vector.multi_reduction <add>, %78, %cst_53 [1] : vector<32x16xf32> to vector<32xf32>
    %80 = vector.shape_cast %79 : vector<32xf32> to vector<32x1xf32>
    %cst_54 = arith.constant 0.000000e+00 : f32
    %81 = vector.broadcast %cst_54 : f32 to vector<32x1xf32>
    %82 = arith.cmpf ogt, %80, %81 : vector<32x1xf32>
    %cst_55 = arith.constant 1.000000e+00 : f32
    %83 = vector.broadcast %cst_55 : f32 to vector<32x1xf32>
    %84 = arith.select %82, %80, %83 : vector<32x1xi1>, vector<32x1xf32>
    %85 = tpu.reciprocal %84 {approx = true} : vector<32x1xf32> -> vector<32x1xf32>
    %86 = vector.broadcast %85 : vector<32x1xf32> to vector<32x16xf32>
    %87 = arith.mulf %78, %86 : vector<32x16xf32>
    %88 = vector.extract_strided_slice %87 {offsets = [0, 0], sizes = [16, 16], strides = [1, 1]} : vector<32x16xf32> to vector<16x16xf32>
    %89 = vector.extract_strided_slice %40 {offsets = [0, 0], sizes = [16, 128], strides = [1, 1]} : vector<16x256xf32> to vector<16x128xf32>
    %cst_56 = arith.constant dense<0.000000e+00> : vector<16x128xf32>
    %90 = tpu.matmul %88, %89, %cst_56 {dimension_numbers = #tpu.dot_dimension_numbers<[1], [0], [0], [1], [0, 0, 1, 1], [], []>} : vector<16x16xf32>, vector<16x128xf32>, vector<16x128xf32> -> vector<16x128xf32>
    %91 = vector.extract_strided_slice %87 {offsets = [16, 0], sizes = [16, 16], strides = [1, 1]} : vector<32x16xf32> to vector<16x16xf32>
    %92 = vector.extract_strided_slice %40 {offsets = [0, 128], sizes = [16, 128], strides = [1, 1]} : vector<16x256xf32> to vector<16x128xf32>
    %cst_57 = arith.constant dense<0.000000e+00> : vector<16x128xf32>
    %93 = tpu.matmul %91, %92, %cst_57 {dimension_numbers = #tpu.dot_dimension_numbers<[1], [0], [0], [1], [0, 0, 1, 1], [], []>} : vector<16x16xf32>, vector<16x128xf32>, vector<16x128xf32> -> vector<16x128xf32>
    %94 = arith.addf %90, %93 : vector<16x128xf32>
    %c0_58 = arith.constant 0 : index
    %c0_59 = arith.constant 0 : index
    %c0_60 = arith.constant 0 : index
    %95 = vector.load %arg17[%c0_58, %c0_59, %c0_60] : memref<2x1x128xf32, #tpu.memory_space<vmem>>, vector<1x1x128xf32>
    %96 = vector.shape_cast %95 : vector<1x1x128xf32> to vector<1x128xf32>
    %97 = vector.broadcast %96 : vector<1x128xf32> to vector<16x128xf32>
    %98 = arith.addf %94, %97 : vector<16x128xf32>
    %cst_61 = arith.constant 0.000000e+00 : f32
    %99 = vector.broadcast %cst_61 : f32 to vector<16x128xf32>
    %100 = arith.maximumf %98, %99 : vector<16x128xf32>
    %c0_62 = arith.constant 0 : index
    %c0_63 = arith.constant 0 : index
    %c0_64 = arith.constant 0 : index
    %101 = vector.load %arg18[%c0_62, %c0_63, %c0_64] : memref<2x128x32xf32, #tpu.memory_space<vmem>>, vector<1x128x32xf32>
    %102 = vector.shape_cast %101 : vector<1x128x32xf32> to vector<128x32xf32>
    %cst_65 = arith.constant dense<0.000000e+00> : vector<16x32xf32>
    %103 = tpu.matmul %100, %102, %cst_65 {dimension_numbers = #tpu.dot_dimension_numbers<[1], [0], [0], [1], [0, 0, 1, 1], [], []>} : vector<16x128xf32>, vector<128x32xf32>, vector<16x32xf32> -> vector<16x32xf32>
    %c0_66 = arith.constant 0 : index
    %c0_67 = arith.constant 0 : index
    %c0_68 = arith.constant 0 : index
    %104 = vector.load %arg19[%c0_66, %c0_67, %c0_68] : memref<2x1x32xf32, #tpu.memory_space<vmem>>, vector<1x1x32xf32>
    %105 = vector.shape_cast %104 : vector<1x1x32xf32> to vector<1x32xf32>
    %106 = vector.broadcast %105 : vector<1x32xf32> to vector<16x32xf32>
    %107 = arith.addf %103, %106 : vector<16x32xf32>
    %108 = arith.addf %107, %13 : vector<16x32xf32>
    %c1 = arith.constant 1 : index
    %c0_69 = arith.constant 0 : index
    %c0_70 = arith.constant 0 : index
    %109 = vector.load %arg11[%c1, %c0_69, %c0_70] : memref<2x32x256xf32, #tpu.memory_space<vmem>>, vector<1x32x256xf32>
    %110 = vector.shape_cast %109 : vector<1x32x256xf32> to vector<32x256xf32>
    %cst_71 = arith.constant dense<0.000000e+00> : vector<16x256xf32>
    %111 = tpu.matmul %108, %110, %cst_71 {dimension_numbers = #tpu.dot_dimension_numbers<[1], [0], [0], [1], [0, 0, 1, 1], [], []>} : vector<16x32xf32>, vector<32x256xf32>, vector<16x256xf32> -> vector<16x256xf32>
    %112 = vector.extract_strided_slice %111 {offsets = [0, 0], sizes = [16, 64], strides = [1, 1]} : vector<16x256xf32> to vector<16x64xf32>
    %113 = vector.extract_strided_slice %111 {offsets = [0, 128], sizes = [16, 64], strides = [1, 1]} : vector<16x256xf32> to vector<16x64xf32>
    %c1_72 = arith.constant 1 : index
    %c0_73 = arith.constant 0 : index
    %c0_74 = arith.constant 0 : index
    %114 = vector.load %arg15[%c1_72, %c0_73, %c0_74] : memref<2x32x256xf32, #tpu.memory_space<vmem>>, vector<1x32x256xf32>
    %115 = vector.shape_cast %114 : vector<1x32x256xf32> to vector<32x256xf32>
    %cst_75 = arith.constant dense<0.000000e+00> : vector<16x256xf32>
    %116 = tpu.matmul %108, %115, %cst_75 {dimension_numbers = #tpu.dot_dimension_numbers<[1], [0], [0], [1], [0, 0, 1, 1], [], []>} : vector<16x32xf32>, vector<32x256xf32>, vector<16x256xf32> -> vector<16x256xf32>
    %c1_76 = arith.constant 1 : index
    %c0_77 = arith.constant 0 : index
    %c0_78 = arith.constant 0 : index
    %117 = vector.load %arg16[%c1_76, %c0_77, %c0_78] : memref<2x1x256xf32, #tpu.memory_space<vmem>>, vector<1x1x256xf32>
    %118 = vector.shape_cast %117 : vector<1x1x256xf32> to vector<1x256xf32>
    %119 = vector.broadcast %118 : vector<1x256xf32> to vector<16x256xf32>
    %120 = arith.addf %116, %119 : vector<16x256xf32>
    %c1_79 = arith.constant 1 : index
    %c0_80 = arith.constant 0 : index
    %c0_81 = arith.constant 0 : index
    %121 = vector.load %arg12[%c1_79, %c0_80, %c0_81] : memref<2x32x64xf32, #tpu.memory_space<vmem>>, vector<1x32x64xf32>
    %122 = vector.shape_cast %121 : vector<1x32x64xf32> to vector<32x64xf32>
    %cst_82 = arith.constant dense<0.000000e+00> : vector<256x64xf32>
    %123 = tpu.matmul %23, %122, %cst_82 {dimension_numbers = #tpu.dot_dimension_numbers<[1], [0], [0], [1], [0, 0, 1, 1], [], []>} : vector<256x32xf32>, vector<32x64xf32>, vector<256x64xf32> -> vector<256x64xf32>
    %124 = vector.shape_cast %113 : vector<16x64xf32> to vector<16x1x64xf32>
    %125 = vector.shape_cast %112 : vector<16x64xf32> to vector<1x16x64xf32>
    %126 = vector.broadcast %124 : vector<16x1x64xf32> to vector<16x16x64xf32>
    %127 = vector.broadcast %125 : vector<1x16x64xf32> to vector<16x16x64xf32>
    %128 = arith.addf %126, %127 : vector<16x16x64xf32>
    %129 = vector.shape_cast %123 : vector<256x64xf32> to vector<16x16x64xf32>
    %130 = arith.addf %128, %129 : vector<16x16x64xf32>
    %c1_83 = arith.constant 1 : index
    %c0_84 = arith.constant 0 : index
    %c0_85 = arith.constant 0 : index
    %131 = vector.load %arg13[%c1_83, %c0_84, %c0_85] : memref<2x1x64xf32, #tpu.memory_space<vmem>>, vector<1x1x64xf32>
    %132 = vector.shape_cast %131 : vector<1x1x64xf32> to vector<1x64xf32>
    %133 = vector.shape_cast %132 : vector<1x64xf32> to vector<1x1x64xf32>
    %134 = vector.broadcast %133 : vector<1x1x64xf32> to vector<16x16x64xf32>
    %135 = arith.addf %130, %134 : vector<16x16x64xf32>
    %cst_86 = arith.constant 0.000000e+00 : f32
    %136 = vector.broadcast %cst_86 : f32 to vector<16x16x64xf32>
    %137 = arith.cmpf ogt, %135, %136 : vector<16x16x64xf32>
    %cst_87 = arith.constant 0.00999999977 : f32
    %138 = vector.broadcast %cst_87 : f32 to vector<16x16x64xf32>
    %139 = arith.mulf %138, %135 : vector<16x16x64xf32>
    %140 = arith.select %137, %135, %139 : vector<16x16x64xi1>, vector<16x16x64xf32>
    %141 = vector.shape_cast %140 : vector<16x16x64xf32> to vector<256x64xf32>
    %c1_88 = arith.constant 1 : index
    %c0_89 = arith.constant 0 : index
    %c0_90 = arith.constant 0 : index
    %142 = vector.load %arg14[%c1_88, %c0_89, %c0_90] : memref<2x64x2xf32, #tpu.memory_space<vmem>>, vector<1x64x2xf32>
    %143 = vector.shape_cast %142 : vector<1x64x2xf32> to vector<64x2xf32>
    %cst_91 = arith.constant dense<0.000000e+00> : vector<256x2xf32>
    %144 = tpu.matmul %141, %143, %cst_91 {dimension_numbers = #tpu.dot_dimension_numbers<[1], [0], [0], [1], [0, 0, 1, 1], [], []>} : vector<256x64xf32>, vector<64x2xf32>, vector<256x2xf32> -> vector<256x2xf32>
    %145 = vector.shape_cast %144 : vector<256x2xf32> to vector<16x16x2xf32>
    %146 = vector.extract_strided_slice %145 {offsets = [0, 0, 0], sizes = [16, 16, 1], strides = [1, 1, 1]} : vector<16x16x2xf32> to vector<16x16x1xf32>
    %147 = vector.shape_cast %146 : vector<16x16x1xf32> to vector<16x16xf32>
    %148 = vector.extract_strided_slice %145 {offsets = [0, 0, 1], sizes = [16, 16, 1], strides = [1, 1, 1]} : vector<16x16x2xf32> to vector<16x16x1xf32>
    %149 = vector.shape_cast %148 : vector<16x16x1xf32> to vector<16x16xf32>
    %150 = tpu.concatenate %147, %149 in 0 : vector<16x16xf32>, vector<16x16xf32> -> vector<32x16xf32>
    %cst_92 = arith.constant -1.000000e+30 : f32
    %151 = vector.broadcast %cst_92 : f32 to vector<32x16xf32>
    %152 = arith.select %28, %150, %151 : vector<32x16xi1>, vector<32x16xf32>
    %cst_93 = arith.constant dense<0xFF800000> : vector<32xf32>
    %153 = vector.multi_reduction <maximumf>, %152, %cst_93 [1] : vector<32x16xf32> to vector<32xf32>
    %154 = vector.shape_cast %153 : vector<32xf32> to vector<32x1xf32>
    %155 = vector.broadcast %154 : vector<32x1xf32> to vector<32x16xf32>
    %156 = arith.subf %152, %155 : vector<32x16xf32>
    %157 = math.exp %156 : vector<32x16xf32>
    %158 = arith.mulf %157, %26 : vector<32x16xf32>
    %cst_94 = arith.constant dense<0.000000e+00> : vector<32xf32>
    %159 = vector.multi_reduction <add>, %158, %cst_94 [1] : vector<32x16xf32> to vector<32xf32>
    %160 = vector.shape_cast %159 : vector<32xf32> to vector<32x1xf32>
    %cst_95 = arith.constant 0.000000e+00 : f32
    %161 = vector.broadcast %cst_95 : f32 to vector<32x1xf32>
    %162 = arith.cmpf ogt, %160, %161 : vector<32x1xf32>
    %cst_96 = arith.constant 1.000000e+00 : f32
    %163 = vector.broadcast %cst_96 : f32 to vector<32x1xf32>
    %164 = arith.select %162, %160, %163 : vector<32x1xi1>, vector<32x1xf32>
    %165 = tpu.reciprocal %164 {approx = true} : vector<32x1xf32> -> vector<32x1xf32>
    %166 = vector.broadcast %165 : vector<32x1xf32> to vector<32x16xf32>
    %167 = arith.mulf %158, %166 : vector<32x16xf32>
    %168 = vector.extract_strided_slice %167 {offsets = [0, 0], sizes = [16, 16], strides = [1, 1]} : vector<32x16xf32> to vector<16x16xf32>
    %169 = vector.extract_strided_slice %120 {offsets = [0, 0], sizes = [16, 128], strides = [1, 1]} : vector<16x256xf32> to vector<16x128xf32>
    %cst_97 = arith.constant dense<0.000000e+00> : vector<16x128xf32>
    %170 = tpu.matmul %168, %169, %cst_97 {dimension_numbers = #tpu.dot_dimension_numbers<[1], [0], [0], [1], [0, 0, 1, 1], [], []>} : vector<16x16xf32>, vector<16x128xf32>, vector<16x128xf32> -> vector<16x128xf32>
    %171 = vector.extract_strided_slice %167 {offsets = [16, 0], sizes = [16, 16], strides = [1, 1]} : vector<32x16xf32> to vector<16x16xf32>
    %172 = vector.extract_strided_slice %120 {offsets = [0, 128], sizes = [16, 128], strides = [1, 1]} : vector<16x256xf32> to vector<16x128xf32>
    %cst_98 = arith.constant dense<0.000000e+00> : vector<16x128xf32>
    %173 = tpu.matmul %171, %172, %cst_98 {dimension_numbers = #tpu.dot_dimension_numbers<[1], [0], [0], [1], [0, 0, 1, 1], [], []>} : vector<16x16xf32>, vector<16x128xf32>, vector<16x128xf32> -> vector<16x128xf32>
    %174 = arith.addf %170, %173 : vector<16x128xf32>
    %c1_99 = arith.constant 1 : index
    %c0_100 = arith.constant 0 : index
    %c0_101 = arith.constant 0 : index
    %175 = vector.load %arg17[%c1_99, %c0_100, %c0_101] : memref<2x1x128xf32, #tpu.memory_space<vmem>>, vector<1x1x128xf32>
    %176 = vector.shape_cast %175 : vector<1x1x128xf32> to vector<1x128xf32>
    %177 = vector.broadcast %176 : vector<1x128xf32> to vector<16x128xf32>
    %178 = arith.addf %174, %177 : vector<16x128xf32>
    %cst_102 = arith.constant 0.000000e+00 : f32
    %179 = vector.broadcast %cst_102 : f32 to vector<16x128xf32>
    %180 = arith.maximumf %178, %179 : vector<16x128xf32>
    %c1_103 = arith.constant 1 : index
    %c0_104 = arith.constant 0 : index
    %c0_105 = arith.constant 0 : index
    %181 = vector.load %arg18[%c1_103, %c0_104, %c0_105] : memref<2x128x32xf32, #tpu.memory_space<vmem>>, vector<1x128x32xf32>
    %182 = vector.shape_cast %181 : vector<1x128x32xf32> to vector<128x32xf32>
    %cst_106 = arith.constant dense<0.000000e+00> : vector<16x32xf32>
    %183 = tpu.matmul %180, %182, %cst_106 {dimension_numbers = #tpu.dot_dimension_numbers<[1], [0], [0], [1], [0, 0, 1, 1], [], []>} : vector<16x128xf32>, vector<128x32xf32>, vector<16x32xf32> -> vector<16x32xf32>
    %c1_107 = arith.constant 1 : index
    %c0_108 = arith.constant 0 : index
    %c0_109 = arith.constant 0 : index
    %184 = vector.load %arg19[%c1_107, %c0_108, %c0_109] : memref<2x1x32xf32, #tpu.memory_space<vmem>>, vector<1x1x32xf32>
    %185 = vector.shape_cast %184 : vector<1x1x32xf32> to vector<1x32xf32>
    %186 = vector.broadcast %185 : vector<1x32xf32> to vector<16x32xf32>
    %187 = arith.addf %183, %186 : vector<16x32xf32>
    %188 = arith.addf %187, %108 : vector<16x32xf32>
    %189 = tpu.concatenate %1, %13, %108, %188 in 1 : vector<16x4xf32>, vector<16x32xf32>, vector<16x32xf32>, vector<16x32xf32> -> vector<16x100xf32>
    %cst_110 = arith.constant 0.000000e+00 : f32
    %190 = vector.broadcast %cst_110 : f32 to vector<2x12x256xf32>
    %c0_111 = arith.constant 0 : index
    %c0_112 = arith.constant 0 : index
    %c0_113 = arith.constant 0 : index
    %191 = vector.load %arg20[%c0_111, %c0_112, %c0_113] : memref<2x12x256xf32, #tpu.memory_space<vmem>>, vector<2x12x256xf32>
    tpu.vector_store %arg20[%c0_111, %c0_112, %c0_113], %190 {strides = array<i32>} : memref<2x12x256xf32, #tpu.memory_space<vmem>>, vector<2x12x256xf32>,
    %192 = vector.extract_strided_slice %189 {offsets = [0, 0], sizes = [8, 100], strides = [1, 1]} : vector<16x100xf32> to vector<8x100xf32>
    %cst_114 = arith.constant dense<0xFF800000> : vector<100xf32>
    %193 = vector.multi_reduction <maximumf>, %192, %cst_114 [0] : vector<8x100xf32> to vector<100xf32>
    %194 = vector.shape_cast %193 : vector<100xf32> to vector<1x100xf32>
    %c0_115 = arith.constant 0 : index
    %c0_116 = arith.constant 0 : index
    %c0_117 = arith.constant 0 : index
    %195 = vector.load %arg20[%c0_115, %c0_116, %c0_117] : memref<2x12x256xf32, #tpu.memory_space<vmem>>, vector<1x8x100xf32>
    %196 = vector.shape_cast %195 : vector<1x8x100xf32> to vector<8x100xf32>
    %197 = vector.shape_cast %192 : vector<8x100xf32> to vector<1x8x100xf32>
    tpu.vector_store %arg20[%c0_115, %c0_116, %c0_117], %197 {strides = array<i32>} : memref<2x12x256xf32, #tpu.memory_space<vmem>>, vector<1x8x100xf32>,
    %198 = vector.shape_cast %194 : vector<1x100xf32> to vector<1x100xf32>
    %199 = vector.broadcast %198 : vector<1x100xf32> to vector<12x100xf32>
    %c0_118 = arith.constant 0 : index
    %c0_119 = arith.constant 0 : index
    %c128 = arith.constant 128 : index
    %200 = vector.load %arg20[%c0_118, %c0_119, %c128] : memref<2x12x256xf32, #tpu.memory_space<vmem>>, vector<1x12x100xf32>
    %201 = vector.shape_cast %200 : vector<1x12x100xf32> to vector<12x100xf32>
    %202 = vector.shape_cast %199 : vector<12x100xf32> to vector<1x12x100xf32>
    tpu.vector_store %arg20[%c0_118, %c0_119, %c128], %202 {strides = array<i32>} : memref<2x12x256xf32, #tpu.memory_space<vmem>>, vector<1x12x100xf32>,
    %203 = vector.extract_strided_slice %189 {offsets = [8, 0], sizes = [8, 100], strides = [1, 1]} : vector<16x100xf32> to vector<8x100xf32>
    %cst_120 = arith.constant dense<0xFF800000> : vector<100xf32>
    %204 = vector.multi_reduction <maximumf>, %203, %cst_120 [0] : vector<8x100xf32> to vector<100xf32>
    %205 = vector.shape_cast %204 : vector<100xf32> to vector<1x100xf32>
    %c1_121 = arith.constant 1 : index
    %c0_122 = arith.constant 0 : index
    %c0_123 = arith.constant 0 : index
    %206 = vector.load %arg20[%c1_121, %c0_122, %c0_123] : memref<2x12x256xf32, #tpu.memory_space<vmem>>, vector<1x8x100xf32>
    %207 = vector.shape_cast %206 : vector<1x8x100xf32> to vector<8x100xf32>
    %208 = vector.shape_cast %203 : vector<8x100xf32> to vector<1x8x100xf32>
    tpu.vector_store %arg20[%c1_121, %c0_122, %c0_123], %208 {strides = array<i32>} : memref<2x12x256xf32, #tpu.memory_space<vmem>>, vector<1x8x100xf32>,
    %209 = vector.shape_cast %205 : vector<1x100xf32> to vector<1x100xf32>
    %210 = vector.broadcast %209 : vector<1x100xf32> to vector<12x100xf32>
    %c1_124 = arith.constant 1 : index
    %c0_125 = arith.constant 0 : index
    %c128_126 = arith.constant 128 : index
    %211 = vector.load %arg20[%c1_124, %c0_125, %c128_126] : memref<2x12x256xf32, #tpu.memory_space<vmem>>, vector<1x12x100xf32>
    %212 = vector.shape_cast %211 : vector<1x12x100xf32> to vector<12x100xf32>
    %213 = vector.shape_cast %210 : vector<12x100xf32> to vector<1x12x100xf32>
    tpu.vector_store %arg20[%c1_124, %c0_125, %c128_126], %213 {strides = array<i32>} : memref<2x12x256xf32, #tpu.memory_space<vmem>>, vector<1x12x100xf32>,
    return
  }
  func.func @transform_0(%arg0: i32) -> (i32, i32, i32) {
    %c0_i32 = arith.constant 0 : i32
    %c0_i32_0 = arith.constant 0 : i32
    %c0_i32_1 = arith.constant 0 : i32
    return %arg0, %c0_i32, %c0_i32_0 : i32, i32, i32
  }
  func.func @transform_1(%arg0: i32) -> (i32, i32, i32) {
    %c0_i32 = arith.constant 0 : i32
    %c0_i32_0 = arith.constant 0 : i32
    %c0_i32_1 = arith.constant 0 : i32
    return %arg0, %c0_i32, %c0_i32_0 : i32, i32, i32
  }
  func.func @transform_2(%arg0: i32) -> (i32, i32, i32) {
    %c0_i32 = arith.constant 0 : i32
    %c0_i32_0 = arith.constant 0 : i32
    %c0_i32_1 = arith.constant 0 : i32
    return %arg0, %c0_i32, %c0_i32_0 : i32, i32, i32
  }
  func.func @transform_3(%arg0: i32) -> (i32, i32, i32) {
    %c0_i32 = arith.constant 0 : i32
    %c0_i32_0 = arith.constant 0 : i32
    %c0_i32_1 = arith.constant 0 : i32
    return %arg0, %c0_i32, %c0_i32_0 : i32, i32, i32
  }
  func.func @transform_4(%arg0: i32) -> (i32, i32) {
    %c0_i32 = arith.constant 0 : i32
    %c0_i32_0 = arith.constant 0 : i32
    %c0_i32_1 = arith.constant 0 : i32
    return %c0_i32, %c0_i32_0 : i32, i32
  }
  func.func @transform_5(%arg0: i32) -> (i32, i32) {
    %c0_i32 = arith.constant 0 : i32
    %c0_i32_0 = arith.constant 0 : i32
    %c0_i32_1 = arith.constant 0 : i32
    return %c0_i32, %c0_i32_0 : i32, i32
  }
  func.func @transform_6(%arg0: i32) -> (i32, i32) {
    %c0_i32 = arith.constant 0 : i32
    %c0_i32_0 = arith.constant 0 : i32
    %c0_i32_1 = arith.constant 0 : i32
    return %c0_i32, %c0_i32_0 : i32, i32
  }
  func.func @transform_7(%arg0: i32) -> (i32, i32) {
    %c0_i32 = arith.constant 0 : i32
    %c0_i32_0 = arith.constant 0 : i32
    %c0_i32_1 = arith.constant 0 : i32
    return %c0_i32, %c0_i32_0 : i32, i32
  }
  func.func @transform_8(%arg0: i32) -> (i32, i32) {
    %c0_i32 = arith.constant 0 : i32
    %c0_i32_0 = arith.constant 0 : i32
    %c0_i32_1 = arith.constant 0 : i32
    return %c0_i32, %c0_i32_0 : i32, i32
  }
  func.func @transform_9(%arg0: i32) -> (i32, i32) {
    %c0_i32 = arith.constant 0 : i32
    %c0_i32_0 = arith.constant 0 : i32
    %c0_i32_1 = arith.constant 0 : i32
    return %c0_i32, %c0_i32_0 : i32, i32
  }
  func.func @transform_10(%arg0: i32) -> (i32, i32, i32) {
    %c0_i32 = arith.constant 0 : i32
    %c0_i32_0 = arith.constant 0 : i32
    %c0_i32_1 = arith.constant 0 : i32
    %c0_i32_2 = arith.constant 0 : i32
    return %c0_i32, %c0_i32_0, %c0_i32_1 : i32, i32, i32
  }
  func.func @transform_11(%arg0: i32) -> (i32, i32, i32) {
    %c0_i32 = arith.constant 0 : i32
    %c0_i32_0 = arith.constant 0 : i32
    %c0_i32_1 = arith.constant 0 : i32
    %c0_i32_2 = arith.constant 0 : i32
    return %c0_i32, %c0_i32_0, %c0_i32_1 : i32, i32, i32
  }
  func.func @transform_12(%arg0: i32) -> (i32, i32, i32) {
    %c0_i32 = arith.constant 0 : i32
    %c0_i32_0 = arith.constant 0 : i32
    %c0_i32_1 = arith.constant 0 : i32
    %c0_i32_2 = arith.constant 0 : i32
    return %c0_i32, %c0_i32_0, %c0_i32_1 : i32, i32, i32
  }
  func.func @transform_13(%arg0: i32) -> (i32, i32, i32) {
    %c0_i32 = arith.constant 0 : i32
    %c0_i32_0 = arith.constant 0 : i32
    %c0_i32_1 = arith.constant 0 : i32
    %c0_i32_2 = arith.constant 0 : i32
    return %c0_i32, %c0_i32_0, %c0_i32_1 : i32, i32, i32
  }
  func.func @transform_14(%arg0: i32) -> (i32, i32, i32) {
    %c0_i32 = arith.constant 0 : i32
    %c0_i32_0 = arith.constant 0 : i32
    %c0_i32_1 = arith.constant 0 : i32
    %c0_i32_2 = arith.constant 0 : i32
    return %c0_i32, %c0_i32_0, %c0_i32_1 : i32, i32, i32
  }
  func.func @transform_15(%arg0: i32) -> (i32, i32, i32) {
    %c0_i32 = arith.constant 0 : i32
    %c0_i32_0 = arith.constant 0 : i32
    %c0_i32_1 = arith.constant 0 : i32
    %c0_i32_2 = arith.constant 0 : i32
    return %c0_i32, %c0_i32_0, %c0_i32_1 : i32, i32, i32
  }
  func.func @transform_16(%arg0: i32) -> (i32, i32, i32) {
    %c0_i32 = arith.constant 0 : i32
    %c0_i32_0 = arith.constant 0 : i32
    %c0_i32_1 = arith.constant 0 : i32
    %c0_i32_2 = arith.constant 0 : i32
    return %c0_i32, %c0_i32_0, %c0_i32_1 : i32, i32, i32
  }
  func.func @transform_17(%arg0: i32) -> (i32, i32, i32) {
    %c0_i32 = arith.constant 0 : i32
    %c0_i32_0 = arith.constant 0 : i32
    %c0_i32_1 = arith.constant 0 : i32
    %c0_i32_2 = arith.constant 0 : i32
    return %c0_i32, %c0_i32_0, %c0_i32_1 : i32, i32, i32
  }
  func.func @transform_18(%arg0: i32) -> (i32, i32, i32) {
    %c0_i32 = arith.constant 0 : i32
    %c0_i32_0 = arith.constant 0 : i32
    %c0_i32_1 = arith.constant 0 : i32
    %c0_i32_2 = arith.constant 0 : i32
    return %c0_i32, %c0_i32_0, %c0_i32_1 : i32, i32, i32
  }
  func.func @transform_19(%arg0: i32) -> (i32, i32, i32) {
    %c0_i32 = arith.constant 0 : i32
    %c0_i32_0 = arith.constant 0 : i32
    %c0_i32_1 = arith.constant 0 : i32
    return %arg0, %c0_i32, %c0_i32_0 : i32, i32, i32
  }
}

</mosaic_0001>

<llo_original>
// kernel: psp_gnn_forward.1
$region0: #{psp_gnn_forward.1}
  #allocation0 [shape = 'u32[]', space=smem, size = 0x4, offset = 0x4, fixed_abs, tag = 'smem constant byte address 0x4 - core index']
  #allocation1 [shape = 'u32[144,128]{1,0:T(1,128)}', space=vmem, size = 0x12000, scoped, tag = 'internal scratch']
  %s0 = inlined_call_operand.vmem [shape: f32[1,16,4], index: 0, kind: input, shape index: {}]
  %s1 = inlined_call_operand.vmem [shape: f32[1,256,32], index: 1, kind: input, shape index: {}]
  %s2 = inlined_call_operand.vmem [shape: f32[1,256,8], index: 2, kind: input, shape index: {}]
  %s3 = inlined_call_operand.vmem [shape: f32[1,16,16], index: 3, kind: input, shape index: {}]
  %s4 = inlined_call_operand.vmem [shape: f32[4,32], index: 4, kind: input, shape index: {}]
  %s5 = inlined_call_operand.vmem [shape: f32[1,32], index: 5, kind: input, shape index: {}]
  %s6 = inlined_call_operand.vmem [shape: f32[32,32], index: 6, kind: input, shape index: {}]
  %s7 = inlined_call_operand.vmem [shape: f32[1,32], index: 7, kind: input, shape index: {}]
  %s8 = inlined_call_operand.vmem [shape: f32[8,32], index: 8, kind: input, shape index: {}]
  %s9 = inlined_call_operand.vmem [shape: f32[1,32], index: 9, kind: input, shape index: {}]
  %s10 = inlined_call_operand.vmem [shape: f32[2,32,256], index: 10, kind: input, shape index: {}]
  %s11 = inlined_call_operand.vmem [shape: f32[2,32,64], index: 11, kind: input, shape index: {}]
  %s12 = inlined_call_operand.vmem [shape: f32[2,1,64], index: 12, kind: input, shape index: {}]
  %s13 = inlined_call_operand.vmem [shape: f32[2,64,2], index: 13, kind: input, shape index: {}]
  %s14 = inlined_call_operand.vmem [shape: f32[2,32,256], index: 14, kind: input, shape index: {}]
  %s15 = inlined_call_operand.vmem [shape: f32[2,1,256], index: 15, kind: input, shape index: {}]
  %s16 = inlined_call_operand.vmem [shape: f32[2,1,128], index: 16, kind: input, shape index: {}]
  %s17 = inlined_call_operand.vmem [shape: f32[2,128,32], index: 17, kind: input, shape index: {}]
  %s18 = inlined_call_operand.vmem [shape: f32[2,1,32], index: 18, kind: input, shape index: {}]
  %s19 = inlined_call_operand.vmem [shape: f32[2,12,256], index: 19, kind: output, shape index: {}]
  %s20 = sld [smem:[#allocation0]]
  $region86: #{psp_gnn_forward.1} parent=0
    _
  %s22 = ssub.s32 1, %s20
  %s23 = scalar_select 0, %s22, %s20
  // Predicated region
  $region2: #{psp_gnn_forward.1} parent=0 // pred_check
    _
  $region3: #{psp_gnn_forward.1} parent=0 // pred_check_branch
    %25 = sbr.rel (0) target = $region5
  $region4: #{psp_gnn_forward.1} parent=0 // pred_region
    _
  $region5: #{psp_gnn_forward.1} parent=0 // pred_fallthru
    _
  // Predicated region
  $region6: #{psp_gnn_forward.1} parent=0 // pred_check
    _
  $region7: #{psp_gnn_forward.1} parent=0 // pred_check_branch
    %27 = sbr.rel (0) target = $region9
  $region8: #{psp_gnn_forward.1} parent=0 // pred_region
    _
  $region9: #{psp_gnn_forward.1} parent=0 // pred_fallthru
    _
  // Predicated region
  $region10: #{psp_gnn_forward.1} parent=0 // pred_check
    _
  $region11: #{psp_gnn_forward.1} parent=0 // pred_check_branch
    %29 = sbr.rel (0) target = $region13
  $region12: #{psp_gnn_forward.1} parent=0 // pred_region
    _
  $region13: #{psp_gnn_forward.1} parent=0 // pred_fallthru
    _
  // Predicated region
  $region14: #{psp_gnn_forward.1} parent=0 // pred_check
    _
  $region15: #{psp_gnn_forward.1} parent=0 // pred_check_branch
    %31 = sbr.rel (0) target = $region17
  $region16: #{psp_gnn_forward.1} parent=0 // pred_region
    _
  $region17: #{psp_gnn_forward.1} parent=0 // pred_fallthru
    _
  // Predicated region
  $region18: #{psp_gnn_forward.1} parent=0 // pred_check
    _
  $region19: #{psp_gnn_forward.1} parent=0 // pred_check_branch
    %33 = sbr.rel (0) target = $region21
  $region20: #{psp_gnn_forward.1} parent=0 // pred_region
    _
  $region21: #{psp_gnn_forward.1} parent=0 // pred_fallthru
    _
  // Predicated region
  $region22: #{psp_gnn_forward.1} parent=0 // pred_check
    _
  $region23: #{psp_gnn_forward.1} parent=0 // pred_check_branch
    %35 = sbr.rel (0) target = $region25
  $region24: #{psp_gnn_forward.1} parent=0 // pred_region
    _
  $region25: #{psp_gnn_forward.1} parent=0 // pred_fallthru
    _
  // Predicated region
  $region26: #{psp_gnn_forward.1} parent=0 // pred_check
    _
  $region27: #{psp_gnn_forward.1} parent=0 // pred_check_branch
    %37 = sbr.rel (0) target = $region29
  $region28: #{psp_gnn_forward.1} parent=0 // pred_region
    _
  $region29: #{psp_gnn_forward.1} parent=0 // pred_fallthru
    _
  // Predicated region
  $region30: #{psp_gnn_forward.1} parent=0 // pred_check
    _
  $region31: #{psp_gnn_forward.1} parent=0 // pred_check_branch
    %39 = sbr.rel (0) target = $region33
  $region32: #{psp_gnn_forward.1} parent=0 // pred_region
    _
  $region33: #{psp_gnn_forward.1} parent=0 // pred_fallthru
    _
  // Predicated region
  $region34: #{psp_gnn_forward.1} parent=0 // pred_check
    _
  $region35: #{psp_gnn_forward.1} parent=0 // pred_check_branch
    %41 = sbr.rel (0) target = $region37
  $region36: #{psp_gnn_forward.1} parent=0 // pred_region
    _
  $region37: #{psp_gnn_forward.1} parent=0 // pred_fallthru
    _
  // Predicated region
  $region38: #{psp_gnn_forward.1} parent=0 // pred_check
    _
  $region39: #{psp_gnn_forward.1} parent=0 // pred_check_branch
    %43 = sbr.rel (0) target = $region41
  $region40: #{psp_gnn_forward.1} parent=0 // pred_region
    _
  $region41: #{psp_gnn_forward.1} parent=0 // pred_fallthru
    _
  // Predicated region
  $region42: #{psp_gnn_forward.1} parent=0 // pred_check
    _
  $region43: #{psp_gnn_forward.1} parent=0 // pred_check_branch
    %45 = sbr.rel (0) target = $region45
  $region44: #{psp_gnn_forward.1} parent=0 // pred_region
    _
  $region45: #{psp_gnn_forward.1} parent=0 // pred_fallthru
    _
  // Predicated region
  $region46: #{psp_gnn_forward.1} parent=0 // pred_check
    _
  $region47: #{psp_gnn_forward.1} parent=0 // pred_check_branch
    %47 = sbr.rel (0) target = $region49
  $region48: #{psp_gnn_forward.1} parent=0 // pred_region
    _
  $region49: #{psp_gnn_forward.1} parent=0 // pred_fallthru
    _
  // Predicated region
  $region50: #{psp_gnn_forward.1} parent=0 // pred_check
    _
  $region51: #{psp_gnn_forward.1} parent=0 // pred_check_branch
    %49 = sbr.rel (0) target = $region53
  $region52: #{psp_gnn_forward.1} parent=0 // pred_region
    _
  $region53: #{psp_gnn_forward.1} parent=0 // pred_fallthru
    _
  // Predicated region
  $region54: #{psp_gnn_forward.1} parent=0 // pred_check
    _
  $region55: #{psp_gnn_forward.1} parent=0 // pred_check_branch
    %51 = sbr.rel (0) target = $region57
  $region56: #{psp_gnn_forward.1} parent=0 // pred_region
    _
  $region57: #{psp_gnn_forward.1} parent=0 // pred_fallthru
    _
  // Predicated region
  $region58: #{psp_gnn_forward.1} parent=0 // pred_check
    _
  $region59: #{psp_gnn_forward.1} parent=0 // pred_check_branch
    %53 = sbr.rel (0) target = $region61
  $region60: #{psp_gnn_forward.1} parent=0 // pred_region
    _
  $region61: #{psp_gnn_forward.1} parent=0 // pred_fallthru
    _
  // Predicated region
  $region62: #{psp_gnn_forward.1} parent=0 // pred_check
    _
  $region63: #{psp_gnn_forward.1} parent=0 // pred_check_branch
    %55 = sbr.rel (0) target = $region65
  $region64: #{psp_gnn_forward.1} parent=0 // pred_region
    _
  $region65: #{psp_gnn_forward.1} parent=0 // pred_fallthru
    _
  // Predicated region
  $region66: #{psp_gnn_forward.1} parent=0 // pred_check
    _
  $region67: #{psp_gnn_forward.1} parent=0 // pred_check_branch
    %57 = sbr.rel (0) target = $region69
  $region68: #{psp_gnn_forward.1} parent=0 // pred_region
    _
  $region69: #{psp_gnn_forward.1} parent=0 // pred_fallthru
    _
  // Predicated region
  $region70: #{psp_gnn_forward.1} parent=0 // pred_check
    _
  $region71: #{psp_gnn_forward.1} parent=0 // pred_check_branch
    %59 = sbr.rel (0) target = $region73
  $region72: #{psp_gnn_forward.1} parent=0 // pred_region
    _
  $region73: #{psp_gnn_forward.1} parent=0 // pred_fallthru
    _
  // Predicated region
  $region74: #{psp_gnn_forward.1} parent=0 // pred_check
    _
  $region75: #{psp_gnn_forward.1} parent=0 // pred_check_branch
    %61 = sbr.rel (0) target = $region77
  $region76: #{psp_gnn_forward.1} parent=0 // pred_region
    _
  $region77: #{psp_gnn_forward.1} parent=0 // pred_fallthru
    _
  %v62 = vld [vmem:[%s0] sm:$0xff]
  %v63 = vld [vmem:[%s0 + $0x8] sm:$0xff]
  %v64 = vld [vmem:[%s4] sm:$0xf]
  %v65 = vld [vmem:[%s5] sm:$0x1]
  %v67 = vlaneseq
  %v68 = vshrl.u32 %v67, 7
  %v69 = vsub.s32 0, %v68
  %v70 = vrot.slane %v65, %v69
  %vm72 = vcmask 31744
  %v74 = vsel %vm72, %v62, 0
  %v77 = vsel %vm72, %v63, 0
  %vm79 = vcmask 1043456
  %v81 = vsel %vm79, %v64, 0
  %83 = vmatprep.subr.mxu0 0.0
  %84 = vmatpush1.msra.mxu0 %v81
  %85 = vmatprep.subr.mxu0 0.0
  %86 = vmatpush1.msra.mxu0 0.0
  %87 = vmatprep.subr.mxu0 0.0
  %88 = vmatpush1.msra.mxu0 0.0
  %89 = vmatprep.subr.mxu0 0.0
  %90 = vmatpush1.msra.mxu0 0.0
  %91 = vmatprep.subr.mxu0 0.0
  %92 = vmatpush1.msra.mxu0 0.0
  %93 = vmatprep.subr.mxu0 0.0
  %94 = vmatpush1.msra.mxu0 0.0
  %95 = vmatprep.subr.mxu0 0.0
  %96 = vmatpush1.msra.mxu0 0.0
  %97 = vmatprep.subr.mxu0 0.0
  %98 = vmatpush1.msra.mxu0 0.0
  %99 = vmatprep.subr.mxu0 0.0
  %100 = vmatpush1.msra.mxu0 0.0
  %101 = vmatprep.subr.mxu0 0.0
  %102 = vmatpush1.msra.mxu0 0.0
  %103 = vmatprep.subr.mxu0 0.0
  %104 = vmatpush1.msra.mxu0 0.0
  %105 = vmatprep.subr.mxu0 0.0
  %106 = vmatpush1.msra.mxu0 0.0
  %107 = vmatprep.subr.mxu0 0.0
  %108 = vmatpush1.msra.mxu0 0.0
  %109 = vmatprep.subr.mxu0 0.0
  %110 = vmatpush1.msra.mxu0 0.0
  %111 = vmatprep.subr.mxu0 0.0
  %112 = vmatpush1.msra.mxu0 0.0
  %113 = vmatprep.subr.mxu0 0.0
  %114 = vmatpush1.msra.mxu0 0.0
  %115 = vmatprep.subr.mxu0 0.0
  %116 = vmatpush1.msra.mxu0 0.0
  %117 = vmatprep.subr.mxu0 0.0
  %118 = vmatpush1.msra.mxu0 0.0
  %119 = vmatprep.subr.mxu0 0.0
  %120 = vmatpush1.msra.mxu0 0.0
  %121 = vmatprep.subr.mxu0 0.0
  %122 = vmatpush1.msra.mxu0 0.0
  %123 = vmatprep.subr.mxu0 0.0
  %124 = vmatpush1.msra.mxu0 0.0
  %125 = vmatprep.subr.mxu0 0.0
  %126 = vmatpush1.msra.mxu0 0.0
  %127 = vmatprep.subr.mxu0 0.0
  %128 = vmatpush1.msra.mxu0 0.0
  %129 = vmatprep.subr.mxu0 0.0
  %130 = vmatpush1.msra.mxu0 0.0
  %131 = vmatprep.subr.mxu0 0.0
  %132 = vmatpush1.msra.mxu0 0.0
  %133 = vmatprep.subr.mxu0 0.0
  %134 = vmatpush1.msra.mxu0 0.0
  %135 = vmatprep.subr.mxu0 0.0
  %136 = vmatpush1.msra.mxu0 0.0
  %137 = vmatprep.subr.mxu0 0.0
  %138 = vmatpush1.msra.mxu0 0.0
  %139 = vmatprep.subr.mxu0 0.0
  %140 = vmatpush1.msra.mxu0 0.0
  %141 = vmatprep.subr.mxu0 0.0
  %142 = vmatpush1.msra.mxu0 0.0
  %143 = vmatprep.subr.mxu0 0.0
  %144 = vmatpush1.msra.mxu0 0.0
  %145 = vmatprep.subr.mxu0 0.0
  %146 = vmatpush1.msra.mxu0 0.0
  %147 = vmatprep.mubr.f32.mxu0 0.0
  %148 = vmatmul.mubr.f32.gmra.mrb[0].mxu0 %v74
  %v149 = vpop.f32.mrb[0].mxu0
  %v150 = vadd.f32 %v70, %v149
  %v151 = vpop.f32.mrb[0].mxu0
  %152 = vmatprep.mubr.f32.mxu0 0.0
  %153 = vmatmul.mubr.f32.gmra.mrb[0].mxu0 %v77
  %v154 = vpop.f32.mrb[0].mxu0
  %v155 = vadd.f32 %v70, %v154
  %v156 = vpop.f32.mrb[0].mxu0
  %157 = vdwg.mxu0
  %v158 = vmax.f32 %v150, 0.0
  %v159 = vmax.f32 %v155, 0.0
  %v160 = vld [vmem:[%s6] sm:$0xff]
  %v161 = vld [vmem:[%s6 + $0x8] sm:$0xff]
  %v162 = vld [vmem:[%s6 + $0x10] sm:$0xff]
  %v163 = vld [vmem:[%s6 + $0x18] sm:$0xff]
  %v164 = vld [vmem:[%s7] sm:$0x1]
  %v166 = vlaneseq
  %v167 = vshrl.u32 %v166, 7
  %v168 = vsub.s32 0, %v167
  %v169 = vrot.slane %v164, %v168
  %vm171 = vcmask 261120
  %v173 = vsel %vm171, %v158, 0
  %v176 = vsel %vm171, %v159, 0
  %178 = vmatprep.subr.mxu0 0.0
  %179 = vmatpush1.msra.mxu0 %v160
  %180 = vmatprep.subr.mxu0 0.0
  %181 = vmatpush1.msra.mxu0 %v161
  %182 = vmatprep.subr.mxu0 0.0
  %183 = vmatpush1.msra.mxu0 %v162
  %184 = vmatprep.subr.mxu0 0.0
  %185 = vmatpush1.msra.mxu0 %v163
  %186 = vmatprep.subr.mxu0 0.0
  %187 = vmatpush1.msra.mxu0 0.0
  %188 = vmatprep.subr.mxu0 0.0
  %189 = vmatpush1.msra.mxu0 0.0
  %190 = vmatprep.subr.mxu0 0.0
  %191 = vmatpush1.msra.mxu0 0.0
  %192 = vmatprep.subr.mxu0 0.0
  %193 = vmatpush1.msra.mxu0 0.0
  %194 = vmatprep.subr.mxu0 0.0
  %195 = vmatpush1.msra.mxu0 0.0
  %196 = vmatprep.subr.mxu0 0.0
  %197 = vmatpush1.msra.mxu0 0.0
  %198 = vmatprep.subr.mxu0 0.0
  %199 = vmatpush1.msra.mxu0 0.0
  %200 = vmatprep.subr.mxu0 0.0
  %201 = vmatpush1.msra.mxu0 0.0
  %202 = vmatprep.subr.mxu0 0.0
  %203 = vmatpush1.msra.mxu0 0.0
  %204 = vmatprep.subr.mxu0 0.0
  %205 = vmatpush1.msra.mxu0 0.0
  %206 = vmatprep.subr.mxu0 0.0
  %207 = vmatpush1.msra.mxu0 0.0
  %208 = vmatprep.subr.mxu0 0.0
  %209 = vmatpush1.msra.mxu0 0.0
  %210 = vmatprep.subr.mxu0 0.0
  %211 = vmatpush1.msra.mxu0 0.0
  %212 = vmatprep.subr.mxu0 0.0
  %213 = vmatpush1.msra.mxu0 0.0
  %214 = vmatprep.subr.mxu0 0.0
  %215 = vmatpush1.msra.mxu0 0.0
  %216 = vmatprep.subr.mxu0 0.0
  %217 = vmatpush1.msra.mxu0 0.0
  %218 = vmatprep.subr.mxu0 0.0
  %219 = vmatpush1.msra.mxu0 0.0
  %220 = vmatprep.subr.mxu0 0.0
  %221 = vmatpush1.msra.mxu0 0.0
  %222 = vmatprep.subr.mxu0 0.0
  %223 = vmatpush1.msra.mxu0 0.0
  %224 = vmatprep.subr.mxu0 0.0
  %225 = vmatpush1.msra.mxu0 0.0
  %226 = vmatprep.subr.mxu0 0.0
  %227 = vmatpush1.msra.mxu0 0.0
  %228 = vmatprep.subr.mxu0 0.0
  %229 = vmatpush1.msra.mxu0 0.0
  %230 = vmatprep.subr.mxu0 0.0
  %231 = vmatpush1.msra.mxu0 0.0
  %232 = vmatprep.subr.mxu0 0.0
  %233 = vmatpush1.msra.mxu0 0.0
  %234 = vmatprep.subr.mxu0 0.0
  %235 = vmatpush1.msra.mxu0 0.0
  %236 = vmatprep.subr.mxu0 0.0
  %237 = vmatpush1.msra.mxu0 0.0
  %238 = vmatprep.subr.mxu0 0.0
  %239 = vmatpush1.msra.mxu0 0.0
  %240 = vmatprep.subr.mxu0 0.0
  %241 = vmatpush1.msra.mxu0 0.0
  %242 = vmatprep.mubr.f32.mxu0 0.0
  %243 = vmatmul.mubr.f32.gmra.mrb[0].mxu0 %v173
  %v244 = vpop.f32.mrb[0].mxu0
  %v245 = vadd.f32 %v169, %v244
  %v246 = vpop.f32.mrb[0].mxu0
  %247 = vmatprep.mubr.f32.mxu0 0.0
  %248 = vmatmul.mubr.f32.gmra.mrb[0].mxu0 %v176
  %v249 = vpop.f32.mrb[0].mxu0
  %v250 = vadd.f32 %v169, %v249
  %v251 = vpop.f32.mrb[0].mxu0
  %252 = vdwg.mxu0
  %v253 = vld [vmem:[%s1] sm:$0xff]
  %v254 = vld [vmem:[%s1 + $0x8] sm:$0xff]
  %v255 = vld [vmem:[%s1 + $0x10] sm:$0xff]
  %v256 = vld [vmem:[%s1 + $0x18] sm:$0xff]
  %v257 = vld [vmem:[%s1 + $0x20] sm:$0xff]
  %v258 = vld [vmem:[%s1 + $0x28] sm:$0xff]
  %v259 = vld [vmem:[%s1 + $0x30] sm:$0xff]
  %v260 = vld [vmem:[%s1 + $0x38] sm:$0xff]
  %v261 = vld [vmem:[%s1 + $0x40] sm:$0xff]
  %v262 = vld [vmem:[%s1 + $0x48] sm:$0xff]
  %v263 = vld [vmem:[%s1 + $0x50] sm:$0xff]
  %v264 = vld [vmem:[%s1 + $0x58] sm:$0xff]
  %v265 = vld [vmem:[%s1 + $0x60] sm:$0xff]
  %v266 = vld [vmem:[%s1 + $0x68] sm:$0xff]
  %v267 = vld [vmem:[%s1 + $0x70] sm:$0xff]
  %v268 = vld [vmem:[%s1 + $0x78] sm:$0xff]
  %v269 = vld [vmem:[%s1 + $0x80] sm:$0xff]
  %v270 = vld [vmem:[%s1 + $0x88] sm:$0xff]
  %v271 = vld [vmem:[%s1 + $0x90] sm:$0xff]
  %v272 = vld [vmem:[%s1 + $0x98] sm:$0xff]
  %v273 = vld [vmem:[%s1 + $0xa0] sm:$0xff]
  %v274 = vld [vmem:[%s1 + $0xa8] sm:$0xff]
  %v275 = vld [vmem:[%s1 + $0xb0] sm:$0xff]
  %v276 = vld [vmem:[%s1 + $0xb8] sm:$0xff]
  %v277 = vld [vmem:[%s1 + $0xc0] sm:$0xff]
  %v278 = vld [vmem:[%s1 + $0xc8] sm:$0xff]
  %v279 = vld [vmem:[%s1 + $0xd0] sm:$0xff]
  %v280 = vld [vmem:[%s1 + $0xd8] sm:$0xff]
  %v281 = vld [vmem:[%s1 + $0xe0] sm:$0xff]
  %v282 = vld [vmem:[%s1 + $0xe8] sm:$0xff]
  %v283 = vld [vmem:[%s1 + $0xf0] sm:$0xff]
  %v284 = vld [vmem:[%s1 + $0xf8] sm:$0xff]
  %v285 = vld [vmem:[%s2] sm:$0xff]
  %v286 = vld [vmem:[%s2 + $0x8] sm:$0xff]
  %v287 = vld [vmem:[%s2 + $0x10] sm:$0xff]
  %v288 = vld [vmem:[%s2 + $0x18] sm:$0xff]
  %v289 = vld [vmem:[%s2 + $0x20] sm:$0xff]
  %v290 = vld [vmem:[%s2 + $0x28] sm:$0xff]
  %v291 = vld [vmem:[%s2 + $0x30] sm:$0xff]
  %v292 = vld [vmem:[%s2 + $0x38] sm:$0xff]
  %v293 = vld [vmem:[%s2 + $0x40] sm:$0xff]
  %v294 = vld [vmem:[%s2 + $0x48] sm:$0xff]
  %v295 = vld [vmem:[%s2 + $0x50] sm:$0xff]
  %v296 = vld [vmem:[%s2 + $0x58] sm:$0xff]
  %v297 = vld [vmem:[%s2 + $0x60] sm:$0xff]
  %v298 = vld [vmem:[%s2 + $0x68] sm:$0xff]
  %v299 = vld [vmem:[%s2 + $0x70] sm:$0xff]
  %v300 = vld [vmem:[%s2 + $0x78] sm:$0xff]
  %v301 = vld [vmem:[%s2 + $0x80] sm:$0xff]
  %v302 = vld [vmem:[%s2 + $0x88] sm:$0xff]
  %v303 = vld [vmem:[%s2 + $0x90] sm:$0xff]
  %v304 = vld [vmem:[%s2 + $0x98] sm:$0xff]
  %v305 = vld [vmem:[%s2 + $0xa0] sm:$0xff]
  %v306 = vld [vmem:[%s2 + $0xa8] sm:$0xff]
  %v307 = vld [vmem:[%s2 + $0xb0] sm:$0xff]
  %v308 = vld [vmem:[%s2 + $0xb8] sm:$0xff]
  %v309 = vld [vmem:[%s2 + $0xc0] sm:$0xff]
  %v310 = vld [vmem:[%s2 + $0xc8] sm:$0xff]
  %v311 = vld [vmem:[%s2 + $0xd0] sm:$0xff]
  %v312 = vld [vmem:[%s2 + $0xd8] sm:$0xff]
  %v313 = vld [vmem:[%s2 + $0xe0] sm:$0xff]
  %v314 = vld [vmem:[%s2 + $0xe8] sm:$0xff]
  %v315 = vld [vmem:[%s2 + $0xf0] sm:$0xff]
  %v316 = vld [vmem:[%s2 + $0xf8] sm:$0xff]
  %v317 = vld [vmem:[%s8] sm:$0xff]
  %vm318 = vcmask 64512
  %v320 = vsel %vm318, %v285, 0
  %v323 = vsel %vm318, %v286, 0
  %v326 = vsel %vm318, %v287, 0
  %v329 = vsel %vm318, %v288, 0
  %v332 = vsel %vm318, %v289, 0
  %v335 = vsel %vm318, %v290, 0
  %v338 = vsel %vm318, %v291, 0
  %v341 = vsel %vm318, %v292, 0
  %v344 = vsel %vm318, %v293, 0
  %v347 = vsel %vm318, %v294, 0
  %v350 = vsel %vm318, %v295, 0
  %v353 = vsel %vm318, %v296, 0
  %v356 = vsel %vm318, %v297, 0
  %v359 = vsel %vm318, %v298, 0
  %v362 = vsel %vm318, %v299, 0
  %v365 = vsel %vm318, %v300, 0
  %v368 = vsel %vm318, %v301, 0
  %v371 = vsel %vm318, %v302, 0
  %v374 = vsel %vm318, %v303, 0
  %v377 = vsel %vm318, %v304, 0
  %v380 = vsel %vm318, %v305, 0
  %v383 = vsel %vm318, %v306, 0
  %v386 = vsel %vm318, %v307, 0
  %v389 = vsel %vm318, %v308, 0
  %v392 = vsel %vm318, %v309, 0
  %v395 = vsel %vm318, %v310, 0
  %v398 = vsel %vm318, %v311, 0
  %v401 = vsel %vm318, %v312, 0
  %v404 = vsel %vm318, %v313, 0
  %v407 = vsel %vm318, %v314, 0
  %v410 = vsel %vm318, %v315, 0
  %v413 = vsel %vm318, %v316, 0
  %415 = vmatprep.subr.mxu0 0.0
  %416 = vmatpush1.msra.mxu0 %v317
  %417 = vmatprep.subr.mxu0 0.0
  %418 = vmatpush1.msra.mxu0 0.0
  %419 = vmatprep.subr.mxu0 0.0
  %420 = vmatpush1.msra.mxu0 0.0
  %421 = vmatprep.subr.mxu0 0.0
  %422 = vmatpush1.msra.mxu0 0.0
  %423 = vmatprep.subr.mxu0 0.0
  %424 = vmatpush1.msra.mxu0 0.0
  %425 = vmatprep.subr.mxu0 0.0
  %426 = vmatpush1.msra.mxu0 0.0
  %427 = vmatprep.subr.mxu0 0.0
  %428 = vmatpush1.msra.mxu0 0.0
  %429 = vmatprep.subr.mxu0 0.0
  %430 = vmatpush1.msra.mxu0 0.0
  %431 = vmatprep.subr.mxu0 0.0
  %432 = vmatpush1.msra.mxu0 0.0
  %433 = vmatprep.subr.mxu0 0.0
  %434 = vmatpush1.msra.mxu0 0.0
  %435 = vmatprep.subr.mxu0 0.0
  %436 = vmatpush1.msra.mxu0 0.0
  %437 = vmatprep.subr.mxu0 0.0
  %438 = vmatpush1.msra.mxu0 0.0
  %439 = vmatprep.subr.mxu0 0.0
  %440 = vmatpush1.msra.mxu0 0.0
  %441 = vmatprep.subr.mxu0 0.0
  %442 = vmatpush1.msra.mxu0 0.0
  %443 = vmatprep.subr.mxu0 0.0
  %444 = vmatpush1.msra.mxu0 0.0
  %445 = vmatprep.subr.mxu0 0.0
  %446 = vmatpush1.msra.mxu0 0.0
  %447 = vmatprep.subr.mxu0 0.0
  %448 = vmatpush1.msra.mxu0 0.0
  %449 = vmatprep.subr.mxu0 0.0
  %450 = vmatpush1.msra.mxu0 0.0
  %451 = vmatprep.subr.mxu0 0.0
  %452 = vmatpush1.msra.mxu0 0.0
  %453 = vmatprep.subr.mxu0 0.0
  %454 = vmatpush1.msra.mxu0 0.0
  %455 = vmatprep.subr.mxu0 0.0
  %456 = vmatpush1.msra.mxu0 0.0
  %457 = vmatprep.subr.mxu0 0.0
  %458 = vmatpush1.msra.mxu0 0.0
  %459 = vmatprep.subr.mxu0 0.0
  %460 = vmatpush1.msra.mxu0 0.0
  %461 = vmatprep.subr.mxu0 0.0
  %462 = vmatpush1.msra.mxu0 0.0
  %463 = vmatprep.subr.mxu0 0.0
  %464 = vmatpush1.msra.mxu0 0.0
  %465 = vmatprep.subr.mxu0 0.0
  %466 = vmatpush1.msra.mxu0 0.0
  %467 = vmatprep.subr.mxu0 0.0
  %468 = vmatpush1.msra.mxu0 0.0
  %469 = vmatprep.subr.mxu0 0.0
  %470 = vmatpush1.msra.mxu0 0.0
  %471 = vmatprep.subr.mxu0 0.0
  %472 = vmatpush1.msra.mxu0 0.0
  %473 = vmatprep.subr.mxu0 0.0
  %474 = vmatpush1.msra.mxu0 0.0
  %475 = vmatprep.subr.mxu0 0.0
  %476 = vmatpush1.msra.mxu0 0.0
  %477 = vmatprep.subr.mxu0 0.0
  %478 = vmatpush1.msra.mxu0 0.0
  %479 = vmatprep.mubr.f32.mxu0 0.0
  %480 = vmatmul.mubr.f32.gmra.mrb[0].mxu0 %v320
  %v481 = vpop.f32.mrb[0].mxu0
  %v482 = vadd.f32 0.0, %v481
  %v483 = vpop.f32.mrb[0].mxu0
  %484 = vmatprep.mubr.f32.mxu0 0.0
  %485 = vmatmul.mubr.f32.gmra.mrb[0].mxu0 %v323
  %v486 = vpop.f32.mrb[0].mxu0
  %v487 = vadd.f32 0.0, %v486
  %v488 = vpop.f32.mrb[0].mxu0
  %489 = vmatprep.mubr.f32.mxu0 0.0
  %490 = vmatmul.mubr.f32.gmra.mrb[0].mxu0 %v326
  %v491 = vpop.f32.mrb[0].mxu0
  %v492 = vadd.f32 0.0, %v491
  %v493 = vpop.f32.mrb[0].mxu0
  %494 = vmatprep.mubr.f32.mxu0 0.0
  %495 = vmatmul.mubr.f32.gmra.mrb[0].mxu0 %v329
  %v496 = vpop.f32.mrb[0].mxu0
  %v497 = vadd.f32 0.0, %v496
  %v498 = vpop.f32.mrb[0].mxu0
  %499 = vmatprep.mubr.f32.mxu0 0.0
  %500 = vmatmul.mubr.f32.gmra.mrb[0].mxu0 %v332
  %v501 = vpop.f32.mrb[0].mxu0
  %v502 = vadd.f32 0.0, %v501
  %v503 = vpop.f32.mrb[0].mxu0
  %504 = vmatprep.mubr.f32.mxu0 0.0
  %505 = vmatmul.mubr.f32.gmra.mrb[0].mxu0 %v335
  %v506 = vpop.f32.mrb[0].mxu0
  %v507 = vadd.f32 0.0, %v506
  %v508 = vpop.f32.mrb[0].mxu0
  %509 = vmatprep.mubr.f32.mxu0 0.0
  %510 = vmatmul.mubr.f32.gmra.mrb[0].mxu0 %v338
  %v511 = vpop.f32.mrb[0].mxu0
  %v512 = vadd.f32 0.0, %v511
  %v513 = vpop.f32.mrb[0].mxu0
  %514 = vmatprep.mubr.f32.mxu0 0.0
  %515 = vmatmul.mubr.f32.gmra.mrb[0].mxu0 %v341
  %v516 = vpop.f32.mrb[0].mxu0
  %v517 = vadd.f32 0.0, %v516
  %v518 = vpop.f32.mrb[0].mxu0
  %519 = vmatprep.mubr.f32.mxu0 0.0
  %520 = vmatmul.mubr.f32.gmra.mrb[0].mxu0 %v344
  %v521 = vpop.f32.mrb[0].mxu0
  %v522 = vadd.f32 0.0, %v521
  %v523 = vpop.f32.mrb[0].mxu0
  %524 = vmatprep.mubr.f32.mxu0 0.0
  %525 = vmatmul.mubr.f32.gmra.mrb[0].mxu0 %v347
  %v526 = vpop.f32.mrb[0].mxu0
  %v527 = vadd.f32 0.0, %v526
  %v528 = vpop.f32.mrb[0].mxu0
  %529 = vmatprep.mubr.f32.mxu0 0.0
  %530 = vmatmul.mubr.f32.gmra.mrb[0].mxu0 %v350
  %v531 = vpop.f32.mrb[0].mxu0
  %v532 = vadd.f32 0.0, %v531
  %v533 = vpop.f32.mrb[0].mxu0
  %534 = vmatprep.mubr.f32.mxu0 0.0
  %535 = vmatmul.mubr.f32.gmra.mrb[0].mxu0 %v353
  %v536 = vpop.f32.mrb[0].mxu0
  %v537 = vadd.f32 0.0, %v536
  %v538 = vpop.f32.mrb[0].mxu0
  %539 = vmatprep.mubr.f32.mxu0 0.0
  %540 = vmatmul.mubr.f32.gmra.mrb[0].mxu0 %v356
  %v541 = vpop.f32.mrb[0].mxu0
  %v542 = vadd.f32 0.0, %v541
  %v543 = vpop.f32.mrb[0].mxu0
  %544 = vmatprep.mubr.f32.mxu0 0.0
  %545 = vmatmul.mubr.f32.gmra.mrb[0].mxu0 %v359
  %v546 = vpop.f32.mrb[0].mxu0
  %v547 = vadd.f32 0.0, %v546
  %v548 = vpop.f32.mrb[0].mxu0
  %549 = vmatprep.mubr.f32.mxu0 0.0
  %550 = vmatmul.mubr.f32.gmra.mrb[0].mxu0 %v362
  %v551 = vpop.f32.mrb[0].mxu0
  %v552 = vadd.f32 0.0, %v551
  %v553 = vpop.f32.mrb[0].mxu0
  %554 = vmatprep.mubr.f32.mxu0 0.0
  %555 = vmatmul.mubr.f32.gmra.mrb[0].mxu0 %v365
  %v556 = vpop.f32.mrb[0].mxu0
  %v557 = vadd.f32 0.0, %v556
  %v558 = vpop.f32.mrb[0].mxu0
  %559 = vmatprep.mubr.f32.mxu0 0.0
  %560 = vmatmul.mubr.f32.gmra.mrb[0].mxu0 %v368
  %v561 = vpop.f32.mrb[0].mxu0
  %v562 = vadd.f32 0.0, %v561
  %v563 = vpop.f32.mrb[0].mxu0
  %564 = vmatprep.mubr.f32.mxu0 0.0
  %565 = vmatmul.mubr.f32.gmra.mrb[0].mxu0 %v371
  %v566 = vpop.f32.mrb[0].mxu0
  %v567 = vadd.f32 0.0, %v566
  %v568 = vpop.f32.mrb[0].mxu0
  %569 = vmatprep.mubr.f32.mxu0 0.0
  %570 = vmatmul.mubr.f32.gmra.mrb[0].mxu0 %v374
  %v571 = vpop.f32.mrb[0].mxu0
  %v572 = vadd.f32 0.0, %v571
  %v573 = vpop.f32.mrb[0].mxu0
  %574 = vmatprep.mubr.f32.mxu0 0.0
  %575 = vmatmul.mubr.f32.gmra.mrb[0].mxu0 %v377
  %v576 = vpop.f32.mrb[0].mxu0
  %v577 = vadd.f32 0.0, %v576
  %v578 = vpop.f32.mrb[0].mxu0
  %579 = vmatprep.mubr.f32.mxu0 0.0
  %580 = vmatmul.mubr.f32.gmra.mrb[0].mxu0 %v380
  %v581 = vpop.f32.mrb[0].mxu0
  %v582 = vadd.f32 0.0, %v581
  %v583 = vpop.f32.mrb[0].mxu0
  %584 = vmatprep.mubr.f32.mxu0 0.0
  %585 = vmatmul.mubr.f32.gmra.mrb[0].mxu0 %v383
  %v586 = vpop.f32.mrb[0].mxu0
  %v587 = vadd.f32 0.0, %v586
  %v588 = vpop.f32.mrb[0].mxu0
  %589 = vmatprep.mubr.f32.mxu0 0.0
  %590 = vmatmul.mubr.f32.gmra.mrb[0].mxu0 %v386
  %v591 = vpop.f32.mrb[0].mxu0
  %v592 = vadd.f32 0.0, %v591
  %v593 = vpop.f32.mrb[0].mxu0
  %594 = vmatprep.mubr.f32.mxu0 0.0
  %595 = vmatmul.mubr.f32.gmra.mrb[0].mxu0 %v389
  %v596 = vpop.f32.mrb[0].mxu0
  %v597 = vadd.f32 0.0, %v596
  %v598 = vpop.f32.mrb[0].mxu0
  %599 = vmatprep.mubr.f32.mxu0 0.0
  %600 = vmatmul.mubr.f32.gmra.mrb[0].mxu0 %v392
  %v601 = vpop.f32.mrb[0].mxu0
  %v602 = vadd.f32 0.0, %v601
  %v603 = vpop.f32.mrb[0].mxu0
  %604 = vmatprep.mubr.f32.mxu0 0.0
  %605 = vmatmul.mubr.f32.gmra.mrb[0].mxu0 %v395
  %v606 = vpop.f32.mrb[0].mxu0
  %v607 = vadd.f32 0.0, %v606
  %v608 = vpop.f32.mrb[0].mxu0
  %609 = vmatprep.mubr.f32.mxu0 0.0
  %610 = vmatmul.mubr.f32.gmra.mrb[0].mxu0 %v398
  %v611 = vpop.f32.mrb[0].mxu0
  %v612 = vadd.f32 0.0, %v611
  %v613 = vpop.f32.mrb[0].mxu0
  %614 = vmatprep.mubr.f32.mxu0 0.0
  %615 = vmatmul.mubr.f32.gmra.mrb[0].mxu0 %v401
  %v616 = vpop.f32.mrb[0].mxu0
  %v617 = vadd.f32 0.0, %v616
  %v618 = vpop.f32.mrb[0].mxu0
  %619 = vmatprep.mubr.f32.mxu0 0.0
  %620 = vmatmul.mubr.f32.gmra.mrb[0].mxu0 %v404
  %v621 = vpop.f32.mrb[0].mxu0
  %v622 = vadd.f32 0.0, %v621
  %v623 = vpop.f32.mrb[0].mxu0
  %624 = vmatprep.mubr.f32.mxu0 0.0
  %625 = vmatmul.mubr.f32.gmra.mrb[0].mxu0 %v407
  %v626 = vpop.f32.mrb[0].mxu0
  %v627 = vadd.f32 0.0, %v626
  %v628 = vpop.f32.mrb[0].mxu0
  %629 = vmatprep.mubr.f32.mxu0 0.0
  %630 = vmatmul.mubr.f32.gmra.mrb[0].mxu0 %v410
  %v631 = vpop.f32.mrb[0].mxu0
  %v632 = vadd.f32 0.0, %v631
  %v633 = vpop.f32.mrb[0].mxu0
  %634 = vmatprep.mubr.f32.mxu0 0.0
  %635 = vmatmul.mubr.f32.gmra.mrb[0].mxu0 %v413
  %v636 = vpop.f32.mrb[0].mxu0
  %v637 = vadd.f32 0.0, %v636
  %v638 = vpop.f32.mrb[0].mxu0
  %639 = vdwg.mxu0
  %v640 = vadd.f32 %v253, %v482
  %v641 = vadd.f32 %v254, %v487
  %v642 = vadd.f32 %v255, %v492
  %v643 = vadd.f32 %v256, %v497
  %v644 = vadd.f32 %v257, %v502
  %v645 = vadd.f32 %v258, %v507
  %v646 = vadd.f32 %v259, %v512
  %v647 = vadd.f32 %v260, %v517
  %v648 = vadd.f32 %v261, %v522
  %v649 = vadd.f32 %v262, %v527
  %v650 = vadd.f32 %v263, %v532
  %v651 = vadd.f32 %v264, %v537
  %v652 = vadd.f32 %v265, %v542
  %v653 = vadd.f32 %v266, %v547
  %v654 = vadd.f32 %v267, %v552
  %v655 = vadd.f32 %v268, %v557
  %v656 = vadd.f32 %v269, %v562
  %v657 = vadd.f32 %v270, %v567
  %v658 = vadd.f32 %v271, %v572
  %v659 = vadd.f32 %v272, %v577
  %v660 = vadd.f32 %v273, %v582
  %v661 = vadd.f32 %v274, %v587
  %v662 = vadd.f32 %v275, %v592
  %v663 = vadd.f32 %v276, %v597
  %v664 = vadd.f32 %v277, %v602
  %v665 = vadd.f32 %v278, %v607
  %v666 = vadd.f32 %v279, %v612
  %v667 = vadd.f32 %v280, %v617
  %v668 = vadd.f32 %v281, %v622
  %v669 = vadd.f32 %v282, %v627
  %v670 = vadd.f32 %v283, %v632
  %v671 = vadd.f32 %v284, %v637
  %v672 = vld [vmem:[%s9] sm:$0x1]
  %v674 = vlaneseq
  %v675 = vshrl.u32 %v674, 7
  %v676 = vsub.s32 0, %v675
  %v677 = vrot.slane %v672, %v676
  %v679 = vadd.f32 %v640, %v677
  %v680 = vadd.f32 %v641, %v677
  %v681 = vadd.f32 %v642, %v677
  %v682 = vadd.f32 %v643, %v677
  %v683 = vadd.f32 %v644, %v677
  %v684 = vadd.f32 %v645, %v677
  %v685 = vadd.f32 %v646, %v677
  %v686 = vadd.f32 %v647, %v677
  %v687 = vadd.f32 %v648, %v677
  %v688 = vadd.f32 %v649, %v677
  %v689 = vadd.f32 %v650, %v677
  %v690 = vadd.f32 %v651, %v677
  %v691 = vadd.f32 %v652, %v677
  %v692 = vadd.f32 %v653, %v677
  %v693 = vadd.f32 %v654, %v677
  %v694 = vadd.f32 %v655, %v677
  %v695 = vadd.f32 %v656, %v677
  %v696 = vadd.f32 %v657, %v677
  %v697 = vadd.f32 %v658, %v677
  %v698 = vadd.f32 %v659, %v677
  %v699 = vadd.f32 %v660, %v677
  %v700 = vadd.f32 %v661, %v677
  %v701 = vadd.f32 %v662, %v677
  %v702 = vadd.f32 %v663, %v677
  %v703 = vadd.f32 %v664, %v677
  %v704 = vadd.f32 %v665, %v677
  %v705 = vadd.f32 %v666, %v677
  %v706 = vadd.f32 %v667, %v677
  %v707 = vadd.f32 %v668, %v677
  %v708 = vadd.f32 %v669, %v677
  %v709 = vadd.f32 %v670, %v677
  %v710 = vadd.f32 %v671, %v677
  %v711 = vld [vmem:[%s3] sm:$0xff]
  %v712 = vld [vmem:[%s3 + $0x8] sm:$0xff]
  %vm713 = vcmp.gt.f32.partialorder %v711, 0.0
  %vm714 = vcmp.gt.f32.partialorder %v712, 0.0
  %v715 = vld [vmem:[%s10] sm:$0xff]
  %v716 = vld [vmem:[%s10 + $0x8] sm:$0xff]
  %v717 = vld [vmem:[%s10 + $0x10] sm:$0xff]
  %v718 = vld [vmem:[%s10 + $0x18] sm:$0xff]
  %v719 = vld [vmem:[%s10 + $0x20] sm:$0xff]
  %v720 = vld [vmem:[%s10 + $0x28] sm:$0xff]
  %v721 = vld [vmem:[%s10 + $0x30] sm:$0xff]
  %v722 = vld [vmem:[%s10 + $0x38] sm:$0xff]
  %v724 = vsel %vm171, %v245, 0
  %v727 = vsel %vm171, %v250, 0
  %729 = vmatprep.subr.mxu0 %v716
  %730 = vmatpush1.msra.mxu0 %v715
  %731 = vmatprep.subr.mxu0 %v718
  %732 = vmatpush1.msra.mxu0 %v717
  %733 = vmatprep.subr.mxu0 %v720
  %734 = vmatpush1.msra.mxu0 %v719
  %735 = vmatprep.subr.mxu0 %v722
  %736 = vmatpush1.msra.mxu0 %v721
  %737 = vmatprep.subr.mxu0 0.0
  %738 = vmatpush1.msra.mxu0 0.0
  %739 = vmatprep.subr.mxu0 0.0
  %740 = vmatpush1.msra.mxu0 0.0
  %741 = vmatprep.subr.mxu0 0.0
  %742 = vmatpush1.msra.mxu0 0.0
  %743 = vmatprep.subr.mxu0 0.0
  %744 = vmatpush1.msra.mxu0 0.0
  %745 = vmatprep.subr.mxu0 0.0
  %746 = vmatpush1.msra.mxu0 0.0
  %747 = vmatprep.subr.mxu0 0.0
  %748 = vmatpush1.msra.mxu0 0.0
  %749 = vmatprep.subr.mxu0 0.0
  %750 = vmatpush1.msra.mxu0 0.0
  %751 = vmatprep.subr.mxu0 0.0
  %752 = vmatpush1.msra.mxu0 0.0
  %753 = vmatprep.subr.mxu0 0.0
  %754 = vmatpush1.msra.mxu0 0.0
  %755 = vmatprep.subr.mxu0 0.0
  %756 = vmatpush1.msra.mxu0 0.0
  %757 = vmatprep.subr.mxu0 0.0
  %758 = vmatpush1.msra.mxu0 0.0
  %759 = vmatprep.subr.mxu0 0.0
  %760 = vmatpush1.msra.mxu0 0.0
  %761 = vmatprep.subr.mxu0 0.0
  %762 = vmatpush1.msra.mxu0 0.0
  %763 = vmatprep.subr.mxu0 0.0
  %764 = vmatpush1.msra.mxu0 0.0
  %765 = vmatprep.subr.mxu0 0.0
  %766 = vmatpush1.msra.mxu0 0.0
  %767 = vmatprep.subr.mxu0 0.0
  %768 = vmatpush1.msra.mxu0 0.0
  %769 = vmatprep.subr.mxu0 0.0
  %770 = vmatpush1.msra.mxu0 0.0
  %771 = vmatprep.subr.mxu0 0.0
  %772 = vmatpush1.msra.mxu0 0.0
  %773 = vmatprep.subr.mxu0 0.0
  %774 = vmatpush1.msra.mxu0 0.0
  %775 = vmatprep.subr.mxu0 0.0
  %776 = vmatpush1.msra.mxu0 0.0
  %777 = vmatprep.subr.mxu0 0.0
  %778 = vmatpush1.msra.mxu0 0.0
  %779 = vmatprep.subr.mxu0 0.0
  %780 = vmatpush1.msra.mxu0 0.0
  %781 = vmatprep.subr.mxu0 0.0
  %782 = vmatpush1.msra.mxu0 0.0
  %783 = vmatprep.subr.mxu0 0.0
  %784 = vmatpush1.msra.mxu0 0.0
  %785 = vmatprep.subr.mxu0 0.0
  %786 = vmatpush1.msra.mxu0 0.0
  %787 = vmatprep.subr.mxu0 0.0
  %788 = vmatpush1.msra.mxu0 0.0
  %789 = vmatprep.subr.mxu0 0.0
  %790 = vmatpush1.msra.mxu0 0.0
  %791 = vmatprep.subr.mxu0 0.0
  %792 = vmatpush1.msra.mxu0 0.0
  %793 = vmatprep.mubr.f32.mxu0 0.0
  %794 = vmatmul.mubr.f32.gmra.mrb[0].mxu0 %v724
  %v795 = vpop.f32.mrb[0].mxu0
  %v796 = vadd.f32 0.0, %v795
  %v797 = vpop.f32.mrb[0].mxu0
  %v798 = vadd.f32 0.0, %v797
  %799 = vmatprep.mubr.f32.mxu0 0.0
  %800 = vmatmul.mubr.f32.gmra.mrb[0].mxu0 %v727
  %v801 = vpop.f32.mrb[0].mxu0
  %v802 = vadd.f32 0.0, %v801
  %v803 = vpop.f32.mrb[0].mxu0
  %v804 = vadd.f32 0.0, %v803
  %805 = vdwg.mxu0
  %v806 = vld [vmem:[%s14] sm:$0xff]
  %v807 = vld [vmem:[%s14 + $0x8] sm:$0xff]
  %v808 = vld [vmem:[%s14 + $0x10] sm:$0xff]
  %v809 = vld [vmem:[%s14 + $0x18] sm:$0xff]
  %v810 = vld [vmem:[%s14 + $0x20] sm:$0xff]
  %v811 = vld [vmem:[%s14 + $0x28] sm:$0xff]
  %v812 = vld [vmem:[%s14 + $0x30] sm:$0xff]
  %v813 = vld [vmem:[%s14 + $0x38] sm:$0xff]
  %v814 = vld [vmem:[%s15] sm:$0x3]
  %v816 = vlaneseq
  %v817 = vshrl.u32 %v816, 7
  %v818 = vsub.s32 0, %v817
  %v819 = vrot.slane %v814, %v818
  %v820 = vlaneseq
  %v821 = vshrl.u32 %v820, 7
  %v822 = vsub.s32 1, %v821
  %v823 = vrot.slane %v814, %v822
  %826 = vmatprep.subr.mxu0 %v807
  %827 = vmatpush1.msra.mxu0 %v806
  %828 = vmatprep.subr.mxu0 %v809
  %829 = vmatpush1.msra.mxu0 %v808
  %830 = vmatprep.subr.mxu0 %v811
  %831 = vmatpush1.msra.mxu0 %v810
  %832 = vmatprep.subr.mxu0 %v813
  %833 = vmatpush1.msra.mxu0 %v812
  %834 = vmatprep.subr.mxu0 0.0
  %835 = vmatpush1.msra.mxu0 0.0
  %836 = vmatprep.subr.mxu0 0.0
  %837 = vmatpush1.msra.mxu0 0.0
  %838 = vmatprep.subr.mxu0 0.0
  %839 = vmatpush1.msra.mxu0 0.0
  %840 = vmatprep.subr.mxu0 0.0
  %841 = vmatpush1.msra.mxu0 0.0
  %842 = vmatprep.subr.mxu0 0.0
  %843 = vmatpush1.msra.mxu0 0.0
  %844 = vmatprep.subr.mxu0 0.0
  %845 = vmatpush1.msra.mxu0 0.0
  %846 = vmatprep.subr.mxu0 0.0
  %847 = vmatpush1.msra.mxu0 0.0
  %848 = vmatprep.subr.mxu0 0.0
  %849 = vmatpush1.msra.mxu0 0.0
  %850 = vmatprep.subr.mxu0 0.0
  %851 = vmatpush1.msra.mxu0 0.0
  %852 = vmatprep.subr.mxu0 0.0
  %853 = vmatpush1.msra.mxu0 0.0
  %854 = vmatprep.subr.mxu0 0.0
  %855 = vmatpush1.msra.mxu0 0.0
  %856 = vmatprep.subr.mxu0 0.0
  %857 = vmatpush1.msra.mxu0 0.0
  %858 = vmatprep.subr.mxu0 0.0
  %859 = vmatpush1.msra.mxu0 0.0
  %860 = vmatprep.subr.mxu0 0.0
  %861 = vmatpush1.msra.mxu0 0.0
  %862 = vmatprep.subr.mxu0 0.0
  %863 = vmatpush1.msra.mxu0 0.0
  %864 = vmatprep.subr.mxu0 0.0
  %865 = vmatpush1.msra.mxu0 0.0
  %866 = vmatprep.subr.mxu0 0.0
  %867 = vmatpush1.msra.mxu0 0.0
  %868 = vmatprep.subr.mxu0 0.0
  %869 = vmatpush1.msra.mxu0 0.0
  %870 = vmatprep.subr.mxu0 0.0
  %871 = vmatpush1.msra.mxu0 0.0
  %872 = vmatprep.subr.mxu0 0.0
  %873 = vmatpush1.msra.mxu0 0.0
  %874 = vmatprep.subr.mxu0 0.0
  %875 = vmatpush1.msra.mxu0 0.0
  %876 = vmatprep.subr.mxu0 0.0
  %877 = vmatpush1.msra.mxu0 0.0
  %878 = vmatprep.subr.mxu0 0.0
  %879 = vmatpush1.msra.mxu0 0.0
  %880 = vmatprep.subr.mxu0 0.0
  %881 = vmatpush1.msra.mxu0 0.0
  %882 = vmatprep.subr.mxu0 0.0
  %883 = vmatpush1.msra.mxu0 0.0
  %884 = vmatprep.subr.mxu0 0.0
  %885 = vmatpush1.msra.mxu0 0.0
  %886 = vmatprep.subr.mxu0 0.0
  %887 = vmatpush1.msra.mxu0 0.0
  %888 = vmatprep.subr.mxu0 0.0
  %889 = vmatpush1.msra.mxu0 0.0
  %890 = vmatprep.mubr.f32.mxu0 0.0
  %891 = vmatmul.mubr.f32.gmra.mrb[0].mxu0 %v724
  %v892 = vpop.f32.mrb[0].mxu0
  %v893 = vadd.f32 %v819, %v892
  %v894 = vpop.f32.mrb[0].mxu0
  %v895 = vadd.f32 %v823, %v894
  %896 = vmatprep.mubr.f32.mxu0 0.0
  %897 = vmatmul.mubr.f32.gmra.mrb[0].mxu0 %v727
  %v898 = vpop.f32.mrb[0].mxu0
  %v899 = vadd.f32 %v819, %v898
  %v900 = vpop.f32.mrb[0].mxu0
  %v901 = vadd.f32 %v823, %v900
  %902 = vdwg.mxu0
  %v903 = vld [vmem:[%s11] sm:$0xff]
  %v904 = vld [vmem:[%s11 + $0x8] sm:$0xff]
  %v905 = vld [vmem:[%s11 + $0x10] sm:$0xff]
  %v906 = vld [vmem:[%s11 + $0x18] sm:$0xff]
  %v908 = vsel %vm171, %v679, 0
  %v911 = vsel %vm171, %v680, 0
  %v914 = vsel %vm171, %v681, 0
  %v917 = vsel %vm171, %v682, 0
  %v920 = vsel %vm171, %v683, 0
  %v923 = vsel %vm171, %v684, 0
  %v926 = vsel %vm171, %v685, 0
  %v929 = vsel %vm171, %v686, 0
  %v932 = vsel %vm171, %v687, 0
  %v935 = vsel %vm171, %v688, 0
  %v938 = vsel %vm171, %v689, 0
  %v941 = vsel %vm171, %v690, 0
  %v944 = vsel %vm171, %v691, 0
  %v947 = vsel %vm171, %v692, 0
  %v950 = vsel %vm171, %v693, 0
  %v953 = vsel %vm171, %v694, 0
  %v956 = vsel %vm171, %v695, 0
  %v959 = vsel %vm171, %v696, 0
  %v962 = vsel %vm171, %v697, 0
  %v965 = vsel %vm171, %v698, 0
  %v968 = vsel %vm171, %v699, 0
  %v971 = vsel %vm171, %v700, 0
  %v974 = vsel %vm171, %v701, 0
  %v977 = vsel %vm171, %v702, 0
  %v980 = vsel %vm171, %v703, 0
  %v983 = vsel %vm171, %v704, 0
  %v986 = vsel %vm171, %v705, 0
  %v989 = vsel %vm171, %v706, 0
  %v992 = vsel %vm171, %v707, 0
  %v995 = vsel %vm171, %v708, 0
  %v998 = vsel %vm171, %v709, 0
  %v1001 = vsel %vm171, %v710, 0
  %1003 = vmatprep.subr.mxu0 0.0
  %1004 = vmatpush1.msra.mxu0 %v903
  %1005 = vmatprep.subr.mxu0 0.0
  %1006 = vmatpush1.msra.mxu0 %v904
  %1007 = vmatprep.subr.mxu0 0.0
  %1008 = vmatpush1.msra.mxu0 %v905
  %1009 = vmatprep.subr.mxu0 0.0
  %1010 = vmatpush1.msra.mxu0 %v906
  %1011 = vmatprep.subr.mxu0 0.0
  %1012 = vmatpush1.msra.mxu0 0.0
  %1013 = vmatprep.subr.mxu0 0.0
  %1014 = vmatpush1.msra.mxu0 0.0
  %1015 = vmatprep.subr.mxu0 0.0
  %1016 = vmatpush1.msra.mxu0 0.0
  %1017 = vmatprep.subr.mxu0 0.0
  %1018 = vmatpush1.msra.mxu0 0.0
  %1019 = vmatprep.subr.mxu0 0.0
  %1020 = vmatpush1.msra.mxu0 0.0
  %1021 = vmatprep.subr.mxu0 0.0
  %1022 = vmatpush1.msra.mxu0 0.0
  %1023 = vmatprep.subr.mxu0 0.0
  %1024 = vmatpush1.msra.mxu0 0.0
  %1025 = vmatprep.subr.mxu0 0.0
  %1026 = vmatpush1.msra.mxu0 0.0
  %1027 = vmatprep.subr.mxu0 0.0
  %1028 = vmatpush1.msra.mxu0 0.0
  %1029 = vmatprep.subr.mxu0 0.0
  %1030 = vmatpush1.msra.mxu0 0.0
  %1031 = vmatprep.subr.mxu0 0.0
  %1032 = vmatpush1.msra.mxu0 0.0
  %1033 = vmatprep.subr.mxu0 0.0
  %1034 = vmatpush1.msra.mxu0 0.0
  %1035 = vmatprep.subr.mxu0 0.0
  %1036 = vmatpush1.msra.mxu0 0.0
  %1037 = vmatprep.subr.mxu0 0.0
  %1038 = vmatpush1.msra.mxu0 0.0
  %1039 = vmatprep.subr.mxu0 0.0
  %1040 = vmatpush1.msra.mxu0 0.0
  %1041 = vmatprep.subr.mxu0 0.0
  %1042 = vmatpush1.msra.mxu0 0.0
  %1043 = vmatprep.subr.mxu0 0.0
  %1044 = vmatpush1.msra.mxu0 0.0
  %1045 = vmatprep.subr.mxu0 0.0
  %1046 = vmatpush1.msra.mxu0 0.0
  %1047 = vmatprep.subr.mxu0 0.0
  %1048 = vmatpush1.msra.mxu0 0.0
  %1049 = vmatprep.subr.mxu0 0.0
  %1050 = vmatpush1.msra.mxu0 0.0
  %1051 = vmatprep.subr.mxu0 0.0
  %1052 = vmatpush1.msra.mxu0 0.0
  %1053 = vmatprep.subr.mxu0 0.0
  %1054 = vmatpush1.msra.mxu0 0.0
  %1055 = vmatprep.subr.mxu0 0.0
  %1056 = vmatpush1.msra.mxu0 0.0
  %1057 = vmatprep.subr.mxu0 0.0
  %1058 = vmatpush1.msra.mxu0 0.0
  %1059 = vmatprep.subr.mxu0 0.0
  %1060 = vmatpush1.msra.mxu0 0.0
  %1061 = vmatprep.subr.mxu0 0.0
  %1062 = vmatpush1.msra.mxu0 0.0
  %1063 = vmatprep.subr.mxu0 0.0
  %1064 = vmatpush1.msra.mxu0 0.0
  %1065 = vmatprep.subr.mxu0 0.0
  %1066 = vmatpush1.msra.mxu0 0.0
  %1067 = vmatprep.mubr.f32.mxu0 0.0
  %1068 = vmatmul.mubr.f32.gmra.mrb[0].mxu0 %v908
  %v1069 = vpop.f32.mrb[0].mxu0
  %v1070 = vadd.f32 0.0, %v1069
  %v1071 = vpop.f32.mrb[0].mxu0
  %1072 = vmatprep.mubr.f32.mxu0 0.0
  %1073 = vmatmul.mubr.f32.gmra.mrb[0].mxu0 %v911
  %v1074 = vpop.f32.mrb[0].mxu0
  %v1075 = vadd.f32 0.0, %v1074
  %v1076 = vpop.f32.mrb[0].mxu0
  %1077 = vmatprep.mubr.f32.mxu0 0.0
  %1078 = vmatmul.mubr.f32.gmra.mrb[0].mxu0 %v914
  %v1079 = vpop.f32.mrb[0].mxu0
  %v1080 = vadd.f32 0.0, %v1079
  %v1081 = vpop.f32.mrb[0].mxu0
  %1082 = vmatprep.mubr.f32.mxu0 0.0
  %1083 = vmatmul.mubr.f32.gmra.mrb[0].mxu0 %v917
  %v1084 = vpop.f32.mrb[0].mxu0
  %v1085 = vadd.f32 0.0, %v1084
  %v1086 = vpop.f32.mrb[0].mxu0
  %1087 = vmatprep.mubr.f32.mxu0 0.0
  %1088 = vmatmul.mubr.f32.gmra.mrb[0].mxu0 %v920
  %v1089 = vpop.f32.mrb[0].mxu0
  %v1090 = vadd.f32 0.0, %v1089
  %v1091 = vpop.f32.mrb[0].mxu0
  %1092 = vmatprep.mubr.f32.mxu0 0.0
  %1093 = vmatmul.mubr.f32.gmra.mrb[0].mxu0 %v923
  %v1094 = vpop.f32.mrb[0].mxu0
  %v1095 = vadd.f32 0.0, %v1094
  %v1096 = vpop.f32.mrb[0].mxu0
  %1097 = vmatprep.mubr.f32.mxu0 0.0
  %1098 = vmatmul.mubr.f32.gmra.mrb[0].mxu0 %v926
  %v1099 = vpop.f32.mrb[0].mxu0
  %v1100 = vadd.f32 0.0, %v1099
  %v1101 = vpop.f32.mrb[0].mxu0
  %1102 = vmatprep.mubr.f32.mxu0 0.0
  %1103 = vmatmul.mubr.f32.gmra.mrb[0].mxu0 %v929
  %v1104 = vpop.f32.mrb[0].mxu0
  %v1105 = vadd.f32 0.0, %v1104
  %v1106 = vpop.f32.mrb[0].mxu0
  %1107 = vmatprep.mubr.f32.mxu0 0.0
  %1108 = vmatmul.mubr.f32.gmra.mrb[0].mxu0 %v932
  %v1109 = vpop.f32.mrb[0].mxu0
  %v1110 = vadd.f32 0.0, %v1109
  %v1111 = vpop.f32.mrb[0].mxu0
  %1112 = vmatprep.mubr.f32.mxu0 0.0
  %1113 = vmatmul.mubr.f32.gmra.mrb[0].mxu0 %v935
  %v1114 = vpop.f32.mrb[0].mxu0
  %v1115 = vadd.f32 0.0, %v1114
  %v1116 = vpop.f32.mrb[0].mxu0
  %1117 = vmatprep.mubr.f32.mxu0 0.0
  %1118 = vmatmul.mubr.f32.gmra.mrb[0].mxu0 %v938
  %v1119 = vpop.f32.mrb[0].mxu0
  %v1120 = vadd.f32 0.0, %v1119
  %v1121 = vpop.f32.mrb[0].mxu0
  %1122 = vmatprep.mubr.f32.mxu0 0.0
  %1123 = vmatmul.mubr.f32.gmra.mrb[0].mxu0 %v941
  %v1124 = vpop.f32.mrb[0].mxu0
  %v1125 = vadd.f32 0.0, %v1124
  %v1126 = vpop.f32.mrb[0].mxu0
  %1127 = vmatprep.mubr.f32.mxu0 0.0
  %1128 = vmatmul.mubr.f32.gmra.mrb[0].mxu0 %v944
  %v1129 = vpop.f32.mrb[0].mxu0
  %v1130 = vadd.f32 0.0, %v1129
  %v1131 = vpop.f32.mrb[0].mxu0
  %1132 = vmatprep.mubr.f32.mxu0 0.0
  %1133 = vmatmul.mubr.f32.gmra.mrb[0].mxu0 %v947
  %v1134 = vpop.f32.mrb[0].mxu0
  %v1135 = vadd.f32 0.0, %v1134
  %v1136 = vpop.f32.mrb[0].mxu0
  %1137 = vmatprep.mubr.f32.mxu0 0.0
  %1138 = vmatmul.mubr.f32.gmra.mrb[0].mxu0 %v950
  %v1139 = vpop.f32.mrb[0].mxu0
  %v1140 = vadd.f32 0.0, %v1139
  %v1141 = vpop.f32.mrb[0].mxu0
  %1142 = vmatprep.mubr.f32.mxu0 0.0
  %1143 = vmatmul.mubr.f32.gmra.mrb[0].mxu0 %v953
  %v1144 = vpop.f32.mrb[0].mxu0
  %v1145 = vadd.f32 0.0, %v1144
  %v1146 = vpop.f32.mrb[0].mxu0
  %1147 = vmatprep.mubr.f32.mxu0 0.0
  %1148 = vmatmul.mubr.f32.gmra.mrb[0].mxu0 %v956
  %v1149 = vpop.f32.mrb[0].mxu0
  %v1150 = vadd.f32 0.0, %v1149
  %v1151 = vpop.f32.mrb[0].mxu0
  %1152 = vmatprep.mubr.f32.mxu0 0.0
  %1153 = vmatmul.mubr.f32.gmra.mrb[0].mxu0 %v959
  %v1154 = vpop.f32.mrb[0].mxu0
  %v1155 = vadd.f32 0.0, %v1154
  %v1156 = vpop.f32.mrb[0].mxu0
  %1157 = vmatprep.mubr.f32.mxu0 0.0
  %1158 = vmatmul.mubr.f32.gmra.mrb[0].mxu0 %v962
  %v1159 = vpop.f32.mrb[0].mxu0
  %v1160 = vadd.f32 0.0, %v1159
  %v1161 = vpop.f32.mrb[0].mxu0
  %1162 = vmatprep.mubr.f32.mxu0 0.0
  %1163 = vmatmul.mubr.f32.gmra.mrb[0].mxu0 %v965
  %v1164 = vpop.f32.mrb[0].mxu0
  %v1165 = vadd.f32 0.0, %v1164
  %v1166 = vpop.f32.mrb[0].mxu0
  %1167 = vmatprep.mubr.f32.mxu0 0.0
  %1168 = vmatmul.mubr.f32.gmra.mrb[0].mxu0 %v968
  %v1169 = vpop.f32.mrb[0].mxu0
  %v1170 = vadd.f32 0.0, %v1169
  %v1171 = vpop.f32.mrb[0].mxu0
  %1172 = vmatprep.mubr.f32.mxu0 0.0
  %1173 = vmatmul.mubr.f32.gmra.mrb[0].mxu0 %v971
  %v1174 = vpop.f32.mrb[0].mxu0
  %v1175 = vadd.f32 0.0, %v1174
  %v1176 = vpop.f32.mrb[0].mxu0
  %1177 = vmatprep.mubr.f32.mxu0 0.0
  %1178 = vmatmul.mubr.f32.gmra.mrb[0].mxu0 %v974
  %v1179 = vpop.f32.mrb[0].mxu0
  %v1180 = vadd.f32 0.0, %v1179
  %v1181 = vpop.f32.mrb[0].mxu0
  %1182 = vmatprep.mubr.f32.mxu0 0.0
  %1183 = vmatmul.mubr.f32.gmra.mrb[0].mxu0 %v977
  %v1184 = vpop.f32.mrb[0].mxu0
  %v1185 = vadd.f32 0.0, %v1184
  %v1186 = vpop.f32.mrb[0].mxu0
  %1187 = vmatprep.mubr.f32.mxu0 0.0
  %1188 = vmatmul.mubr.f32.gmra.mrb[0].mxu0 %v980
  %v1189 = vpop.f32.mrb[0].mxu0
  %v1190 = vadd.f32 0.0, %v1189
  %v1191 = vpop.f32.mrb[0].mxu0
  %1192 = vmatprep.mubr.f32.mxu0 0.0
  %1193 = vmatmul.mubr.f32.gmra.mrb[0].mxu0 %v983
  %v1194 = vpop.f32.mrb[0].mxu0
  %v1195 = vadd.f32 0.0, %v1194
  %v1196 = vpop.f32.mrb[0].mxu0
  %1197 = vmatprep.mubr.f32.mxu0 0.0
  %1198 = vmatmul.mubr.f32.gmra.mrb[0].mxu0 %v986
  %v1199 = vpop.f32.mrb[0].mxu0
  %v1200 = vadd.f32 0.0, %v1199
  %v1201 = vpop.f32.mrb[0].mxu0
  %1202 = vmatprep.mubr.f32.mxu0 0.0
  %1203 = vmatmul.mubr.f32.gmra.mrb[0].mxu0 %v989
  %v1204 = vpop.f32.mrb[0].mxu0
  %v1205 = vadd.f32 0.0, %v1204
  %v1206 = vpop.f32.mrb[0].mxu0
  %1207 = vmatprep.mubr.f32.mxu0 0.0
  %1208 = vmatmul.mubr.f32.gmra.mrb[0].mxu0 %v992
  %v1209 = vpop.f32.mrb[0].mxu0
  %v1210 = vadd.f32 0.0, %v1209
  %v1211 = vpop.f32.mrb[0].mxu0
  %1212 = vmatprep.mubr.f32.mxu0 0.0
  %1213 = vmatmul.mubr.f32.gmra.mrb[0].mxu0 %v995
  %v1214 = vpop.f32.mrb[0].mxu0
  %v1215 = vadd.f32 0.0, %v1214
  %v1216 = vpop.f32.mrb[0].mxu0
  %1217 = vmatprep.mubr.f32.mxu0 0.0
  %1218 = vmatmul.mubr.f32.gmra.mrb[0].mxu0 %v998
  %v1219 = vpop.f32.mrb[0].mxu0
  %v1220 = vadd.f32 0.0, %v1219
  %v1221 = vpop.f32.mrb[0].mxu0
  %1222 = vmatprep.mubr.f32.mxu0 0.0
  %1223 = vmatmul.mubr.f32.gmra.mrb[0].mxu0 %v1001
  %v1224 = vpop.f32.mrb[0].mxu0
  %v1225 = vadd.f32 0.0, %v1224
  %v1226 = vpop.f32.mrb[0].mxu0
  %1227 = vdwg.mxu0
  %v1230 = vcombine.high %v798, %v798
  %v1232 = vunpack.c.l.s4 1966171168
  %v1233 = vunpack.c.0.s8 %v1232
  %v1234 = vlaneseq
  %v1235 = vshrl.u32 %v1234, 7
  %v1236 = vsub.s32 %v1233, %v1235
  %v1237 = vrot.slane %v798, %v1236
  %v1239 = vunpack.c.l.s4 1966171168
  %v1240 = vunpack.c.0.s8 %v1239
  %v1241 = vlaneseq
  %v1242 = vshrl.u32 %v1241, 7
  %v1243 = vsub.s32 %v1240, %v1242
  %v1244 = vrot.slane %v1230, %v1243
  %v1245 = vcombine.high %v1237, %v1237
  %v1246 = vcombine.high %v1244, %v1244
  %v1248 = vunpack.c.l.s4 1966171168
  %v1249 = vunpack.c.0.s8 %v1248
  %v1250 = vlaneseq
  %v1251 = vshrl.u32 %v1250, 7
  %v1252 = vsub.s32 %v1249, %v1251
  %v1253 = vrot.slane %v1237, %v1252
  %v1255 = vunpack.c.l.s4 1966171168
  %v1256 = vunpack.c.0.s8 %v1255
  %v1257 = vlaneseq
  %v1258 = vshrl.u32 %v1257, 7
  %v1259 = vsub.s32 %v1256, %v1258
  %v1260 = vrot.slane %v1244, %v1259
  %v1262 = vunpack.c.l.s4 1966171168
  %v1263 = vunpack.c.0.s8 %v1262
  %v1264 = vlaneseq
  %v1265 = vshrl.u32 %v1264, 7
  %v1266 = vsub.s32 %v1263, %v1265
  %v1267 = vrot.slane %v1245, %v1266
  %v1269 = vunpack.c.l.s4 1966171168
  %v1270 = vunpack.c.0.s8 %v1269
  %v1271 = vlaneseq
  %v1272 = vshrl.u32 %v1271, 7
  %v1273 = vsub.s32 %v1270, %v1272
  %v1274 = vrot.slane %v1246, %v1273
  %v1275 = vcombine.high %v1253, %v1253
  %v1276 = vcombine.high %v1260, %v1260
  %v1277 = vcombine.high %v1267, %v1267
  %v1278 = vcombine.high %v1274, %v1274
  %v1279 = vcombine.high %v804, %v804
  %v1281 = vunpack.c.l.s4 1966171168
  %v1282 = vunpack.c.0.s8 %v1281
  %v1283 = vlaneseq
  %v1284 = vshrl.u32 %v1283, 7
  %v1285 = vsub.s32 %v1282, %v1284
  %v1286 = vrot.slane %v804, %v1285
  %v1288 = vunpack.c.l.s4 1966171168
  %v1289 = vunpack.c.0.s8 %v1288
  %v1290 = vlaneseq
  %v1291 = vshrl.u32 %v1290, 7
  %v1292 = vsub.s32 %v1289, %v1291
  %v1293 = vrot.slane %v1279, %v1292
  %v1294 = vcombine.high %v1286, %v1286
  %v1295 = vcombine.high %v1293, %v1293
  %v1297 = vunpack.c.l.s4 1966171168
  %v1298 = vunpack.c.0.s8 %v1297
  %v1299 = vlaneseq
  %v1300 = vshrl.u32 %v1299, 7
  %v1301 = vsub.s32 %v1298, %v1300
  %v1302 = vrot.slane %v1286, %v1301
  %v1304 = vunpack.c.l.s4 1966171168
  %v1305 = vunpack.c.0.s8 %v1304
  %v1306 = vlaneseq
  %v1307 = vshrl.u32 %v1306, 7
  %v1308 = vsub.s32 %v1305, %v1307
  %v1309 = vrot.slane %v1293, %v1308
  %v1311 = vunpack.c.l.s4 1966171168
  %v1312 = vunpack.c.0.s8 %v1311
  %v1313 = vlaneseq
  %v1314 = vshrl.u32 %v1313, 7
  %v1315 = vsub.s32 %v1312, %v1314
  %v1316 = vrot.slane %v1294, %v1315
  %v1318 = vunpack.c.l.s4 1966171168
  %v1319 = vunpack.c.0.s8 %v1318
  %v1320 = vlaneseq
  %v1321 = vshrl.u32 %v1320, 7
  %v1322 = vsub.s32 %v1319, %v1321
  %v1323 = vrot.slane %v1295, %v1322
  %v1324 = vcombine.high %v1302, %v1302
  %v1325 = vcombine.high %v1309, %v1309
  %v1326 = vcombine.high %v1316, %v1316
  %v1327 = vcombine.high %v1323, %v1323
  %v1328 = vlaneseq
  %v1329 = vshrl.u32 %v1328, 7
  %v1330 = vsub.s32 0, %v1329
  %v1331 = vrot.slane %v1253, %v1330
  %v1332 = vlaneseq
  %v1333 = vshrl.u32 %v1332, 7
  %v1334 = vsub.s32 0, %v1333
  %v1335 = vrot.slane %v1267, %v1334
  %v1336 = vlaneseq
  %v1337 = vshrl.u32 %v1336, 7
  %v1338 = vsub.s32 0, %v1337
  %v1339 = vrot.slane %v1275, %v1338
  %v1340 = vlaneseq
  %v1341 = vshrl.u32 %v1340, 7
  %v1342 = vsub.s32 0, %v1341
  %v1343 = vrot.slane %v1277, %v1342
  %v1344 = vlaneseq
  %v1345 = vshrl.u32 %v1344, 7
  %v1346 = vsub.s32 0, %v1345
  %v1347 = vrot.slane %v1260, %v1346
  %v1348 = vlaneseq
  %v1349 = vshrl.u32 %v1348, 7
  %v1350 = vsub.s32 0, %v1349
  %v1351 = vrot.slane %v1274, %v1350
  %v1352 = vlaneseq
  %v1353 = vshrl.u32 %v1352, 7
  %v1354 = vsub.s32 0, %v1353
  %v1355 = vrot.slane %v1276, %v1354
  %v1356 = vlaneseq
  %v1357 = vshrl.u32 %v1356, 7
  %v1358 = vsub.s32 0, %v1357
  %v1359 = vrot.slane %v1278, %v1358
  %v1360 = vlaneseq
  %v1361 = vshrl.u32 %v1360, 7
  %v1362 = vsub.s32 0, %v1361
  %v1363 = vrot.slane %v1302, %v1362
  %v1364 = vlaneseq
  %v1365 = vshrl.u32 %v1364, 7
  %v1366 = vsub.s32 0, %v1365
  %v1367 = vrot.slane %v1316, %v1366
  %v1368 = vlaneseq
  %v1369 = vshrl.u32 %v1368, 7
  %v1370 = vsub.s32 0, %v1369
  %v1371 = vrot.slane %v1324, %v1370
  %v1372 = vlaneseq
  %v1373 = vshrl.u32 %v1372, 7
  %v1374 = vsub.s32 0, %v1373
  %v1375 = vrot.slane %v1326, %v1374
  %v1376 = vlaneseq
  %v1377 = vshrl.u32 %v1376, 7
  %v1378 = vsub.s32 0, %v1377
  %v1379 = vrot.slane %v1309, %v1378
  %v1380 = vlaneseq
  %v1381 = vshrl.u32 %v1380, 7
  %v1382 = vsub.s32 0, %v1381
  %v1383 = vrot.slane %v1323, %v1382
  %v1384 = vlaneseq
  %v1385 = vshrl.u32 %v1384, 7
  %v1386 = vsub.s32 0, %v1385
  %v1387 = vrot.slane %v1325, %v1386
  %v1388 = vlaneseq
  %v1389 = vshrl.u32 %v1388, 7
  %v1390 = vsub.s32 0, %v1389
  %v1391 = vrot.slane %v1327, %v1390
  %v1408 = vadd.f32 %v1331, %v796
  %v1409 = vadd.f32 %v1331, %v802
  %v1410 = vadd.f32 %v1335, %v796
  %v1411 = vadd.f32 %v1335, %v802
  %v1412 = vadd.f32 %v1339, %v796
  %v1413 = vadd.f32 %v1339, %v802
  %v1414 = vadd.f32 %v1343, %v796
  %v1415 = vadd.f32 %v1343, %v802
  %v1416 = vadd.f32 %v1347, %v796
  %v1417 = vadd.f32 %v1347, %v802
  %v1418 = vadd.f32 %v1351, %v796
  %v1419 = vadd.f32 %v1351, %v802
  %v1420 = vadd.f32 %v1355, %v796
  %v1421 = vadd.f32 %v1355, %v802
  %v1422 = vadd.f32 %v1359, %v796
  %v1423 = vadd.f32 %v1359, %v802
  %v1424 = vadd.f32 %v1363, %v796
  %v1425 = vadd.f32 %v1363, %v802
  %v1426 = vadd.f32 %v1367, %v796
  %v1427 = vadd.f32 %v1367, %v802
  %v1428 = vadd.f32 %v1371, %v796
  %v1429 = vadd.f32 %v1371, %v802
  %v1430 = vadd.f32 %v1375, %v796
  %v1431 = vadd.f32 %v1375, %v802
  %v1432 = vadd.f32 %v1379, %v796
  %v1433 = vadd.f32 %v1379, %v802
  %v1434 = vadd.f32 %v1383, %v796
  %v1435 = vadd.f32 %v1383, %v802
  %v1436 = vadd.f32 %v1387, %v796
  %v1437 = vadd.f32 %v1387, %v802
  %v1438 = vadd.f32 %v1391, %v796
  %v1439 = vadd.f32 %v1391, %v802
  %v1440 = vadd.f32 %v1408, %v1070
  %v1441 = vadd.f32 %v1409, %v1075
  %v1442 = vadd.f32 %v1410, %v1080
  %v1443 = vadd.f32 %v1411, %v1085
  %v1444 = vadd.f32 %v1412, %v1090
  %v1445 = vadd.f32 %v1413, %v1095
  %v1446 = vadd.f32 %v1414, %v1100
  %v1447 = vadd.f32 %v1415, %v1105
  %v1448 = vadd.f32 %v1416, %v1110
  %v1449 = vadd.f32 %v1417, %v1115
  %v1450 = vadd.f32 %v1418, %v1120
  %v1451 = vadd.f32 %v1419, %v1125
  %v1452 = vadd.f32 %v1420, %v1130
  %v1453 = vadd.f32 %v1421, %v1135
  %v1454 = vadd.f32 %v1422, %v1140
  %v1455 = vadd.f32 %v1423, %v1145
  %v1456 = vadd.f32 %v1424, %v1150
  %v1457 = vadd.f32 %v1425, %v1155
  %v1458 = vadd.f32 %v1426, %v1160
  %v1459 = vadd.f32 %v1427, %v1165
  %v1460 = vadd.f32 %v1428, %v1170
  %v1461 = vadd.f32 %v1429, %v1175
  %v1462 = vadd.f32 %v1430, %v1180
  %v1463 = vadd.f32 %v1431, %v1185
  %v1464 = vadd.f32 %v1432, %v1190
  %v1465 = vadd.f32 %v1433, %v1195
  %v1466 = vadd.f32 %v1434, %v1200
  %v1467 = vadd.f32 %v1435, %v1205
  %v1468 = vadd.f32 %v1436, %v1210
  %v1469 = vadd.f32 %v1437, %v1215
  %v1470 = vadd.f32 %v1438, %v1220
  %v1471 = vadd.f32 %v1439, %v1225
  %v1472 = vld [vmem:[%s12] sm:$0x1]
  %v1474 = vlaneseq
  %v1475 = vshrl.u32 %v1474, 7
  %v1476 = vsub.s32 0, %v1475
  %v1477 = vrot.slane %v1472, %v1476
  %v1479 = vadd.f32 %v1440, %v1477
  %v1480 = vadd.f32 %v1441, %v1477
  %v1481 = vadd.f32 %v1442, %v1477
  %v1482 = vadd.f32 %v1443, %v1477
  %v1483 = vadd.f32 %v1444, %v1477
  %v1484 = vadd.f32 %v1445, %v1477
  %v1485 = vadd.f32 %v1446, %v1477
  %v1486 = vadd.f32 %v1447, %v1477
  %v1487 = vadd.f32 %v1448, %v1477
  %v1488 = vadd.f32 %v1449, %v1477
  %v1489 = vadd.f32 %v1450, %v1477
  %v1490 = vadd.f32 %v1451, %v1477
  %v1491 = vadd.f32 %v1452, %v1477
  %v1492 = vadd.f32 %v1453, %v1477
  %v1493 = vadd.f32 %v1454, %v1477
  %v1494 = vadd.f32 %v1455, %v1477
  %v1495 = vadd.f32 %v1456, %v1477
  %v1496 = vadd.f32 %v1457, %v1477
  %v1497 = vadd.f32 %v1458, %v1477
  %v1498 = vadd.f32 %v1459, %v1477
  %v1499 = vadd.f32 %v1460, %v1477
  %v1500 = vadd.f32 %v1461, %v1477
  %v1501 = vadd.f32 %v1462, %v1477
  %v1502 = vadd.f32 %v1463, %v1477
  %v1503 = vadd.f32 %v1464, %v1477
  %v1504 = vadd.f32 %v1465, %v1477
  %v1505 = vadd.f32 %v1466, %v1477
  %v1506 = vadd.f32 %v1467, %v1477
  %v1507 = vadd.f32 %v1468, %v1477
  %v1508 = vadd.f32 %v1469, %v1477
  %v1509 = vadd.f32 %v1470, %v1477
  %v1510 = vadd.f32 %v1471, %v1477
  %vm1511 = vcmp.gt.f32.partialorder %v1479, 0.0
  %vm1512 = vcmp.gt.f32.partialorder %v1480, 0.0
  %vm1513 = vcmp.gt.f32.partialorder %v1481, 0.0
  %vm1514 = vcmp.gt.f32.partialorder %v1482, 0.0
  %vm1515 = vcmp.gt.f32.partialorder %v1483, 0.0
  %vm1516 = vcmp.gt.f32.partialorder %v1484, 0.0
  %vm1517 = vcmp.gt.f32.partialorder %v1485, 0.0
  %vm1518 = vcmp.gt.f32.partialorder %v1486, 0.0
  %vm1519 = vcmp.gt.f32.partialorder %v1487, 0.0
  %vm1520 = vcmp.gt.f32.partialorder %v1488, 0.0
  %vm1521 = vcmp.gt.f32.partialorder %v1489, 0.0
  %vm1522 = vcmp.gt.f32.partialorder %v1490, 0.0
  %vm1523 = vcmp.gt.f32.partialorder %v1491, 0.0
  %vm1524 = vcmp.gt.f32.partialorder %v1492, 0.0
  %vm1525 = vcmp.gt.f32.partialorder %v1493, 0.0
  %vm1526 = vcmp.gt.f32.partialorder %v1494, 0.0
  %vm1527 = vcmp.gt.f32.partialorder %v1495, 0.0
  %vm1528 = vcmp.gt.f32.partialorder %v1496, 0.0
  %vm1529 = vcmp.gt.f32.partialorder %v1497, 0.0
  %vm1530 = vcmp.gt.f32.partialorder %v1498, 0.0
  %vm1531 = vcmp.gt.f32.partialorder %v1499, 0.0
  %vm1532 = vcmp.gt.f32.partialorder %v1500, 0.0
  %vm1533 = vcmp.gt.f32.partialorder %v1501, 0.0
  %vm1534 = vcmp.gt.f32.partialorder %v1502, 0.0
  %vm1535 = vcmp.gt.f32.partialorder %v1503, 0.0
  %vm1536 = vcmp.gt.f32.partialorder %v1504, 0.0
  %vm1537 = vcmp.gt.f32.partialorder %v1505, 0.0
  %vm1538 = vcmp.gt.f32.partialorder %v1506, 0.0
  %vm1539 = vcmp.gt.f32.partialorder %v1507, 0.0
  %vm1540 = vcmp.gt.f32.partialorder %v1508, 0.0
  %vm1541 = vcmp.gt.f32.partialorder %v1509, 0.0
  %vm1542 = vcmp.gt.f32.partialorder %v1510, 0.0
  %v1543 = vmul.f32 %v1479, 0.01
  %v1544 = vmul.f32 %v1480, 0.01
  %v1545 = vmul.f32 %v1481, 0.01
  %v1546 = vmul.f32 %v1482, 0.01
  %v1547 = vmul.f32 %v1483, 0.01
  %v1548 = vmul.f32 %v1484, 0.01
  %v1549 = vmul.f32 %v1485, 0.01
  %v1550 = vmul.f32 %v1486, 0.01
  %v1551 = vmul.f32 %v1487, 0.01
  %v1552 = vmul.f32 %v1488, 0.01
  %v1553 = vmul.f32 %v1489, 0.01
  %v1554 = vmul.f32 %v1490, 0.01
  %v1555 = vmul.f32 %v1491, 0.01
  %v1556 = vmul.f32 %v1492, 0.01
  %v1557 = vmul.f32 %v1493, 0.01
  %v1558 = vmul.f32 %v1494, 0.01
  %v1559 = vmul.f32 %v1495, 0.01
  %v1560 = vmul.f32 %v1496, 0.01
  %v1561 = vmul.f32 %v1497, 0.01
  %v1562 = vmul.f32 %v1498, 0.01
  %v1563 = vmul.f32 %v1499, 0.01
  %v1564 = vmul.f32 %v1500, 0.01
  %v1565 = vmul.f32 %v1501, 0.01
  %v1566 = vmul.f32 %v1502, 0.01
  %v1567 = vmul.f32 %v1503, 0.01
  %v1568 = vmul.f32 %v1504, 0.01
  %v1569 = vmul.f32 %v1505, 0.01
  %v1570 = vmul.f32 %v1506, 0.01
  %v1571 = vmul.f32 %v1507, 0.01
  %v1572 = vmul.f32 %v1508, 0.01
  %v1573 = vmul.f32 %v1509, 0.01
  %v1574 = vmul.f32 %v1510, 0.01
  %v1575 = vsel %vm1511, %v1479, %v1543
  %v1576 = vsel %vm1512, %v1480, %v1544
  %v1577 = vsel %vm1513, %v1481, %v1545
  %v1578 = vsel %vm1514, %v1482, %v1546
  %v1579 = vsel %vm1515, %v1483, %v1547
  %v1580 = vsel %vm1516, %v1484, %v1548
  %v1581 = vsel %vm1517, %v1485, %v1549
  %v1582 = vsel %vm1518, %v1486, %v1550
  %v1583 = vsel %vm1519, %v1487, %v1551
  %v1584 = vsel %vm1520, %v1488, %v1552
  %v1585 = vsel %vm1521, %v1489, %v1553
  %v1586 = vsel %vm1522, %v1490, %v1554
  %v1587 = vsel %vm1523, %v1491, %v1555
  %v1588 = vsel %vm1524, %v1492, %v1556
  %v1589 = vsel %vm1525, %v1493, %v1557
  %v1590 = vsel %vm1526, %v1494, %v1558
  %v1591 = vsel %vm1527, %v1495, %v1559
  %v1592 = vsel %vm1528, %v1496, %v1560
  %v1593 = vsel %vm1529, %v1497, %v1561
  %v1594 = vsel %vm1530, %v1498, %v1562
  %v1595 = vsel %vm1531, %v1499, %v1563
  %v1596 = vsel %vm1532, %v1500, %v1564
  %v1597 = vsel %vm1533, %v1501, %v1565
  %v1598 = vsel %vm1534, %v1502, %v1566
  %v1599 = vsel %vm1535, %v1503, %v1567
  %v1600 = vsel %vm1536, %v1504, %v1568
  %v1601 = vsel %vm1537, %v1505, %v1569
  %v1602 = vsel %vm1538, %v1506, %v1570
  %v1603 = vsel %vm1539, %v1507, %v1571
  %v1604 = vsel %vm1540, %v1508, %v1572
  %v1605 = vsel %vm1541, %v1509, %v1573
  %v1606 = vsel %vm1542, %v1510, %v1574
  %v1607 = vld [vmem:[%s13] sm:$0xff]
  %v1608 = vld [vmem:[%s13 + $0x8] sm:$0xff]
  %v1609 = vld [vmem:[%s13 + $0x10] sm:$0xff]
  %v1610 = vld [vmem:[%s13 + $0x18] sm:$0xff]
  %v1611 = vld [vmem:[%s13 + $0x20] sm:$0xff]
  %v1612 = vld [vmem:[%s13 + $0x28] sm:$0xff]
  %v1613 = vld [vmem:[%s13 + $0x30] sm:$0xff]
  %v1614 = vld [vmem:[%s13 + $0x38] sm:$0xff]
  %vm1615 = vcmask 523264
  %v1617 = vsel %vm1615, %v1575, 0
  %v1620 = vsel %vm1615, %v1576, 0
  %v1623 = vsel %vm1615, %v1577, 0
  %v1626 = vsel %vm1615, %v1578, 0
  %v1629 = vsel %vm1615, %v1579, 0
  %v1632 = vsel %vm1615, %v1580, 0
  %v1635 = vsel %vm1615, %v1581, 0
  %v1638 = vsel %vm1615, %v1582, 0
  %v1641 = vsel %vm1615, %v1583, 0
  %v1644 = vsel %vm1615, %v1584, 0
  %v1647 = vsel %vm1615, %v1585, 0
  %v1650 = vsel %vm1615, %v1586, 0
  %v1653 = vsel %vm1615, %v1587, 0
  %v1656 = vsel %vm1615, %v1588, 0
  %v1659 = vsel %vm1615, %v1589, 0
  %v1662 = vsel %vm1615, %v1590, 0
  %v1665 = vsel %vm1615, %v1591, 0
  %v1668 = vsel %vm1615, %v1592, 0
  %v1671 = vsel %vm1615, %v1593, 0
  %v1674 = vsel %vm1615, %v1594, 0
  %v1677 = vsel %vm1615, %v1595, 0
  %v1680 = vsel %vm1615, %v1596, 0
  %v1683 = vsel %vm1615, %v1597, 0
  %v1686 = vsel %vm1615, %v1598, 0
  %v1689 = vsel %vm1615, %v1599, 0
  %v1692 = vsel %vm1615, %v1600, 0
  %v1695 = vsel %vm1615, %v1601, 0
  %v1698 = vsel %vm1615, %v1602, 0
  %v1701 = vsel %vm1615, %v1603, 0
  %v1704 = vsel %vm1615, %v1604, 0
  %v1707 = vsel %vm1615, %v1605, 0
  %v1710 = vsel %vm1615, %v1606, 0
  %1712 = vmatprep.subr.mxu0 0.0
  %1713 = vmatpush1.msra.mxu0 %v1607
  %1714 = vmatprep.subr.mxu0 0.0
  %1715 = vmatpush1.msra.mxu0 %v1608
  %1716 = vmatprep.subr.mxu0 0.0
  %1717 = vmatpush1.msra.mxu0 %v1609
  %1718 = vmatprep.subr.mxu0 0.0
  %1719 = vmatpush1.msra.mxu0 %v1610
  %1720 = vmatprep.subr.mxu0 0.0
  %1721 = vmatpush1.msra.mxu0 %v1611
  %1722 = vmatprep.subr.mxu0 0.0
  %1723 = vmatpush1.msra.mxu0 %v1612
  %1724 = vmatprep.subr.mxu0 0.0
  %1725 = vmatpush1.msra.mxu0 %v1613
  %1726 = vmatprep.subr.mxu0 0.0
  %1727 = vmatpush1.msra.mxu0 %v1614
  %1728 = vmatprep.subr.mxu0 0.0
  %1729 = vmatpush1.msra.mxu0 0.0
  %1730 = vmatprep.subr.mxu0 0.0
  %1731 = vmatpush1.msra.mxu0 0.0
  %1732 = vmatprep.subr.mxu0 0.0
  %1733 = vmatpush1.msra.mxu0 0.0
  %1734 = vmatprep.subr.mxu0 0.0
  %1735 = vmatpush1.msra.mxu0 0.0
  %1736 = vmatprep.subr.mxu0 0.0
  %1737 = vmatpush1.msra.mxu0 0.0
  %1738 = vmatprep.subr.mxu0 0.0
  %1739 = vmatpush1.msra.mxu0 0.0
  %1740 = vmatprep.subr.mxu0 0.0
  %1741 = vmatpush1.msra.mxu0 0.0
  %1742 = vmatprep.subr.mxu0 0.0
  %1743 = vmatpush1.msra.mxu0 0.0
  %1744 = vmatprep.subr.mxu0 0.0
  %1745 = vmatpush1.msra.mxu0 0.0
  %1746 = vmatprep.subr.mxu0 0.0
  %1747 = vmatpush1.msra.mxu0 0.0
  %1748 = vmatprep.subr.mxu0 0.0
  %1749 = vmatpush1.msra.mxu0 0.0
  %1750 = vmatprep.subr.mxu0 0.0
  %1751 = vmatpush1.msra.mxu0 0.0
  %1752 = vmatprep.subr.mxu0 0.0
  %1753 = vmatpush1.msra.mxu0 0.0
  %1754 = vmatprep.subr.mxu0 0.0
  %1755 = vmatpush1.msra.mxu0 0.0
  %1756 = vmatprep.subr.mxu0 0.0
  %1757 = vmatpush1.msra.mxu0 0.0
  %1758 = vmatprep.subr.mxu0 0.0
  %1759 = vmatpush1.msra.mxu0 0.0
  %1760 = vmatprep.subr.mxu0 0.0
  %1761 = vmatpush1.msra.mxu0 0.0
  %1762 = vmatprep.subr.mxu0 0.0
  %1763 = vmatpush1.msra.mxu0 0.0
  %1764 = vmatprep.subr.mxu0 0.0
  %1765 = vmatpush1.msra.mxu0 0.0
  %1766 = vmatprep.subr.mxu0 0.0
  %1767 = vmatpush1.msra.mxu0 0.0
  %1768 = vmatprep.subr.mxu0 0.0
  %1769 = vmatpush1.msra.mxu0 0.0
  %1770 = vmatprep.subr.mxu0 0.0
  %1771 = vmatpush1.msra.mxu0 0.0
  %1772 = vmatprep.subr.mxu0 0.0
  %1773 = vmatpush1.msra.mxu0 0.0
  %1774 = vmatprep.subr.mxu0 0.0
  %1775 = vmatpush1.msra.mxu0 0.0
  %1776 = vmatprep.mubr.f32.mxu0 0.0
  %1777 = vmatmul.mubr.f32.gmra.mrb[0].mxu0 %v1617
  %v1778 = vpop.f32.mrb[0].mxu0
  %v1779 = vadd.f32 0.0, %v1778
  %v1780 = vpop.f32.mrb[0].mxu0
  %1781 = vmatprep.mubr.f32.mxu0 0.0
  %1782 = vmatmul.mubr.f32.gmra.mrb[0].mxu0 %v1620
  %v1783 = vpop.f32.mrb[0].mxu0
  %v1784 = vadd.f32 0.0, %v1783
  %v1785 = vpop.f32.mrb[0].mxu0
  %1786 = vmatprep.mubr.f32.mxu0 0.0
  %1787 = vmatmul.mubr.f32.gmra.mrb[0].mxu0 %v1623
  %v1788 = vpop.f32.mrb[0].mxu0
  %v1789 = vadd.f32 0.0, %v1788
  %v1790 = vpop.f32.mrb[0].mxu0
  %1791 = vmatprep.mubr.f32.mxu0 0.0
  %1792 = vmatmul.mubr.f32.gmra.mrb[0].mxu0 %v1626
  %v1793 = vpop.f32.mrb[0].mxu0
  %v1794 = vadd.f32 0.0, %v1793
  %v1795 = vpop.f32.mrb[0].mxu0
  %1796 = vmatprep.mubr.f32.mxu0 0.0
  %1797 = vmatmul.mubr.f32.gmra.mrb[0].mxu0 %v1629
  %v1798 = vpop.f32.mrb[0].mxu0
  %v1799 = vadd.f32 0.0, %v1798
  %v1800 = vpop.f32.mrb[0].mxu0
  %1801 = vmatprep.mubr.f32.mxu0 0.0
  %1802 = vmatmul.mubr.f32.gmra.mrb[0].mxu0 %v1632
  %v1803 = vpop.f32.mrb[0].mxu0
  %v1804 = vadd.f32 0.0, %v1803
  %v1805 = vpop.f32.mrb[0].mxu0
  %1806 = vmatprep.mubr.f32.mxu0 0.0
  %1807 = vmatmul.mubr.f32.gmra.mrb[0].mxu0 %v1635
  %v1808 = vpop.f32.mrb[0].mxu0
  %v1809 = vadd.f32 0.0, %v1808
  %v1810 = vpop.f32.mrb[0].mxu0
  %1811 = vmatprep.mubr.f32.mxu0 0.0
  %1812 = vmatmul.mubr.f32.gmra.mrb[0].mxu0 %v1638
  %v1813 = vpop.f32.mrb[0].mxu0
  %v1814 = vadd.f32 0.0, %v1813
  %v1815 = vpop.f32.mrb[0].mxu0
  %1816 = vmatprep.mubr.f32.mxu0 0.0
  %1817 = vmatmul.mubr.f32.gmra.mrb[0].mxu0 %v1641
  %v1818 = vpop.f32.mrb[0].mxu0
  %v1819 = vadd.f32 0.0, %v1818
  %v1820 = vpop.f32.mrb[0].mxu0
  %1821 = vmatprep.mubr.f32.mxu0 0.0
  %1822 = vmatmul.mubr.f32.gmra.mrb[0].mxu0 %v1644
  %v1823 = vpop.f32.mrb[0].mxu0
  %v1824 = vadd.f32 0.0, %v1823
  %v1825 = vpop.f32.mrb[0].mxu0
  %1826 = vmatprep.mubr.f32.mxu0 0.0
  %1827 = vmatmul.mubr.f32.gmra.mrb[0].mxu0 %v1647
  %v1828 = vpop.f32.mrb[0].mxu0
  %v1829 = vadd.f32 0.0, %v1828
  %v1830 = vpop.f32.mrb[0].mxu0
  %1831 = vmatprep.mubr.f32.mxu0 0.0
  %1832 = vmatmul.mubr.f32.gmra.mrb[0].mxu0 %v1650
  %v1833 = vpop.f32.mrb[0].mxu0
  %v1834 = vadd.f32 0.0, %v1833
  %v1835 = vpop.f32.mrb[0].mxu0
  %1836 = vmatprep.mubr.f32.mxu0 0.0
  %1837 = vmatmul.mubr.f32.gmra.mrb[0].mxu0 %v1653
  %v1838 = vpop.f32.mrb[0].mxu0
  %v1839 = vadd.f32 0.0, %v1838
  %v1840 = vpop.f32.mrb[0].mxu0
  %1841 = vmatprep.mubr.f32.mxu0 0.0
  %1842 = vmatmul.mubr.f32.gmra.mrb[0].mxu0 %v1656
  %v1843 = vpop.f32.mrb[0].mxu0
  %v1844 = vadd.f32 0.0, %v1843
  %v1845 = vpop.f32.mrb[0].mxu0
  %1846 = vmatprep.mubr.f32.mxu0 0.0
  %1847 = vmatmul.mubr.f32.gmra.mrb[0].mxu0 %v1659
  %v1848 = vpop.f32.mrb[0].mxu0
  %v1849 = vadd.f32 0.0, %v1848
  %v1850 = vpop.f32.mrb[0].mxu0
  %1851 = vmatprep.mubr.f32.mxu0 0.0
  %1852 = vmatmul.mubr.f32.gmra.mrb[0].mxu0 %v1662
  %v1853 = vpop.f32.mrb[0].mxu0
  %v1854 = vadd.f32 0.0, %v1853
  %v1855 = vpop.f32.mrb[0].mxu0
  %1856 = vmatprep.mubr.f32.mxu0 0.0
  %1857 = vmatmul.mubr.f32.gmra.mrb[0].mxu0 %v1665
  %v1858 = vpop.f32.mrb[0].mxu0
  %v1859 = vadd.f32 0.0, %v1858
  %v1860 = vpop.f32.mrb[0].mxu0
  %1861 = vmatprep.mubr.f32.mxu0 0.0
  %1862 = vmatmul.mubr.f32.gmra.mrb[0].mxu0 %v1668
  %v1863 = vpop.f32.mrb[0].mxu0
  %v1864 = vadd.f32 0.0, %v1863
  %v1865 = vpop.f32.mrb[0].mxu0
  %1866 = vmatprep.mubr.f32.mxu0 0.0
  %1867 = vmatmul.mubr.f32.gmra.mrb[0].mxu0 %v1671
  %v1868 = vpop.f32.mrb[0].mxu0
  %v1869 = vadd.f32 0.0, %v1868
  %v1870 = vpop.f32.mrb[0].mxu0
  %1871 = vmatprep.mubr.f32.mxu0 0.0
  %1872 = vmatmul.mubr.f32.gmra.mrb[0].mxu0 %v1674
  %v1873 = vpop.f32.mrb[0].mxu0
  %v1874 = vadd.f32 0.0, %v1873
  %v1875 = vpop.f32.mrb[0].mxu0
  %1876 = vmatprep.mubr.f32.mxu0 0.0
  %1877 = vmatmul.mubr.f32.gmra.mrb[0].mxu0 %v1677
  %v1878 = vpop.f32.mrb[0].mxu0
  %v1879 = vadd.f32 0.0, %v1878
  %v1880 = vpop.f32.mrb[0].mxu0
  %1881 = vmatprep.mubr.f32.mxu0 0.0
  %1882 = vmatmul.mubr.f32.gmra.mrb[0].mxu0 %v1680
  %v1883 = vpop.f32.mrb[0].mxu0
  %v1884 = vadd.f32 0.0, %v1883
  %v1885 = vpop.f32.mrb[0].mxu0
  %1886 = vmatprep.mubr.f32.mxu0 0.0
  %1887 = vmatmul.mubr.f32.gmra.mrb[0].mxu0 %v1683
  %v1888 = vpop.f32.mrb[0].mxu0
  %v1889 = vadd.f32 0.0, %v1888
  %v1890 = vpop.f32.mrb[0].mxu0
  %1891 = vmatprep.mubr.f32.mxu0 0.0
  %1892 = vmatmul.mubr.f32.gmra.mrb[0].mxu0 %v1686
  %v1893 = vpop.f32.mrb[0].mxu0
  %v1894 = vadd.f32 0.0, %v1893
  %v1895 = vpop.f32.mrb[0].mxu0
  %1896 = vmatprep.mubr.f32.mxu0 0.0
  %1897 = vmatmul.mubr.f32.gmra.mrb[0].mxu0 %v1689
  %v1898 = vpop.f32.mrb[0].mxu0
  %v1899 = vadd.f32 0.0, %v1898
  %v1900 = vpop.f32.mrb[0].mxu0
  %1901 = vmatprep.mubr.f32.mxu0 0.0
  %1902 = vmatmul.mubr.f32.gmra.mrb[0].mxu0 %v1692
  %v1903 = vpop.f32.mrb[0].mxu0
  %v1904 = vadd.f32 0.0, %v1903
  %v1905 = vpop.f32.mrb[0].mxu0
  %1906 = vmatprep.mubr.f32.mxu0 0.0
  %1907 = vmatmul.mubr.f32.gmra.mrb[0].mxu0 %v1695
  %v1908 = vpop.f32.mrb[0].mxu0
  %v1909 = vadd.f32 0.0, %v1908
  %v1910 = vpop.f32.mrb[0].mxu0
  %1911 = vmatprep.mubr.f32.mxu0 0.0
  %1912 = vmatmul.mubr.f32.gmra.mrb[0].mxu0 %v1698
  %v1913 = vpop.f32.mrb[0].mxu0
  %v1914 = vadd.f32 0.0, %v1913
  %v1915 = vpop.f32.mrb[0].mxu0
  %1916 = vmatprep.mubr.f32.mxu0 0.0
  %1917 = vmatmul.mubr.f32.gmra.mrb[0].mxu0 %v1701
  %v1918 = vpop.f32.mrb[0].mxu0
  %v1919 = vadd.f32 0.0, %v1918
  %v1920 = vpop.f32.mrb[0].mxu0
  %1921 = vmatprep.mubr.f32.mxu0 0.0
  %1922 = vmatmul.mubr.f32.gmra.mrb[0].mxu0 %v1704
  %v1923 = vpop.f32.mrb[0].mxu0
  %v1924 = vadd.f32 0.0, %v1923
  %v1925 = vpop.f32.mrb[0].mxu0
  %1926 = vmatprep.mubr.f32.mxu0 0.0
  %1927 = vmatmul.mubr.f32.gmra.mrb[0].mxu0 %v1707
  %v1928 = vpop.f32.mrb[0].mxu0
  %v1929 = vadd.f32 0.0, %v1928
  %v1930 = vpop.f32.mrb[0].mxu0
  %1931 = vmatprep.mubr.f32.mxu0 0.0
  %1932 = vmatmul.mubr.f32.gmra.mrb[0].mxu0 %v1710
  %v1933 = vpop.f32.mrb[0].mxu0
  %v1934 = vadd.f32 0.0, %v1933
  %v1935 = vpop.f32.mrb[0].mxu0
  %1936 = vdwg.mxu0
  %1969 = vset.pattern.permute.xlu0 0
  %1970 = vperm.xlu0 %1969, %v1779
  %v1971 = vpop.permute.xlu0 %1970
  %1972 = vset.pattern.permute.xlu0 0
  %1973 = vperm.xlu0 %1972, %v1784
  %v1974 = vpop.permute.xlu0 %1973
  %1975 = vset.pattern.permute.xlu0 0
  %1976 = vperm.xlu0 %1975, %v1789
  %v1977 = vpop.permute.xlu0 %1976
  %1978 = vset.pattern.permute.xlu0 0
  %1979 = vperm.xlu0 %1978, %v1794
  %v1980 = vpop.permute.xlu0 %1979
  %1981 = vset.pattern.permute.xlu0 0
  %1982 = vperm.xlu0 %1981, %v1799
  %v1983 = vpop.permute.xlu0 %1982
  %1984 = vset.pattern.permute.xlu0 0
  %1985 = vperm.xlu0 %1984, %v1804
  %v1986 = vpop.permute.xlu0 %1985
  %1987 = vset.pattern.permute.xlu0 0
  %1988 = vperm.xlu0 %1987, %v1809
  %v1989 = vpop.permute.xlu0 %1988
  %1990 = vset.pattern.permute.xlu0 0
  %1991 = vperm.xlu0 %1990, %v1814
  %v1992 = vpop.permute.xlu0 %1991
  %1993 = vset.pattern.permute.xlu0 0
  %1994 = vperm.xlu0 %1993, %v1819
  %v1995 = vpop.permute.xlu0 %1994
  %1996 = vset.pattern.permute.xlu0 0
  %1997 = vperm.xlu0 %1996, %v1824
  %v1998 = vpop.permute.xlu0 %1997
  %1999 = vset.pattern.permute.xlu0 0
  %2000 = vperm.xlu0 %1999, %v1829
  %v2001 = vpop.permute.xlu0 %2000
  %2002 = vset.pattern.permute.xlu0 0
  %2003 = vperm.xlu0 %2002, %v1834
  %v2004 = vpop.permute.xlu0 %2003
  %2005 = vset.pattern.permute.xlu0 0
  %2006 = vperm.xlu0 %2005, %v1839
  %v2007 = vpop.permute.xlu0 %2006
  %2008 = vset.pattern.permute.xlu0 0
  %2009 = vperm.xlu0 %2008, %v1844
  %v2010 = vpop.permute.xlu0 %2009
  %2011 = vset.pattern.permute.xlu0 0
  %2012 = vperm.xlu0 %2011, %v1849
  %v2013 = vpop.permute.xlu0 %2012
  %2014 = vset.pattern.permute.xlu0 0
  %2015 = vperm.xlu0 %2014, %v1854
  %v2016 = vpop.permute.xlu0 %2015
  %2017 = vset.pattern.permute.xlu0 0
  %2018 = vperm.xlu0 %2017, %v1859
  %v2019 = vpop.permute.xlu0 %2018
  %2020 = vset.pattern.permute.xlu0 0
  %2021 = vperm.xlu0 %2020, %v1864
  %v2022 = vpop.permute.xlu0 %2021
  %2023 = vset.pattern.permute.xlu0 0
  %2024 = vperm.xlu0 %2023, %v1869
  %v2025 = vpop.permute.xlu0 %2024
  %2026 = vset.pattern.permute.xlu0 0
  %2027 = vperm.xlu0 %2026, %v1874
  %v2028 = vpop.permute.xlu0 %2027
  %2029 = vset.pattern.permute.xlu0 0
  %2030 = vperm.xlu0 %2029, %v1879
  %v2031 = vpop.permute.xlu0 %2030
  %2032 = vset.pattern.permute.xlu0 0
  %2033 = vperm.xlu0 %2032, %v1884
  %v2034 = vpop.permute.xlu0 %2033
  %2035 = vset.pattern.permute.xlu0 0
  %2036 = vperm.xlu0 %2035, %v1889
  %v2037 = vpop.permute.xlu0 %2036
  %2038 = vset.pattern.permute.xlu0 0
  %2039 = vperm.xlu0 %2038, %v1894
  %v2040 = vpop.permute.xlu0 %2039
  %2041 = vset.pattern.permute.xlu0 0
  %2042 = vperm.xlu0 %2041, %v1899
  %v2043 = vpop.permute.xlu0 %2042
  %2044 = vset.pattern.permute.xlu0 0
  %2045 = vperm.xlu0 %2044, %v1904
  %v2046 = vpop.permute.xlu0 %2045
  %2047 = vset.pattern.permute.xlu0 0
  %2048 = vperm.xlu0 %2047, %v1909
  %v2049 = vpop.permute.xlu0 %2048
  %2050 = vset.pattern.permute.xlu0 0
  %2051 = vperm.xlu0 %2050, %v1914
  %v2052 = vpop.permute.xlu0 %2051
  %2053 = vset.pattern.permute.xlu0 0
  %2054 = vperm.xlu0 %2053, %v1919
  %v2055 = vpop.permute.xlu0 %2054
  %2056 = vset.pattern.permute.xlu0 0
  %2057 = vperm.xlu0 %2056, %v1924
  %v2058 = vpop.permute.xlu0 %2057
  %2059 = vset.pattern.permute.xlu0 0
  %2060 = vperm.xlu0 %2059, %v1929
  %v2061 = vpop.permute.xlu0 %2060
  %2062 = vset.pattern.permute.xlu0 0
  %2063 = vperm.xlu0 %2062, %v1934
  %v2064 = vpop.permute.xlu0 %2063
  %v2065 = vlaneseq
  %v2066 = vand.u32 %v2065, 127
  %v2067 = vlaneseq
  %v2068 = vshrl.u32 %v2067, 7
  %v2069 = vsub.s32 %v2066, %v2068
  %v2070 = vrot.slane %v1971, %v2069
  %v2071 = vadd.s32 %v2066, 4294967288
  %v2072 = vlaneseq
  %v2073 = vshrl.u32 %v2072, 7
  %v2074 = vsub.s32 %v2071, %v2073
  %v2075 = vrot.slane %v1974, %v2074
  %vm2076 = vcmask 130112
  %v2077 = vsel %vm2076, %v2075, %v2070
  %v2078 = vlaneseq
  %v2079 = vshrl.u32 %v2078, 7
  %v2080 = vsub.s32 %v2066, %v2079
  %v2081 = vrot.slane %v1977, %v2080
  %v2082 = vlaneseq
  %v2083 = vshrl.u32 %v2082, 7
  %v2084 = vsub.s32 %v2071, %v2083
  %v2085 = vrot.slane %v1980, %v2084
  %v2086 = vsel %vm2076, %v2085, %v2081
  %v2087 = vlaneseq
  %v2088 = vshrl.u32 %v2087, 7
  %v2089 = vsub.s32 %v2066, %v2088
  %v2090 = vrot.slane %v1983, %v2089
  %v2091 = vlaneseq
  %v2092 = vshrl.u32 %v2091, 7
  %v2093 = vsub.s32 %v2071, %v2092
  %v2094 = vrot.slane %v1986, %v2093
  %v2095 = vsel %vm2076, %v2094, %v2090
  %v2096 = vlaneseq
  %v2097 = vshrl.u32 %v2096, 7
  %v2098 = vsub.s32 %v2066, %v2097
  %v2099 = vrot.slane %v1989, %v2098
  %v2100 = vlaneseq
  %v2101 = vshrl.u32 %v2100, 7
  %v2102 = vsub.s32 %v2071, %v2101
  %v2103 = vrot.slane %v1992, %v2102
  %v2104 = vsel %vm2076, %v2103, %v2099
  %v2105 = vlaneseq
  %v2106 = vshrl.u32 %v2105, 7
  %v2107 = vsub.s32 %v2066, %v2106
  %v2108 = vrot.slane %v1995, %v2107
  %v2109 = vlaneseq
  %v2110 = vshrl.u32 %v2109, 7
  %v2111 = vsub.s32 %v2071, %v2110
  %v2112 = vrot.slane %v1998, %v2111
  %v2113 = vsel %vm2076, %v2112, %v2108
  %v2114 = vlaneseq
  %v2115 = vshrl.u32 %v2114, 7
  %v2116 = vsub.s32 %v2066, %v2115
  %v2117 = vrot.slane %v2001, %v2116
  %v2118 = vlaneseq
  %v2119 = vshrl.u32 %v2118, 7
  %v2120 = vsub.s32 %v2071, %v2119
  %v2121 = vrot.slane %v2004, %v2120
  %v2122 = vsel %vm2076, %v2121, %v2117
  %v2123 = vlaneseq
  %v2124 = vshrl.u32 %v2123, 7
  %v2125 = vsub.s32 %v2066, %v2124
  %v2126 = vrot.slane %v2007, %v2125
  %v2127 = vlaneseq
  %v2128 = vshrl.u32 %v2127, 7
  %v2129 = vsub.s32 %v2071, %v2128
  %v2130 = vrot.slane %v2010, %v2129
  %v2131 = vsel %vm2076, %v2130, %v2126
  %v2132 = vlaneseq
  %v2133 = vshrl.u32 %v2132, 7
  %v2134 = vsub.s32 %v2066, %v2133
  %v2135 = vrot.slane %v2013, %v2134
  %v2136 = vlaneseq
  %v2137 = vshrl.u32 %v2136, 7
  %v2138 = vsub.s32 %v2071, %v2137
  %v2139 = vrot.slane %v2016, %v2138
  %v2140 = vsel %vm2076, %v2139, %v2135
  %v2141 = vlaneseq
  %v2142 = vshrl.u32 %v2141, 7
  %v2143 = vsub.s32 %v2066, %v2142
  %v2144 = vrot.slane %v2019, %v2143
  %v2145 = vlaneseq
  %v2146 = vshrl.u32 %v2145, 7
  %v2147 = vsub.s32 %v2071, %v2146
  %v2148 = vrot.slane %v2022, %v2147
  %v2149 = vsel %vm2076, %v2148, %v2144
  %v2150 = vlaneseq
  %v2151 = vshrl.u32 %v2150, 7
  %v2152 = vsub.s32 %v2066, %v2151
  %v2153 = vrot.slane %v2025, %v2152
  %v2154 = vlaneseq
  %v2155 = vshrl.u32 %v2154, 7
  %v2156 = vsub.s32 %v2071, %v2155
  %v2157 = vrot.slane %v2028, %v2156
  %v2158 = vsel %vm2076, %v2157, %v2153
  %v2159 = vlaneseq
  %v2160 = vshrl.u32 %v2159, 7
  %v2161 = vsub.s32 %v2066, %v2160
  %v2162 = vrot.slane %v2031, %v2161
  %v2163 = vlaneseq
  %v2164 = vshrl.u32 %v2163, 7
  %v2165 = vsub.s32 %v2071, %v2164
  %v2166 = vrot.slane %v2034, %v2165
  %v2167 = vsel %vm2076, %v2166, %v2162
  %v2168 = vlaneseq
  %v2169 = vshrl.u32 %v2168, 7
  %v2170 = vsub.s32 %v2066, %v2169
  %v2171 = vrot.slane %v2037, %v2170
  %v2172 = vlaneseq
  %v2173 = vshrl.u32 %v2172, 7
  %v2174 = vsub.s32 %v2071, %v2173
  %v2175 = vrot.slane %v2040, %v2174
  %v2176 = vsel %vm2076, %v2175, %v2171
  %v2177 = vlaneseq
  %v2178 = vshrl.u32 %v2177, 7
  %v2179 = vsub.s32 %v2066, %v2178
  %v2180 = vrot.slane %v2043, %v2179
  %v2181 = vlaneseq
  %v2182 = vshrl.u32 %v2181, 7
  %v2183 = vsub.s32 %v2071, %v2182
  %v2184 = vrot.slane %v2046, %v2183
  %v2185 = vsel %vm2076, %v2184, %v2180
  %v2186 = vlaneseq
  %v2187 = vshrl.u32 %v2186, 7
  %v2188 = vsub.s32 %v2066, %v2187
  %v2189 = vrot.slane %v2049, %v2188
  %v2190 = vlaneseq
  %v2191 = vshrl.u32 %v2190, 7
  %v2192 = vsub.s32 %v2071, %v2191
  %v2193 = vrot.slane %v2052, %v2192
  %v2194 = vsel %vm2076, %v2193, %v2189
  %v2195 = vlaneseq
  %v2196 = vshrl.u32 %v2195, 7
  %v2197 = vsub.s32 %v2066, %v2196
  %v2198 = vrot.slane %v2055, %v2197
  %v2199 = vlaneseq
  %v2200 = vshrl.u32 %v2199, 7
  %v2201 = vsub.s32 %v2071, %v2200
  %v2202 = vrot.slane %v2058, %v2201
  %v2203 = vsel %vm2076, %v2202, %v2198
  %v2204 = vlaneseq
  %v2205 = vshrl.u32 %v2204, 7
  %v2206 = vsub.s32 %v2066, %v2205
  %v2207 = vrot.slane %v2061, %v2206
  %v2208 = vlaneseq
  %v2209 = vshrl.u32 %v2208, 7
  %v2210 = vsub.s32 %v2071, %v2209
  %v2211 = vrot.slane %v2064, %v2210
  %v2212 = vsel %vm2076, %v2211, %v2207
  %vm2213 = vcmask 1041409
  %v2214 = vsel %vm2213, %v2086, %v2077
  %vm2215 = vcmask 1042434
  %v2216 = vsel %vm2215, %v2095, %v2214
  %vm2217 = vcmask 1043459
  %v2218 = vsel %vm2217, %v2104, %v2216
  %vm2219 = vcmask 1044484
  %v2220 = vsel %vm2219, %v2113, %v2218
  %vm2221 = vcmask 1045509
  %v2222 = vsel %vm2221, %v2122, %v2220
  %vm2223 = vcmask 1046534
  %v2224 = vsel %vm2223, %v2131, %v2222
  %vm2225 = vcmask 1047559
  %v2226 = vsel %vm2225, %v2140, %v2224
  %v2227 = vsel %vm2213, %v2158, %v2149
  %v2228 = vsel %vm2215, %v2167, %v2227
  %v2229 = vsel %vm2217, %v2176, %v2228
  %v2230 = vsel %vm2219, %v2185, %v2229
  %v2231 = vsel %vm2221, %v2194, %v2230
  %v2232 = vsel %vm2223, %v2203, %v2231
  %v2233 = vsel %vm2225, %v2212, %v2232
  %2236 = vset.pattern.permute.xlu0 1
  %2237 = vperm.xlu0 %2236, %v1779
  %v2238 = vpop.permute.xlu0 %2237
  %2239 = vset.pattern.permute.xlu0 1
  %2240 = vperm.xlu0 %2239, %v1784
  %v2241 = vpop.permute.xlu0 %2240
  %2242 = vset.pattern.permute.xlu0 1
  %2243 = vperm.xlu0 %2242, %v1789
  %v2244 = vpop.permute.xlu0 %2243
  %2245 = vset.pattern.permute.xlu0 1
  %2246 = vperm.xlu0 %2245, %v1794
  %v2247 = vpop.permute.xlu0 %2246
  %2248 = vset.pattern.permute.xlu0 1
  %2249 = vperm.xlu0 %2248, %v1799
  %v2250 = vpop.permute.xlu0 %2249
  %2251 = vset.pattern.permute.xlu0 1
  %2252 = vperm.xlu0 %2251, %v1804
  %v2253 = vpop.permute.xlu0 %2252
  %2254 = vset.pattern.permute.xlu0 1
  %2255 = vperm.xlu0 %2254, %v1809
  %v2256 = vpop.permute.xlu0 %2255
  %2257 = vset.pattern.permute.xlu0 1
  %2258 = vperm.xlu0 %2257, %v1814
  %v2259 = vpop.permute.xlu0 %2258
  %2260 = vset.pattern.permute.xlu0 1
  %2261 = vperm.xlu0 %2260, %v1819
  %v2262 = vpop.permute.xlu0 %2261
  %2263 = vset.pattern.permute.xlu0 1
  %2264 = vperm.xlu0 %2263, %v1824
  %v2265 = vpop.permute.xlu0 %2264
  %2266 = vset.pattern.permute.xlu0 1
  %2267 = vperm.xlu0 %2266, %v1829
  %v2268 = vpop.permute.xlu0 %2267
  %2269 = vset.pattern.permute.xlu0 1
  %2270 = vperm.xlu0 %2269, %v1834
  %v2271 = vpop.permute.xlu0 %2270
  %2272 = vset.pattern.permute.xlu0 1
  %2273 = vperm.xlu0 %2272, %v1839
  %v2274 = vpop.permute.xlu0 %2273
  %2275 = vset.pattern.permute.xlu0 1
  %2276 = vperm.xlu0 %2275, %v1844
  %v2277 = vpop.permute.xlu0 %2276
  %2278 = vset.pattern.permute.xlu0 1
  %2279 = vperm.xlu0 %2278, %v1849
  %v2280 = vpop.permute.xlu0 %2279
  %2281 = vset.pattern.permute.xlu0 1
  %2282 = vperm.xlu0 %2281, %v1854
  %v2283 = vpop.permute.xlu0 %2282
  %2284 = vset.pattern.permute.xlu0 1
  %2285 = vperm.xlu0 %2284, %v1859
  %v2286 = vpop.permute.xlu0 %2285
  %2287 = vset.pattern.permute.xlu0 1
  %2288 = vperm.xlu0 %2287, %v1864
  %v2289 = vpop.permute.xlu0 %2288
  %2290 = vset.pattern.permute.xlu0 1
  %2291 = vperm.xlu0 %2290, %v1869
  %v2292 = vpop.permute.xlu0 %2291
  %2293 = vset.pattern.permute.xlu0 1
  %2294 = vperm.xlu0 %2293, %v1874
  %v2295 = vpop.permute.xlu0 %2294
  %2296 = vset.pattern.permute.xlu0 1
  %2297 = vperm.xlu0 %2296, %v1879
  %v2298 = vpop.permute.xlu0 %2297
  %2299 = vset.pattern.permute.xlu0 1
  %2300 = vperm.xlu0 %2299, %v1884
  %v2301 = vpop.permute.xlu0 %2300
  %2302 = vset.pattern.permute.xlu0 1
  %2303 = vperm.xlu0 %2302, %v1889
  %v2304 = vpop.permute.xlu0 %2303
  %2305 = vset.pattern.permute.xlu0 1
  %2306 = vperm.xlu0 %2305, %v1894
  %v2307 = vpop.permute.xlu0 %2306
  %2308 = vset.pattern.permute.xlu0 1
  %2309 = vperm.xlu0 %2308, %v1899
  %v2310 = vpop.permute.xlu0 %2309
  %2311 = vset.pattern.permute.xlu0 1
  %2312 = vperm.xlu0 %2311, %v1904
  %v2313 = vpop.permute.xlu0 %2312
  %2314 = vset.pattern.permute.xlu0 1
  %2315 = vperm.xlu0 %2314, %v1909
  %v2316 = vpop.permute.xlu0 %2315
  %2317 = vset.pattern.permute.xlu0 1
  %2318 = vperm.xlu0 %2317, %v1914
  %v2319 = vpop.permute.xlu0 %2318
  %2320 = vset.pattern.permute.xlu0 1
  %2321 = vperm.xlu0 %2320, %v1919
  %v2322 = vpop.permute.xlu0 %2321
  %2323 = vset.pattern.permute.xlu0 1
  %2324 = vperm.xlu0 %2323, %v1924
  %v2325 = vpop.permute.xlu0 %2324
  %2326 = vset.pattern.permute.xlu0 1
  %2327 = vperm.xlu0 %2326, %v1929
  %v2328 = vpop.permute.xlu0 %2327
  %2329 = vset.pattern.permute.xlu0 1
  %2330 = vperm.xlu0 %2329, %v1934
  %v2331 = vpop.permute.xlu0 %2330
  %v2332 = vlaneseq
  %v2333 = vshrl.u32 %v2332, 7
  %v2334 = vsub.s32 %v2066, %v2333
  %v2335 = vrot.slane %v2238, %v2334
  %v2336 = vlaneseq
  %v2337 = vshrl.u32 %v2336, 7
  %v2338 = vsub.s32 %v2071, %v2337
  %v2339 = vrot.slane %v2241, %v2338
  %v2340 = vsel %vm2076, %v2339, %v2335
  %v2341 = vlaneseq
  %v2342 = vshrl.u32 %v2341, 7
  %v2343 = vsub.s32 %v2066, %v2342
  %v2344 = vrot.slane %v2244, %v2343
  %v2345 = vlaneseq
  %v2346 = vshrl.u32 %v2345, 7
  %v2347 = vsub.s32 %v2071, %v2346
  %v2348 = vrot.slane %v2247, %v2347
  %v2349 = vsel %vm2076, %v2348, %v2344
  %v2350 = vlaneseq
  %v2351 = vshrl.u32 %v2350, 7
  %v2352 = vsub.s32 %v2066, %v2351
  %v2353 = vrot.slane %v2250, %v2352
  %v2354 = vlaneseq
  %v2355 = vshrl.u32 %v2354, 7
  %v2356 = vsub.s32 %v2071, %v2355
  %v2357 = vrot.slane %v2253, %v2356
  %v2358 = vsel %vm2076, %v2357, %v2353
  %v2359 = vlaneseq
  %v2360 = vshrl.u32 %v2359, 7
  %v2361 = vsub.s32 %v2066, %v2360
  %v2362 = vrot.slane %v2256, %v2361
  %v2363 = vlaneseq
  %v2364 = vshrl.u32 %v2363, 7
  %v2365 = vsub.s32 %v2071, %v2364
  %v2366 = vrot.slane %v2259, %v2365
  %v2367 = vsel %vm2076, %v2366, %v2362
  %v2368 = vlaneseq
  %v2369 = vshrl.u32 %v2368, 7
  %v2370 = vsub.s32 %v2066, %v2369
  %v2371 = vrot.slane %v2262, %v2370
  %v2372 = vlaneseq
  %v2373 = vshrl.u32 %v2372, 7
  %v2374 = vsub.s32 %v2071, %v2373
  %v2375 = vrot.slane %v2265, %v2374
  %v2376 = vsel %vm2076, %v2375, %v2371
  %v2377 = vlaneseq
  %v2378 = vshrl.u32 %v2377, 7
  %v2379 = vsub.s32 %v2066, %v2378
  %v2380 = vrot.slane %v2268, %v2379
  %v2381 = vlaneseq
  %v2382 = vshrl.u32 %v2381, 7
  %v2383 = vsub.s32 %v2071, %v2382
  %v2384 = vrot.slane %v2271, %v2383
  %v2385 = vsel %vm2076, %v2384, %v2380
  %v2386 = vlaneseq
  %v2387 = vshrl.u32 %v2386, 7
  %v2388 = vsub.s32 %v2066, %v2387
  %v2389 = vrot.slane %v2274, %v2388
  %v2390 = vlaneseq
  %v2391 = vshrl.u32 %v2390, 7
  %v2392 = vsub.s32 %v2071, %v2391
  %v2393 = vrot.slane %v2277, %v2392
  %v2394 = vsel %vm2076, %v2393, %v2389
  %v2395 = vlaneseq
  %v2396 = vshrl.u32 %v2395, 7
  %v2397 = vsub.s32 %v2066, %v2396
  %v2398 = vrot.slane %v2280, %v2397
  %v2399 = vlaneseq
  %v2400 = vshrl.u32 %v2399, 7
  %v2401 = vsub.s32 %v2071, %v2400
  %v2402 = vrot.slane %v2283, %v2401
  %v2403 = vsel %vm2076, %v2402, %v2398
  %v2404 = vlaneseq
  %v2405 = vshrl.u32 %v2404, 7
  %v2406 = vsub.s32 %v2066, %v2405
  %v2407 = vrot.slane %v2286, %v2406
  %v2408 = vlaneseq
  %v2409 = vshrl.u32 %v2408, 7
  %v2410 = vsub.s32 %v2071, %v2409
  %v2411 = vrot.slane %v2289, %v2410
  %v2412 = vsel %vm2076, %v2411, %v2407
  %v2413 = vlaneseq
  %v2414 = vshrl.u32 %v2413, 7
  %v2415 = vsub.s32 %v2066, %v2414
  %v2416 = vrot.slane %v2292, %v2415
  %v2417 = vlaneseq
  %v2418 = vshrl.u32 %v2417, 7
  %v2419 = vsub.s32 %v2071, %v2418
  %v2420 = vrot.slane %v2295, %v2419
  %v2421 = vsel %vm2076, %v2420, %v2416
  %v2422 = vlaneseq
  %v2423 = vshrl.u32 %v2422, 7
  %v2424 = vsub.s32 %v2066, %v2423
  %v2425 = vrot.slane %v2298, %v2424
  %v2426 = vlaneseq
  %v2427 = vshrl.u32 %v2426, 7
  %v2428 = vsub.s32 %v2071, %v2427
  %v2429 = vrot.slane %v2301, %v2428
  %v2430 = vsel %vm2076, %v2429, %v2425
  %v2431 = vlaneseq
  %v2432 = vshrl.u32 %v2431, 7
  %v2433 = vsub.s32 %v2066, %v2432
  %v2434 = vrot.slane %v2304, %v2433
  %v2435 = vlaneseq
  %v2436 = vshrl.u32 %v2435, 7
  %v2437 = vsub.s32 %v2071, %v2436
  %v2438 = vrot.slane %v2307, %v2437
  %v2439 = vsel %vm2076, %v2438, %v2434
  %v2440 = vlaneseq
  %v2441 = vshrl.u32 %v2440, 7
  %v2442 = vsub.s32 %v2066, %v2441
  %v2443 = vrot.slane %v2310, %v2442
  %v2444 = vlaneseq
  %v2445 = vshrl.u32 %v2444, 7
  %v2446 = vsub.s32 %v2071, %v2445
  %v2447 = vrot.slane %v2313, %v2446
  %v2448 = vsel %vm2076, %v2447, %v2443
  %v2449 = vlaneseq
  %v2450 = vshrl.u32 %v2449, 7
  %v2451 = vsub.s32 %v2066, %v2450
  %v2452 = vrot.slane %v2316, %v2451
  %v2453 = vlaneseq
  %v2454 = vshrl.u32 %v2453, 7
  %v2455 = vsub.s32 %v2071, %v2454
  %v2456 = vrot.slane %v2319, %v2455
  %v2457 = vsel %vm2076, %v2456, %v2452
  %v2458 = vlaneseq
  %v2459 = vshrl.u32 %v2458, 7
  %v2460 = vsub.s32 %v2066, %v2459
  %v2461 = vrot.slane %v2322, %v2460
  %v2462 = vlaneseq
  %v2463 = vshrl.u32 %v2462, 7
  %v2464 = vsub.s32 %v2071, %v2463
  %v2465 = vrot.slane %v2325, %v2464
  %v2466 = vsel %vm2076, %v2465, %v2461
  %v2467 = vlaneseq
  %v2468 = vshrl.u32 %v2467, 7
  %v2469 = vsub.s32 %v2066, %v2468
  %v2470 = vrot.slane %v2328, %v2469
  %v2471 = vlaneseq
  %v2472 = vshrl.u32 %v2471, 7
  %v2473 = vsub.s32 %v2071, %v2472
  %v2474 = vrot.slane %v2331, %v2473
  %v2475 = vsel %vm2076, %v2474, %v2470
  %v2476 = vsel %vm2213, %v2349, %v2340
  %v2477 = vsel %vm2215, %v2358, %v2476
  %v2478 = vsel %vm2217, %v2367, %v2477
  %v2479 = vsel %vm2219, %v2376, %v2478
  %v2480 = vsel %vm2221, %v2385, %v2479
  %v2481 = vsel %vm2223, %v2394, %v2480
  %v2482 = vsel %vm2225, %v2403, %v2481
  %v2483 = vsel %vm2213, %v2421, %v2412
  %v2484 = vsel %vm2215, %v2430, %v2483
  %v2485 = vsel %vm2217, %v2439, %v2484
  %v2486 = vsel %vm2219, %v2448, %v2485
  %v2487 = vsel %vm2221, %v2457, %v2486
  %v2488 = vsel %vm2223, %v2466, %v2487
  %v2489 = vsel %vm2225, %v2475, %v2488
  %v2492 = vsel %vm713, %v2226, -1e+30
  %v2493 = vsel %vm714, %v2233, -1e+30
  %v2494 = vsel %vm713, %v2482, -1e+30
  %v2495 = vsel %vm714, %v2489, -1e+30
  %vm2496 = vcmask 130048
  %v2497 = vsel %vm2496, %v2492, -inf
  %2498 = vmax.xlane.f32.xlu0 %v2497
  %v2499 = vpop.xlane.xlu0 %2498
  %v2500 = vsel %vm2496, %v2493, -inf
  %2501 = vmax.xlane.f32.xlu0 %v2500
  %v2502 = vpop.xlane.xlu0 %2501
  %v2503 = vsel %vm2496, %v2494, -inf
  %2504 = vmax.xlane.f32.xlu0 %v2503
  %v2505 = vpop.xlane.xlu0 %2504
  %v2506 = vsel %vm2496, %v2495, -inf
  %2507 = vmax.xlane.f32.xlu0 %v2506
  %v2508 = vpop.xlane.xlu0 %2507
  %v2509 = vsub.f32 %v2492, %v2499
  %v2510 = vsub.f32 %v2493, %v2502
  %v2511 = vsub.f32 %v2494, %v2505
  %v2512 = vsub.f32 %v2495, %v2508
  %v2513 = vmul.f32 %v2509, 1.442695
  %v2514 = vpow.pop %v2513
  %v2515 = vmul.f32 %v2510, 1.442695
  %v2516 = vpow.pop %v2515
  %v2517 = vmul.f32 %v2511, 1.442695
  %v2518 = vpow.pop %v2517
  %v2519 = vmul.f32 %v2512, 1.442695
  %v2520 = vpow.pop %v2519
  %v2521 = vmul.f32 %v2514, %v711
  %v2522 = vmul.f32 %v2516, %v712
  %v2523 = vmul.f32 %v2518, %v711
  %v2524 = vmul.f32 %v2520, %v712
  %v2525 = vsel %vm2496, %v2521, 0.0
  %2526 = vadd.xlane.f32.xlu0 %v2525
  %v2527 = vpop.xlane.xlu0 %2526
  %v2528 = vsel %vm2496, %v2522, 0.0
  %2529 = vadd.xlane.f32.xlu0 %v2528
  %v2530 = vpop.xlane.xlu0 %2529
  %v2531 = vsel %vm2496, %v2523, 0.0
  %2532 = vadd.xlane.f32.xlu0 %v2531
  %v2533 = vpop.xlane.xlu0 %2532
  %v2534 = vsel %vm2496, %v2524, 0.0
  %2535 = vadd.xlane.f32.xlu0 %v2534
  %v2536 = vpop.xlane.xlu0 %2535
  %vm2537 = vcmp.gt.f32.partialorder %v2527, 0.0
  %vm2538 = vcmp.gt.f32.partialorder %v2530, 0.0
  %vm2539 = vcmp.gt.f32.partialorder %v2533, 0.0
  %vm2540 = vcmp.gt.f32.partialorder %v2536, 0.0
  %v2541 = vsel %vm2537, %v2527, 1.0
  %v2542 = vsel %vm2538, %v2530, 1.0
  %v2543 = vsel %vm2539, %v2533, 1.0
  %v2544 = vsel %vm2540, %v2536, 1.0
  %v2545 = vrcp.pop %v2541
  %v2546 = vrcp.pop %v2542
  %v2547 = vrcp.pop %v2543
  %v2548 = vrcp.pop %v2544
  %v2549 = vmul.f32 %v2521, %v2545
  %v2550 = vmul.f32 %v2522, %v2546
  %v2551 = vmul.f32 %v2523, %v2547
  %v2552 = vmul.f32 %v2524, %v2548
  %v2554 = vsel %vm2496, %v2551, 0
  %v2557 = vsel %vm2496, %v2552, 0
  %2559 = vmatprep.subr.mxu0 0.0
  %2560 = vmatpush1.msra.mxu0 %v895
  %2561 = vmatprep.subr.mxu0 0.0
  %2562 = vmatpush1.msra.mxu0 %v901
  %2563 = vmatprep.subr.mxu0 0.0
  %2564 = vmatpush1.msra.mxu0 0.0
  %2565 = vmatprep.subr.mxu0 0.0
  %2566 = vmatpush1.msra.mxu0 0.0
  %2567 = vmatprep.subr.mxu0 0.0
  %2568 = vmatpush1.msra.mxu0 0.0
  %2569 = vmatprep.subr.mxu0 0.0
  %2570 = vmatpush1.msra.mxu0 0.0
  %2571 = vmatprep.subr.mxu0 0.0
  %2572 = vmatpush1.msra.mxu0 0.0
  %2573 = vmatprep.subr.mxu0 0.0
  %2574 = vmatpush1.msra.mxu0 0.0
  %2575 = vmatprep.subr.mxu0 0.0
  %2576 = vmatpush1.msra.mxu0 0.0
  %2577 = vmatprep.subr.mxu0 0.0
  %2578 = vmatpush1.msra.mxu0 0.0
  %2579 = vmatprep.subr.mxu0 0.0
  %2580 = vmatpush1.msra.mxu0 0.0
  %2581 = vmatprep.subr.mxu0 0.0
  %2582 = vmatpush1.msra.mxu0 0.0
  %2583 = vmatprep.subr.mxu0 0.0
  %2584 = vmatpush1.msra.mxu0 0.0
  %2585 = vmatprep.subr.mxu0 0.0
  %2586 = vmatpush1.msra.mxu0 0.0
  %2587 = vmatprep.subr.mxu0 0.0
  %2588 = vmatpush1.msra.mxu0 0.0
  %2589 = vmatprep.subr.mxu0 0.0
  %2590 = vmatpush1.msra.mxu0 0.0
  %2591 = vmatprep.subr.mxu0 0.0
  %2592 = vmatpush1.msra.mxu0 0.0
  %2593 = vmatprep.subr.mxu0 0.0
  %2594 = vmatpush1.msra.mxu0 0.0
  %2595 = vmatprep.subr.mxu0 0.0
  %2596 = vmatpush1.msra.mxu0 0.0
  %2597 = vmatprep.subr.mxu0 0.0
  %2598 = vmatpush1.msra.mxu0 0.0
  %2599 = vmatprep.subr.mxu0 0.0
  %2600 = vmatpush1.msra.mxu0 0.0
  %2601 = vmatprep.subr.mxu0 0.0
  %2602 = vmatpush1.msra.mxu0 0.0
  %2603 = vmatprep.subr.mxu0 0.0
  %2604 = vmatpush1.msra.mxu0 0.0
  %2605 = vmatprep.subr.mxu0 0.0
  %2606 = vmatpush1.msra.mxu0 0.0
  %2607 = vmatprep.subr.mxu0 0.0
  %2608 = vmatpush1.msra.mxu0 0.0
  %2609 = vmatprep.subr.mxu0 0.0
  %2610 = vmatpush1.msra.mxu0 0.0
  %2611 = vmatprep.subr.mxu0 0.0
  %2612 = vmatpush1.msra.mxu0 0.0
  %2613 = vmatprep.subr.mxu0 0.0
  %2614 = vmatpush1.msra.mxu0 0.0
  %2615 = vmatprep.subr.mxu0 0.0
  %2616 = vmatpush1.msra.mxu0 0.0
  %2617 = vmatprep.subr.mxu0 0.0
  %2618 = vmatpush1.msra.mxu0 0.0
  %2619 = vmatprep.subr.mxu0 0.0
  %2620 = vmatpush1.msra.mxu0 0.0
  %2621 = vmatprep.subr.mxu0 0.0
  %2622 = vmatpush1.msra.mxu0 0.0
  %2623 = vmatprep.mubr.f32.mxu0 0.0
  %2624 = vmatmul.mubr.f32.gmra.mrb[0].mxu0 %v2554
  %v2625 = vpop.f32.mrb[0].mxu0
  %v2626 = vadd.f32 0.0, %v2625
  %v2627 = vpop.f32.mrb[0].mxu0
  %2628 = vmatprep.mubr.f32.mxu0 0.0
  %2629 = vmatmul.mubr.f32.gmra.mrb[0].mxu0 %v2557
  %v2630 = vpop.f32.mrb[0].mxu0
  %v2631 = vadd.f32 0.0, %v2630
  %v2632 = vpop.f32.mrb[0].mxu0
  %2633 = vdwg.mxu0
  %v2635 = vsel %vm2496, %v2549, 0
  %v2638 = vsel %vm2496, %v2550, 0
  %2640 = vmatprep.subr.mxu0 0.0
  %2641 = vmatpush1.msra.mxu0 %v893
  %2642 = vmatprep.subr.mxu0 0.0
  %2643 = vmatpush1.msra.mxu0 %v899
  %2644 = vmatprep.subr.mxu0 0.0
  %2645 = vmatpush1.msra.mxu0 0.0
  %2646 = vmatprep.subr.mxu0 0.0
  %2647 = vmatpush1.msra.mxu0 0.0
  %2648 = vmatprep.subr.mxu0 0.0
  %2649 = vmatpush1.msra.mxu0 0.0
  %2650 = vmatprep.subr.mxu0 0.0
  %2651 = vmatpush1.msra.mxu0 0.0
  %2652 = vmatprep.subr.mxu0 0.0
  %2653 = vmatpush1.msra.mxu0 0.0
  %2654 = vmatprep.subr.mxu0 0.0
  %2655 = vmatpush1.msra.mxu0 0.0
  %2656 = vmatprep.subr.mxu0 0.0
  %2657 = vmatpush1.msra.mxu0 0.0
  %2658 = vmatprep.subr.mxu0 0.0
  %2659 = vmatpush1.msra.mxu0 0.0
  %2660 = vmatprep.subr.mxu0 0.0
  %2661 = vmatpush1.msra.mxu0 0.0
  %2662 = vmatprep.subr.mxu0 0.0
  %2663 = vmatpush1.msra.mxu0 0.0
  %2664 = vmatprep.subr.mxu0 0.0
  %2665 = vmatpush1.msra.mxu0 0.0
  %2666 = vmatprep.subr.mxu0 0.0
  %2667 = vmatpush1.msra.mxu0 0.0
  %2668 = vmatprep.subr.mxu0 0.0
  %2669 = vmatpush1.msra.mxu0 0.0
  %2670 = vmatprep.subr.mxu0 0.0
  %2671 = vmatpush1.msra.mxu0 0.0
  %2672 = vmatprep.subr.mxu0 0.0
  %2673 = vmatpush1.msra.mxu0 0.0
  %2674 = vmatprep.subr.mxu0 0.0
  %2675 = vmatpush1.msra.mxu0 0.0
  %2676 = vmatprep.subr.mxu0 0.0
  %2677 = vmatpush1.msra.mxu0 0.0
  %2678 = vmatprep.subr.mxu0 0.0
  %2679 = vmatpush1.msra.mxu0 0.0
  %2680 = vmatprep.subr.mxu0 0.0
  %2681 = vmatpush1.msra.mxu0 0.0
  %2682 = vmatprep.subr.mxu0 0.0
  %2683 = vmatpush1.msra.mxu0 0.0
  %2684 = vmatprep.subr.mxu0 0.0
  %2685 = vmatpush1.msra.mxu0 0.0
  %2686 = vmatprep.subr.mxu0 0.0
  %2687 = vmatpush1.msra.mxu0 0.0
  %2688 = vmatprep.subr.mxu0 0.0
  %2689 = vmatpush1.msra.mxu0 0.0
  %2690 = vmatprep.subr.mxu0 0.0
  %2691 = vmatpush1.msra.mxu0 0.0
  %2692 = vmatprep.subr.mxu0 0.0
  %2693 = vmatpush1.msra.mxu0 0.0
  %2694 = vmatprep.subr.mxu0 0.0
  %2695 = vmatpush1.msra.mxu0 0.0
  %2696 = vmatprep.subr.mxu0 0.0
  %2697 = vmatpush1.msra.mxu0 0.0
  %2698 = vmatprep.subr.mxu0 0.0
  %2699 = vmatpush1.msra.mxu0 0.0
  %2700 = vmatprep.subr.mxu0 0.0
  %2701 = vmatpush1.msra.mxu0 0.0
  %2702 = vmatprep.subr.mxu0 0.0
  %2703 = vmatpush1.msra.mxu0 0.0
  %2704 = vmatprep.mubr.f32.mxu0 0.0
  %2705 = vmatmul.mubr.f32.gmra.mrb[0].mxu0 %v2635
  %v2706 = vpop.f32.mrb[0].mxu0
  %v2707 = vadd.f32 %v2626, %v2706
  %v2708 = vpop.f32.mrb[0].mxu0
  %2709 = vmatprep.mubr.f32.mxu0 0.0
  %2710 = vmatmul.mubr.f32.gmra.mrb[0].mxu0 %v2638
  %v2711 = vpop.f32.mrb[0].mxu0
  %v2712 = vadd.f32 %v2631, %v2711
  %v2713 = vpop.f32.mrb[0].mxu0
  %2714 = vdwg.mxu0
  %v2715 = vld [vmem:[%s16] sm:$0x1]
  %v2717 = vlaneseq
  %v2718 = vshrl.u32 %v2717, 7
  %v2719 = vsub.s32 0, %v2718
  %v2720 = vrot.slane %v2715, %v2719
  %v2722 = vadd.f32 %v2707, %v2720
  %v2723 = vadd.f32 %v2712, %v2720
  %v2724 = vmax.f32 %v2722, 0.0
  %v2725 = vmax.f32 %v2723, 0.0
  %v2726 = vld [vmem:[%s17] sm:$0xff]
  %v2727 = vld [vmem:[%s17 + $0x8] sm:$0xff]
  %v2728 = vld [vmem:[%s17 + $0x10] sm:$0xff]
  %v2729 = vld [vmem:[%s17 + $0x18] sm:$0xff]
  %v2730 = vld [vmem:[%s17 + $0x20] sm:$0xff]
  %v2731 = vld [vmem:[%s17 + $0x28] sm:$0xff]
  %v2732 = vld [vmem:[%s17 + $0x30] sm:$0xff]
  %v2733 = vld [vmem:[%s17 + $0x38] sm:$0xff]
  %v2734 = vld [vmem:[%s17 + $0x40] sm:$0xff]
  %v2735 = vld [vmem:[%s17 + $0x48] sm:$0xff]
  %v2736 = vld [vmem:[%s17 + $0x50] sm:$0xff]
  %v2737 = vld [vmem:[%s17 + $0x58] sm:$0xff]
  %v2738 = vld [vmem:[%s17 + $0x60] sm:$0xff]
  %v2739 = vld [vmem:[%s17 + $0x68] sm:$0xff]
  %v2740 = vld [vmem:[%s17 + $0x70] sm:$0xff]
  %v2741 = vld [vmem:[%s17 + $0x78] sm:$0xff]
  %v2742 = vld [vmem:[%s18] sm:$0x1]
  %v2744 = vlaneseq
  %v2745 = vshrl.u32 %v2744, 7
  %v2746 = vsub.s32 0, %v2745
  %v2747 = vrot.slane %v2742, %v2746
  %2749 = vmatprep.subr.mxu0 0.0
  %2750 = vmatpush1.msra.mxu0 %v2726
  %2751 = vmatprep.subr.mxu0 0.0
  %2752 = vmatpush1.msra.mxu0 %v2727
  %2753 = vmatprep.subr.mxu0 0.0
  %2754 = vmatpush1.msra.mxu0 %v2728
  %2755 = vmatprep.subr.mxu0 0.0
  %2756 = vmatpush1.msra.mxu0 %v2729
  %2757 = vmatprep.subr.mxu0 0.0
  %2758 = vmatpush1.msra.mxu0 %v2730
  %2759 = vmatprep.subr.mxu0 0.0
  %2760 = vmatpush1.msra.mxu0 %v2731
  %2761 = vmatprep.subr.mxu0 0.0
  %2762 = vmatpush1.msra.mxu0 %v2732
  %2763 = vmatprep.subr.mxu0 0.0
  %2764 = vmatpush1.msra.mxu0 %v2733
  %2765 = vmatprep.subr.mxu0 0.0
  %2766 = vmatpush1.msra.mxu0 %v2734
  %2767 = vmatprep.subr.mxu0 0.0
  %2768 = vmatpush1.msra.mxu0 %v2735
  %2769 = vmatprep.subr.mxu0 0.0
  %2770 = vmatpush1.msra.mxu0 %v2736
  %2771 = vmatprep.subr.mxu0 0.0
  %2772 = vmatpush1.msra.mxu0 %v2737
  %2773 = vmatprep.subr.mxu0 0.0
  %2774 = vmatpush1.msra.mxu0 %v2738
  %2775 = vmatprep.subr.mxu0 0.0
  %2776 = vmatpush1.msra.mxu0 %v2739
  %2777 = vmatprep.subr.mxu0 0.0
  %2778 = vmatpush1.msra.mxu0 %v2740
  %2779 = vmatprep.subr.mxu0 0.0
  %2780 = vmatpush1.msra.mxu0 %v2741
  %2781 = vmatprep.subr.mxu0 0.0
  %2782 = vmatpush1.msra.mxu0 0.0
  %2783 = vmatprep.subr.mxu0 0.0
  %2784 = vmatpush1.msra.mxu0 0.0
  %2785 = vmatprep.subr.mxu0 0.0
  %2786 = vmatpush1.msra.mxu0 0.0
  %2787 = vmatprep.subr.mxu0 0.0
  %2788 = vmatpush1.msra.mxu0 0.0
  %2789 = vmatprep.subr.mxu0 0.0
  %2790 = vmatpush1.msra.mxu0 0.0
  %2791 = vmatprep.subr.mxu0 0.0
  %2792 = vmatpush1.msra.mxu0 0.0
  %2793 = vmatprep.subr.mxu0 0.0
  %2794 = vmatpush1.msra.mxu0 0.0
  %2795 = vmatprep.subr.mxu0 0.0
  %2796 = vmatpush1.msra.mxu0 0.0
  %2797 = vmatprep.subr.mxu0 0.0
  %2798 = vmatpush1.msra.mxu0 0.0
  %2799 = vmatprep.subr.mxu0 0.0
  %2800 = vmatpush1.msra.mxu0 0.0
  %2801 = vmatprep.subr.mxu0 0.0
  %2802 = vmatpush1.msra.mxu0 0.0
  %2803 = vmatprep.subr.mxu0 0.0
  %2804 = vmatpush1.msra.mxu0 0.0
  %2805 = vmatprep.subr.mxu0 0.0
  %2806 = vmatpush1.msra.mxu0 0.0
  %2807 = vmatprep.subr.mxu0 0.0
  %2808 = vmatpush1.msra.mxu0 0.0
  %2809 = vmatprep.subr.mxu0 0.0
  %2810 = vmatpush1.msra.mxu0 0.0
  %2811 = vmatprep.subr.mxu0 0.0
  %2812 = vmatpush1.msra.mxu0 0.0
  %2813 = vmatprep.mubr.f32.mxu0 0.0
  %2814 = vmatmul.mubr.f32.gmra.mrb[0].mxu0 %v2724
  %v2815 = vpop.f32.mrb[0].mxu0
  %v2816 = vadd.f32 %v2747, %v2815
  %v2817 = vpop.f32.mrb[0].mxu0
  %2818 = vmatprep.mubr.f32.mxu0 0.0
  %2819 = vmatmul.mubr.f32.gmra.mrb[0].mxu0 %v2725
  %v2820 = vpop.f32.mrb[0].mxu0
  %v2821 = vadd.f32 %v2747, %v2820
  %v2822 = vpop.f32.mrb[0].mxu0
  %2823 = vdwg.mxu0
  %v2824 = vadd.f32 %v2816, %v245
  %v2825 = vadd.f32 %v2821, %v250
  %s2826 = scalar_lea.vmem %s10, 64
  %v2827 = vld [vmem:[%s2826] sm:$0xff]
  %v2828 = vld [vmem:[%s2826 + $0x8] sm:$0xff]
  %v2829 = vld [vmem:[%s2826 + $0x10] sm:$0xff]
  %v2830 = vld [vmem:[%s2826 + $0x18] sm:$0xff]
  %v2831 = vld [vmem:[%s2826 + $0x20] sm:$0xff]
  %v2832 = vld [vmem:[%s2826 + $0x28] sm:$0xff]
  %v2833 = vld [vmem:[%s2826 + $0x30] sm:$0xff]
  %v2834 = vld [vmem:[%s2826 + $0x38] sm:$0xff]
  %v2836 = vsel %vm171, %v2824, 0
  %v2839 = vsel %vm171, %v2825, 0
  %2841 = vmatprep.subr.mxu0 %v2828
  %2842 = vmatpush1.msra.mxu0 %v2827
  %2843 = vmatprep.subr.mxu0 %v2830
  %2844 = vmatpush1.msra.mxu0 %v2829
  %2845 = vmatprep.subr.mxu0 %v2832
  %2846 = vmatpush1.msra.mxu0 %v2831
  %2847 = vmatprep.subr.mxu0 %v2834
  %2848 = vmatpush1.msra.mxu0 %v2833
  %2849 = vmatprep.subr.mxu0 0.0
  %2850 = vmatpush1.msra.mxu0 0.0
  %2851 = vmatprep.subr.mxu0 0.0
  %2852 = vmatpush1.msra.mxu0 0.0
  %2853 = vmatprep.subr.mxu0 0.0
  %2854 = vmatpush1.msra.mxu0 0.0
  %2855 = vmatprep.subr.mxu0 0.0
  %2856 = vmatpush1.msra.mxu0 0.0
  %2857 = vmatprep.subr.mxu0 0.0
  %2858 = vmatpush1.msra.mxu0 0.0
  %2859 = vmatprep.subr.mxu0 0.0
  %2860 = vmatpush1.msra.mxu0 0.0
  %2861 = vmatprep.subr.mxu0 0.0
  %2862 = vmatpush1.msra.mxu0 0.0
  %2863 = vmatprep.subr.mxu0 0.0
  %2864 = vmatpush1.msra.mxu0 0.0
  %2865 = vmatprep.subr.mxu0 0.0
  %2866 = vmatpush1.msra.mxu0 0.0
  %2867 = vmatprep.subr.mxu0 0.0
  %2868 = vmatpush1.msra.mxu0 0.0
  %2869 = vmatprep.subr.mxu0 0.0
  %2870 = vmatpush1.msra.mxu0 0.0
  %2871 = vmatprep.subr.mxu0 0.0
  %2872 = vmatpush1.msra.mxu0 0.0
  %2873 = vmatprep.subr.mxu0 0.0
  %2874 = vmatpush1.msra.mxu0 0.0
  %2875 = vmatprep.subr.mxu0 0.0
  %2876 = vmatpush1.msra.mxu0 0.0
  %2877 = vmatprep.subr.mxu0 0.0
  %2878 = vmatpush1.msra.mxu0 0.0
  %2879 = vmatprep.subr.mxu0 0.0
  %2880 = vmatpush1.msra.mxu0 0.0
  %2881 = vmatprep.subr.mxu0 0.0
  %2882 = vmatpush1.msra.mxu0 0.0
  %2883 = vmatprep.subr.mxu0 0.0
  %2884 = vmatpush1.msra.mxu0 0.0
  %2885 = vmatprep.subr.mxu0 0.0
  %2886 = vmatpush1.msra.mxu0 0.0
  %2887 = vmatprep.subr.mxu0 0.0
  %2888 = vmatpush1.msra.mxu0 0.0
  %2889 = vmatprep.subr.mxu0 0.0
  %2890 = vmatpush1.msra.mxu0 0.0
  %2891 = vmatprep.subr.mxu0 0.0
  %2892 = vmatpush1.msra.mxu0 0.0
  %2893 = vmatprep.subr.mxu0 0.0
  %2894 = vmatpush1.msra.mxu0 0.0
  %2895 = vmatprep.subr.mxu0 0.0
  %2896 = vmatpush1.msra.mxu0 0.0
  %2897 = vmatprep.subr.mxu0 0.0
  %2898 = vmatpush1.msra.mxu0 0.0
  %2899 = vmatprep.subr.mxu0 0.0
  %2900 = vmatpush1.msra.mxu0 0.0
  %2901 = vmatprep.subr.mxu0 0.0
  %2902 = vmatpush1.msra.mxu0 0.0
  %2903 = vmatprep.subr.mxu0 0.0
  %2904 = vmatpush1.msra.mxu0 0.0
  %2905 = vmatprep.mubr.f32.mxu0 0.0
  %2906 = vmatmul.mubr.f32.gmra.mrb[0].mxu0 %v2836
  %v2907 = vpop.f32.mrb[0].mxu0
  %v2908 = vadd.f32 0.0, %v2907
  %v2909 = vpop.f32.mrb[0].mxu0
  %v2910 = vadd.f32 0.0, %v2909
  %2911 = vmatprep.mubr.f32.mxu0 0.0
  %2912 = vmatmul.mubr.f32.gmra.mrb[0].mxu0 %v2839
  %v2913 = vpop.f32.mrb[0].mxu0
  %v2914 = vadd.f32 0.0, %v2913
  %v2915 = vpop.f32.mrb[0].mxu0
  %v2916 = vadd.f32 0.0, %v2915
  %2917 = vdwg.mxu0
  %s2918 = scalar_lea.vmem %s14, 64
  %v2919 = vld [vmem:[%s2918] sm:$0xff]
  %v2920 = vld [vmem:[%s2918 + $0x8] sm:$0xff]
  %v2921 = vld [vmem:[%s2918 + $0x10] sm:$0xff]
  %v2922 = vld [vmem:[%s2918 + $0x18] sm:$0xff]
  %v2923 = vld [vmem:[%s2918 + $0x20] sm:$0xff]
  %v2924 = vld [vmem:[%s2918 + $0x28] sm:$0xff]
  %v2925 = vld [vmem:[%s2918 + $0x30] sm:$0xff]
  %v2926 = vld [vmem:[%s2918 + $0x38] sm:$0xff]
  %s2927 = scalar_lea.vmem %s15, 2
  %v2928 = vld [vmem:[%s2927] sm:$0x3]
  %v2930 = vlaneseq
  %v2931 = vshrl.u32 %v2930, 7
  %v2932 = vsub.s32 0, %v2931
  %v2933 = vrot.slane %v2928, %v2932
  %v2934 = vlaneseq
  %v2935 = vshrl.u32 %v2934, 7
  %v2936 = vsub.s32 1, %v2935
  %v2937 = vrot.slane %v2928, %v2936
  %2940 = vmatprep.subr.mxu0 %v2920
  %2941 = vmatpush1.msra.mxu0 %v2919
  %2942 = vmatprep.subr.mxu0 %v2922
  %2943 = vmatpush1.msra.mxu0 %v2921
  %2944 = vmatprep.subr.mxu0 %v2924
  %2945 = vmatpush1.msra.mxu0 %v2923
  %2946 = vmatprep.subr.mxu0 %v2926
  %2947 = vmatpush1.msra.mxu0 %v2925
  %2948 = vmatprep.subr.mxu0 0.0
  %2949 = vmatpush1.msra.mxu0 0.0
  %2950 = vmatprep.subr.mxu0 0.0
  %2951 = vmatpush1.msra.mxu0 0.0
  %2952 = vmatprep.subr.mxu0 0.0
  %2953 = vmatpush1.msra.mxu0 0.0
  %2954 = vmatprep.subr.mxu0 0.0
  %2955 = vmatpush1.msra.mxu0 0.0
  %2956 = vmatprep.subr.mxu0 0.0
  %2957 = vmatpush1.msra.mxu0 0.0
  %2958 = vmatprep.subr.mxu0 0.0
  %2959 = vmatpush1.msra.mxu0 0.0
  %2960 = vmatprep.subr.mxu0 0.0
  %2961 = vmatpush1.msra.mxu0 0.0
  %2962 = vmatprep.subr.mxu0 0.0
  %2963 = vmatpush1.msra.mxu0 0.0
  %2964 = vmatprep.subr.mxu0 0.0
  %2965 = vmatpush1.msra.mxu0 0.0
  %2966 = vmatprep.subr.mxu0 0.0
  %2967 = vmatpush1.msra.mxu0 0.0
  %2968 = vmatprep.subr.mxu0 0.0
  %2969 = vmatpush1.msra.mxu0 0.0
  %2970 = vmatprep.subr.mxu0 0.0
  %2971 = vmatpush1.msra.mxu0 0.0
  %2972 = vmatprep.subr.mxu0 0.0
  %2973 = vmatpush1.msra.mxu0 0.0
  %2974 = vmatprep.subr.mxu0 0.0
  %2975 = vmatpush1.msra.mxu0 0.0
  %2976 = vmatprep.subr.mxu0 0.0
  %2977 = vmatpush1.msra.mxu0 0.0
  %2978 = vmatprep.subr.mxu0 0.0
  %2979 = vmatpush1.msra.mxu0 0.0
  %2980 = vmatprep.subr.mxu0 0.0
  %2981 = vmatpush1.msra.mxu0 0.0
  %2982 = vmatprep.subr.mxu0 0.0
  %2983 = vmatpush1.msra.mxu0 0.0
  %2984 = vmatprep.subr.mxu0 0.0
  %2985 = vmatpush1.msra.mxu0 0.0
  %2986 = vmatprep.subr.mxu0 0.0
  %2987 = vmatpush1.msra.mxu0 0.0
  %2988 = vmatprep.subr.mxu0 0.0
  %2989 = vmatpush1.msra.mxu0 0.0
  %2990 = vmatprep.subr.mxu0 0.0
  %2991 = vmatpush1.msra.mxu0 0.0
  %2992 = vmatprep.subr.mxu0 0.0
  %2993 = vmatpush1.msra.mxu0 0.0
  %2994 = vmatprep.subr.mxu0 0.0
  %2995 = vmatpush1.msra.mxu0 0.0
  %2996 = vmatprep.subr.mxu0 0.0
  %2997 = vmatpush1.msra.mxu0 0.0
  %2998 = vmatprep.subr.mxu0 0.0
  %2999 = vmatpush1.msra.mxu0 0.0
  %3000 = vmatprep.subr.mxu0 0.0
  %3001 = vmatpush1.msra.mxu0 0.0
  %3002 = vmatprep.subr.mxu0 0.0
  %3003 = vmatpush1.msra.mxu0 0.0
  %3004 = vmatprep.mubr.f32.mxu0 0.0
  %3005 = vmatmul.mubr.f32.gmra.mrb[0].mxu0 %v2836
  %v3006 = vpop.f32.mrb[0].mxu0
  %v3007 = vadd.f32 %v2933, %v3006
  %v3008 = vpop.f32.mrb[0].mxu0
  %v3009 = vadd.f32 %v2937, %v3008
  %3010 = vmatprep.mubr.f32.mxu0 0.0
  %3011 = vmatmul.mubr.f32.gmra.mrb[0].mxu0 %v2839
  %v3012 = vpop.f32.mrb[0].mxu0
  %v3013 = vadd.f32 %v2933, %v3012
  %v3014 = vpop.f32.mrb[0].mxu0
  %v3015 = vadd.f32 %v2937, %v3014
  %3016 = vdwg.mxu0
  %s3017 = scalar_lea.vmem %s11, 32
  %v3018 = vld [vmem:[%s3017] sm:$0xff]
  %v3019 = vld [vmem:[%s3017 + $0x8] sm:$0xff]
  %v3020 = vld [vmem:[%s3017 + $0x10] sm:$0xff]
  %v3021 = vld [vmem:[%s3017 + $0x18] sm:$0xff]
  %3022 = vmatprep.subr.mxu0 0.0
  %3023 = vmatpush1.msra.mxu0 %v3018
  %3024 = vmatprep.subr.mxu0 0.0
  %3025 = vmatpush1.msra.mxu0 %v3019
  %3026 = vmatprep.subr.mxu0 0.0
  %3027 = vmatpush1.msra.mxu0 %v3020
  %3028 = vmatprep.subr.mxu0 0.0
  %3029 = vmatpush1.msra.mxu0 %v3021
  %3030 = vmatprep.subr.mxu0 0.0
  %3031 = vmatpush1.msra.mxu0 0.0
  %3032 = vmatprep.subr.mxu0 0.0
  %3033 = vmatpush1.msra.mxu0 0.0
  %3034 = vmatprep.subr.mxu0 0.0
  %3035 = vmatpush1.msra.mxu0 0.0
  %3036 = vmatprep.subr.mxu0 0.0
  %3037 = vmatpush1.msra.mxu0 0.0
  %3038 = vmatprep.subr.mxu0 0.0
  %3039 = vmatpush1.msra.mxu0 0.0
  %3040 = vmatprep.subr.mxu0 0.0
  %3041 = vmatpush1.msra.mxu0 0.0
  %3042 = vmatprep.subr.mxu0 0.0
  %3043 = vmatpush1.msra.mxu0 0.0
  %3044 = vmatprep.subr.mxu0 0.0
  %3045 = vmatpush1.msra.mxu0 0.0
  %3046 = vmatprep.subr.mxu0 0.0
  %3047 = vmatpush1.msra.mxu0 0.0
  %3048 = vmatprep.subr.mxu0 0.0
  %3049 = vmatpush1.msra.mxu0 0.0
  %3050 = vmatprep.subr.mxu0 0.0
  %3051 = vmatpush1.msra.mxu0 0.0
  %3052 = vmatprep.subr.mxu0 0.0
  %3053 = vmatpush1.msra.mxu0 0.0
  %3054 = vmatprep.subr.mxu0 0.0
  %3055 = vmatpush1.msra.mxu0 0.0
  %3056 = vmatprep.subr.mxu0 0.0
  %3057 = vmatpush1.msra.mxu0 0.0
  %3058 = vmatprep.subr.mxu0 0.0
  %3059 = vmatpush1.msra.mxu0 0.0
  %3060 = vmatprep.subr.mxu0 0.0
  %3061 = vmatpush1.msra.mxu0 0.0
  %3062 = vmatprep.subr.mxu0 0.0
  %3063 = vmatpush1.msra.mxu0 0.0
  %3064 = vmatprep.subr.mxu0 0.0
  %3065 = vmatpush1.msra.mxu0 0.0
  %3066 = vmatprep.subr.mxu0 0.0
  %3067 = vmatpush1.msra.mxu0 0.0
  %3068 = vmatprep.subr.mxu0 0.0
  %3069 = vmatpush1.msra.mxu0 0.0
  %3070 = vmatprep.subr.mxu0 0.0
  %3071 = vmatpush1.msra.mxu0 0.0
  %3072 = vmatprep.subr.mxu0 0.0
  %3073 = vmatpush1.msra.mxu0 0.0
  %3074 = vmatprep.subr.mxu0 0.0
  %3075 = vmatpush1.msra.mxu0 0.0
  %3076 = vmatprep.subr.mxu0 0.0
  %3077 = vmatpush1.msra.mxu0 0.0
  %3078 = vmatprep.subr.mxu0 0.0
  %3079 = vmatpush1.msra.mxu0 0.0
  %3080 = vmatprep.subr.mxu0 0.0
  %3081 = vmatpush1.msra.mxu0 0.0
  %3082 = vmatprep.subr.mxu0 0.0
  %3083 = vmatpush1.msra.mxu0 0.0
  %3084 = vmatprep.subr.mxu0 0.0
  %3085 = vmatpush1.msra.mxu0 0.0
  %3086 = vmatprep.mubr.f32.mxu0 0.0
  %3087 = vmatmul.mubr.f32.gmra.mrb[0].mxu0 %v908
  %v3088 = vpop.f32.mrb[0].mxu0
  %v3089 = vadd.f32 0.0, %v3088
  %v3090 = vpop.f32.mrb[0].mxu0
  %3091 = vmatprep.mubr.f32.mxu0 0.0
  %3092 = vmatmul.mubr.f32.gmra.mrb[0].mxu0 %v911
  %v3093 = vpop.f32.mrb[0].mxu0
  %v3094 = vadd.f32 0.0, %v3093
  %v3095 = vpop.f32.mrb[0].mxu0
  %3096 = vmatprep.mubr.f32.mxu0 0.0
  %3097 = vmatmul.mubr.f32.gmra.mrb[0].mxu0 %v914
  %v3098 = vpop.f32.mrb[0].mxu0
  %v3099 = vadd.f32 0.0, %v3098
  %v3100 = vpop.f32.mrb[0].mxu0
  %3101 = vmatprep.mubr.f32.mxu0 0.0
  %3102 = vmatmul.mubr.f32.gmra.mrb[0].mxu0 %v917
  %v3103 = vpop.f32.mrb[0].mxu0
  %v3104 = vadd.f32 0.0, %v3103
  %v3105 = vpop.f32.mrb[0].mxu0
  %3106 = vmatprep.mubr.f32.mxu0 0.0
  %3107 = vmatmul.mubr.f32.gmra.mrb[0].mxu0 %v920
  %v3108 = vpop.f32.mrb[0].mxu0
  %v3109 = vadd.f32 0.0, %v3108
  %v3110 = vpop.f32.mrb[0].mxu0
  %3111 = vmatprep.mubr.f32.mxu0 0.0
  %3112 = vmatmul.mubr.f32.gmra.mrb[0].mxu0 %v923
  %v3113 = vpop.f32.mrb[0].mxu0
  %v3114 = vadd.f32 0.0, %v3113
  %v3115 = vpop.f32.mrb[0].mxu0
  %3116 = vmatprep.mubr.f32.mxu0 0.0
  %3117 = vmatmul.mubr.f32.gmra.mrb[0].mxu0 %v926
  %v3118 = vpop.f32.mrb[0].mxu0
  %v3119 = vadd.f32 0.0, %v3118
  %v3120 = vpop.f32.mrb[0].mxu0
  %3121 = vmatprep.mubr.f32.mxu0 0.0
  %3122 = vmatmul.mubr.f32.gmra.mrb[0].mxu0 %v929
  %v3123 = vpop.f32.mrb[0].mxu0
  %v3124 = vadd.f32 0.0, %v3123
  %v3125 = vpop.f32.mrb[0].mxu0
  %3126 = vmatprep.mubr.f32.mxu0 0.0
  %3127 = vmatmul.mubr.f32.gmra.mrb[0].mxu0 %v932
  %v3128 = vpop.f32.mrb[0].mxu0
  %v3129 = vadd.f32 0.0, %v3128
  %v3130 = vpop.f32.mrb[0].mxu0
  %3131 = vmatprep.mubr.f32.mxu0 0.0
  %3132 = vmatmul.mubr.f32.gmra.mrb[0].mxu0 %v935
  %v3133 = vpop.f32.mrb[0].mxu0
  %v3134 = vadd.f32 0.0, %v3133
  %v3135 = vpop.f32.mrb[0].mxu0
  %3136 = vmatprep.mubr.f32.mxu0 0.0
  %3137 = vmatmul.mubr.f32.gmra.mrb[0].mxu0 %v938
  %v3138 = vpop.f32.mrb[0].mxu0
  %v3139 = vadd.f32 0.0, %v3138
  %v3140 = vpop.f32.mrb[0].mxu0
  %3141 = vmatprep.mubr.f32.mxu0 0.0
  %3142 = vmatmul.mubr.f32.gmra.mrb[0].mxu0 %v941
  %v3143 = vpop.f32.mrb[0].mxu0
  %v3144 = vadd.f32 0.0, %v3143
  %v3145 = vpop.f32.mrb[0].mxu0
  %3146 = vmatprep.mubr.f32.mxu0 0.0
  %3147 = vmatmul.mubr.f32.gmra.mrb[0].mxu0 %v944
  %v3148 = vpop.f32.mrb[0].mxu0
  %v3149 = vadd.f32 0.0, %v3148
  %v3150 = vpop.f32.mrb[0].mxu0
  %3151 = vmatprep.mubr.f32.mxu0 0.0
  %3152 = vmatmul.mubr.f32.gmra.mrb[0].mxu0 %v947
  %v3153 = vpop.f32.mrb[0].mxu0
  %v3154 = vadd.f32 0.0, %v3153
  %v3155 = vpop.f32.mrb[0].mxu0
  %3156 = vmatprep.mubr.f32.mxu0 0.0
  %3157 = vmatmul.mubr.f32.gmra.mrb[0].mxu0 %v950
  %v3158 = vpop.f32.mrb[0].mxu0
  %v3159 = vadd.f32 0.0, %v3158
  %v3160 = vpop.f32.mrb[0].mxu0
  %3161 = vmatprep.mubr.f32.mxu0 0.0
  %3162 = vmatmul.mubr.f32.gmra.mrb[0].mxu0 %v953
  %v3163 = vpop.f32.mrb[0].mxu0
  %v3164 = vadd.f32 0.0, %v3163
  %v3165 = vpop.f32.mrb[0].mxu0
  %3166 = vmatprep.mubr.f32.mxu0 0.0
  %3167 = vmatmul.mubr.f32.gmra.mrb[0].mxu0 %v956
  %v3168 = vpop.f32.mrb[0].mxu0
  %v3169 = vadd.f32 0.0, %v3168
  %v3170 = vpop.f32.mrb[0].mxu0
  %3171 = vmatprep.mubr.f32.mxu0 0.0
  %3172 = vmatmul.mubr.f32.gmra.mrb[0].mxu0 %v959
  %v3173 = vpop.f32.mrb[0].mxu0
  %v3174 = vadd.f32 0.0, %v3173
  %v3175 = vpop.f32.mrb[0].mxu0
  %3176 = vmatprep.mubr.f32.mxu0 0.0
  %3177 = vmatmul.mubr.f32.gmra.mrb[0].mxu0 %v962
  %v3178 = vpop.f32.mrb[0].mxu0
  %v3179 = vadd.f32 0.0, %v3178
  %v3180 = vpop.f32.mrb[0].mxu0
  %3181 = vmatprep.mubr.f32.mxu0 0.0
  %3182 = vmatmul.mubr.f32.gmra.mrb[0].mxu0 %v965
  %v3183 = vpop.f32.mrb[0].mxu0
  %v3184 = vadd.f32 0.0, %v3183
  %v3185 = vpop.f32.mrb[0].mxu0
  %3186 = vmatprep.mubr.f32.mxu0 0.0
  %3187 = vmatmul.mubr.f32.gmra.mrb[0].mxu0 %v968
  %v3188 = vpop.f32.mrb[0].mxu0
  %v3189 = vadd.f32 0.0, %v3188
  %v3190 = vpop.f32.mrb[0].mxu0
  %3191 = vmatprep.mubr.f32.mxu0 0.0
  %3192 = vmatmul.mubr.f32.gmra.mrb[0].mxu0 %v971
  %v3193 = vpop.f32.mrb[0].mxu0
  %v3194 = vadd.f32 0.0, %v3193
  %v3195 = vpop.f32.mrb[0].mxu0
  %3196 = vmatprep.mubr.f32.mxu0 0.0
  %3197 = vmatmul.mubr.f32.gmra.mrb[0].mxu0 %v974
  %v3198 = vpop.f32.mrb[0].mxu0
  %v3199 = vadd.f32 0.0, %v3198
  %v3200 = vpop.f32.mrb[0].mxu0
  %3201 = vmatprep.mubr.f32.mxu0 0.0
  %3202 = vmatmul.mubr.f32.gmra.mrb[0].mxu0 %v977
  %v3203 = vpop.f32.mrb[0].mxu0
  %v3204 = vadd.f32 0.0, %v3203
  %v3205 = vpop.f32.mrb[0].mxu0
  %3206 = vmatprep.mubr.f32.mxu0 0.0
  %3207 = vmatmul.mubr.f32.gmra.mrb[0].mxu0 %v980
  %v3208 = vpop.f32.mrb[0].mxu0
  %v3209 = vadd.f32 0.0, %v3208
  %v3210 = vpop.f32.mrb[0].mxu0
  %3211 = vmatprep.mubr.f32.mxu0 0.0
  %3212 = vmatmul.mubr.f32.gmra.mrb[0].mxu0 %v983
  %v3213 = vpop.f32.mrb[0].mxu0
  %v3214 = vadd.f32 0.0, %v3213
  %v3215 = vpop.f32.mrb[0].mxu0
  %3216 = vmatprep.mubr.f32.mxu0 0.0
  %3217 = vmatmul.mubr.f32.gmra.mrb[0].mxu0 %v986
  %v3218 = vpop.f32.mrb[0].mxu0
  %v3219 = vadd.f32 0.0, %v3218
  %v3220 = vpop.f32.mrb[0].mxu0
  %3221 = vmatprep.mubr.f32.mxu0 0.0
  %3222 = vmatmul.mubr.f32.gmra.mrb[0].mxu0 %v989
  %v3223 = vpop.f32.mrb[0].mxu0
  %v3224 = vadd.f32 0.0, %v3223
  %v3225 = vpop.f32.mrb[0].mxu0
  %3226 = vmatprep.mubr.f32.mxu0 0.0
  %3227 = vmatmul.mubr.f32.gmra.mrb[0].mxu0 %v992
  %v3228 = vpop.f32.mrb[0].mxu0
  %v3229 = vadd.f32 0.0, %v3228
  %v3230 = vpop.f32.mrb[0].mxu0
  %3231 = vmatprep.mubr.f32.mxu0 0.0
  %3232 = vmatmul.mubr.f32.gmra.mrb[0].mxu0 %v995
  %v3233 = vpop.f32.mrb[0].mxu0
  %v3234 = vadd.f32 0.0, %v3233
  %v3235 = vpop.f32.mrb[0].mxu0
  %3236 = vmatprep.mubr.f32.mxu0 0.0
  %3237 = vmatmul.mubr.f32.gmra.mrb[0].mxu0 %v998
  %v3238 = vpop.f32.mrb[0].mxu0
  %v3239 = vadd.f32 0.0, %v3238
  %v3240 = vpop.f32.mrb[0].mxu0
  %3241 = vmatprep.mubr.f32.mxu0 0.0
  %3242 = vmatmul.mubr.f32.gmra.mrb[0].mxu0 %v1001
  %v3243 = vpop.f32.mrb[0].mxu0
  %v3244 = vadd.f32 0.0, %v3243
  %v3245 = vpop.f32.mrb[0].mxu0
  %3246 = vdwg.mxu0
  %v3249 = vcombine.high %v2910, %v2910
  %v3251 = vunpack.c.l.s4 1966171168
  %v3252 = vunpack.c.0.s8 %v3251
  %v3253 = vlaneseq
  %v3254 = vshrl.u32 %v3253, 7
  %v3255 = vsub.s32 %v3252, %v3254
  %v3256 = vrot.slane %v2910, %v3255
  %v3258 = vunpack.c.l.s4 1966171168
  %v3259 = vunpack.c.0.s8 %v3258
  %v3260 = vlaneseq
  %v3261 = vshrl.u32 %v3260, 7
  %v3262 = vsub.s32 %v3259, %v3261
  %v3263 = vrot.slane %v3249, %v3262
  %v3264 = vcombine.high %v3256, %v3256
  %v3265 = vcombine.high %v3263, %v3263
  %v3267 = vunpack.c.l.s4 1966171168
  %v3268 = vunpack.c.0.s8 %v3267
  %v3269 = vlaneseq
  %v3270 = vshrl.u32 %v3269, 7
  %v3271 = vsub.s32 %v3268, %v3270
  %v3272 = vrot.slane %v3256, %v3271
  %v3274 = vunpack.c.l.s4 1966171168
  %v3275 = vunpack.c.0.s8 %v3274
  %v3276 = vlaneseq
  %v3277 = vshrl.u32 %v3276, 7
  %v3278 = vsub.s32 %v3275, %v3277
  %v3279 = vrot.slane %v3263, %v3278
  %v3281 = vunpack.c.l.s4 1966171168
  %v3282 = vunpack.c.0.s8 %v3281
  %v3283 = vlaneseq
  %v3284 = vshrl.u32 %v3283, 7
  %v3285 = vsub.s32 %v3282, %v3284
  %v3286 = vrot.slane %v3264, %v3285
  %v3288 = vunpack.c.l.s4 1966171168
  %v3289 = vunpack.c.0.s8 %v3288
  %v3290 = vlaneseq
  %v3291 = vshrl.u32 %v3290, 7
  %v3292 = vsub.s32 %v3289, %v3291
  %v3293 = vrot.slane %v3265, %v3292
  %v3294 = vcombine.high %v3272, %v3272
  %v3295 = vcombine.high %v3279, %v3279
  %v3296 = vcombine.high %v3286, %v3286
  %v3297 = vcombine.high %v3293, %v3293
  %v3298 = vcombine.high %v2916, %v2916
  %v3300 = vunpack.c.l.s4 1966171168
  %v3301 = vunpack.c.0.s8 %v3300
  %v3302 = vlaneseq
  %v3303 = vshrl.u32 %v3302, 7
  %v3304 = vsub.s32 %v3301, %v3303
  %v3305 = vrot.slane %v2916, %v3304
  %v3307 = vunpack.c.l.s4 1966171168
  %v3308 = vunpack.c.0.s8 %v3307
  %v3309 = vlaneseq
  %v3310 = vshrl.u32 %v3309, 7
  %v3311 = vsub.s32 %v3308, %v3310
  %v3312 = vrot.slane %v3298, %v3311
  %v3313 = vcombine.high %v3305, %v3305
  %v3314 = vcombine.high %v3312, %v3312
  %v3316 = vunpack.c.l.s4 1966171168
  %v3317 = vunpack.c.0.s8 %v3316
  %v3318 = vlaneseq
  %v3319 = vshrl.u32 %v3318, 7
  %v3320 = vsub.s32 %v3317, %v3319
  %v3321 = vrot.slane %v3305, %v3320
  %v3323 = vunpack.c.l.s4 1966171168
  %v3324 = vunpack.c.0.s8 %v3323
  %v3325 = vlaneseq
  %v3326 = vshrl.u32 %v3325, 7
  %v3327 = vsub.s32 %v3324, %v3326
  %v3328 = vrot.slane %v3312, %v3327
  %v3330 = vunpack.c.l.s4 1966171168
  %v3331 = vunpack.c.0.s8 %v3330
  %v3332 = vlaneseq
  %v3333 = vshrl.u32 %v3332, 7
  %v3334 = vsub.s32 %v3331, %v3333
  %v3335 = vrot.slane %v3313, %v3334
  %v3337 = vunpack.c.l.s4 1966171168
  %v3338 = vunpack.c.0.s8 %v3337
  %v3339 = vlaneseq
  %v3340 = vshrl.u32 %v3339, 7
  %v3341 = vsub.s32 %v3338, %v3340
  %v3342 = vrot.slane %v3314, %v3341
  %v3343 = vcombine.high %v3321, %v3321
  %v3344 = vcombine.high %v3328, %v3328
  %v3345 = vcombine.high %v3335, %v3335
  %v3346 = vcombine.high %v3342, %v3342
  %v3347 = vlaneseq
  %v3348 = vshrl.u32 %v3347, 7
  %v3349 = vsub.s32 0, %v3348
  %v3350 = vrot.slane %v3272, %v3349
  %v3351 = vlaneseq
  %v3352 = vshrl.u32 %v3351, 7
  %v3353 = vsub.s32 0, %v3352
  %v3354 = vrot.slane %v3286, %v3353
  %v3355 = vlaneseq
  %v3356 = vshrl.u32 %v3355, 7
  %v3357 = vsub.s32 0, %v3356
  %v3358 = vrot.slane %v3294, %v3357
  %v3359 = vlaneseq
  %v3360 = vshrl.u32 %v3359, 7
  %v3361 = vsub.s32 0, %v3360
  %v3362 = vrot.slane %v3296, %v3361
  %v3363 = vlaneseq
  %v3364 = vshrl.u32 %v3363, 7
  %v3365 = vsub.s32 0, %v3364
  %v3366 = vrot.slane %v3279, %v3365
  %v3367 = vlaneseq
  %v3368 = vshrl.u32 %v3367, 7
  %v3369 = vsub.s32 0, %v3368
  %v3370 = vrot.slane %v3293, %v3369
  %v3371 = vlaneseq
  %v3372 = vshrl.u32 %v3371, 7
  %v3373 = vsub.s32 0, %v3372
  %v3374 = vrot.slane %v3295, %v3373
  %v3375 = vlaneseq
  %v3376 = vshrl.u32 %v3375, 7
  %v3377 = vsub.s32 0, %v3376
  %v3378 = vrot.slane %v3297, %v3377
  %v3379 = vlaneseq
  %v3380 = vshrl.u32 %v3379, 7
  %v3381 = vsub.s32 0, %v3380
  %v3382 = vrot.slane %v3321, %v3381
  %v3383 = vlaneseq
  %v3384 = vshrl.u32 %v3383, 7
  %v3385 = vsub.s32 0, %v3384
  %v3386 = vrot.slane %v3335, %v3385
  %v3387 = vlaneseq
  %v3388 = vshrl.u32 %v3387, 7
  %v3389 = vsub.s32 0, %v3388
  %v3390 = vrot.slane %v3343, %v3389
  %v3391 = vlaneseq
  %v3392 = vshrl.u32 %v3391, 7
  %v3393 = vsub.s32 0, %v3392
  %v3394 = vrot.slane %v3345, %v3393
  %v3395 = vlaneseq
  %v3396 = vshrl.u32 %v3395, 7
  %v3397 = vsub.s32 0, %v3396
  %v3398 = vrot.slane %v3328, %v3397
  %v3399 = vlaneseq
  %v3400 = vshrl.u32 %v3399, 7
  %v3401 = vsub.s32 0, %v3400
  %v3402 = vrot.slane %v3342, %v3401
  %v3403 = vlaneseq
  %v3404 = vshrl.u32 %v3403, 7
  %v3405 = vsub.s32 0, %v3404
  %v3406 = vrot.slane %v3344, %v3405
  %v3407 = vlaneseq
  %v3408 = vshrl.u32 %v3407, 7
  %v3409 = vsub.s32 0, %v3408
  %v3410 = vrot.slane %v3346, %v3409
  %v3427 = vadd.f32 %v3350, %v2908
  %v3428 = vadd.f32 %v3350, %v2914
  %v3429 = vadd.f32 %v3354, %v2908
  %v3430 = vadd.f32 %v3354, %v2914
  %v3431 = vadd.f32 %v3358, %v2908
  %v3432 = vadd.f32 %v3358, %v2914
  %v3433 = vadd.f32 %v3362, %v2908
  %v3434 = vadd.f32 %v3362, %v2914
  %v3435 = vadd.f32 %v3366, %v2908
  %v3436 = vadd.f32 %v3366, %v2914
  %v3437 = vadd.f32 %v3370, %v2908
  %v3438 = vadd.f32 %v3370, %v2914
  %v3439 = vadd.f32 %v3374, %v2908
  %v3440 = vadd.f32 %v3374, %v2914
  %v3441 = vadd.f32 %v3378, %v2908
  %v3442 = vadd.f32 %v3378, %v2914
  %v3443 = vadd.f32 %v3382, %v2908
  %v3444 = vadd.f32 %v3382, %v2914
  %v3445 = vadd.f32 %v3386, %v2908
  %v3446 = vadd.f32 %v3386, %v2914
  %v3447 = vadd.f32 %v3390, %v2908
  %v3448 = vadd.f32 %v3390, %v2914
  %v3449 = vadd.f32 %v3394, %v2908
  %v3450 = vadd.f32 %v3394, %v2914
  %v3451 = vadd.f32 %v3398, %v2908
  %v3452 = vadd.f32 %v3398, %v2914
  %v3453 = vadd.f32 %v3402, %v2908
  %v3454 = vadd.f32 %v3402, %v2914
  %v3455 = vadd.f32 %v3406, %v2908
  %v3456 = vadd.f32 %v3406, %v2914
  %v3457 = vadd.f32 %v3410, %v2908
  %v3458 = vadd.f32 %v3410, %v2914
  %v3459 = vadd.f32 %v3427, %v3089
  %v3460 = vadd.f32 %v3428, %v3094
  %v3461 = vadd.f32 %v3429, %v3099
  %v3462 = vadd.f32 %v3430, %v3104
  %v3463 = vadd.f32 %v3431, %v3109
  %v3464 = vadd.f32 %v3432, %v3114
  %v3465 = vadd.f32 %v3433, %v3119
  %v3466 = vadd.f32 %v3434, %v3124
  %v3467 = vadd.f32 %v3435, %v3129
  %v3468 = vadd.f32 %v3436, %v3134
  %v3469 = vadd.f32 %v3437, %v3139
  %v3470 = vadd.f32 %v3438, %v3144
  %v3471 = vadd.f32 %v3439, %v3149
  %v3472 = vadd.f32 %v3440, %v3154
  %v3473 = vadd.f32 %v3441, %v3159
  %v3474 = vadd.f32 %v3442, %v3164
  %v3475 = vadd.f32 %v3443, %v3169
  %v3476 = vadd.f32 %v3444, %v3174
  %v3477 = vadd.f32 %v3445, %v3179
  %v3478 = vadd.f32 %v3446, %v3184
  %v3479 = vadd.f32 %v3447, %v3189
  %v3480 = vadd.f32 %v3448, %v3194
  %v3481 = vadd.f32 %v3449, %v3199
  %v3482 = vadd.f32 %v3450, %v3204
  %v3483 = vadd.f32 %v3451, %v3209
  %v3484 = vadd.f32 %v3452, %v3214
  %v3485 = vadd.f32 %v3453, %v3219
  %v3486 = vadd.f32 %v3454, %v3224
  %v3487 = vadd.f32 %v3455, %v3229
  %v3488 = vadd.f32 %v3456, %v3234
  %v3489 = vadd.f32 %v3457, %v3239
  %v3490 = vadd.f32 %v3458, %v3244
  %s3491 = scalar_lea.vmem %s12, 1
  %v3492 = vld [vmem:[%s3491] sm:$0x1]
  %v3494 = vlaneseq
  %v3495 = vshrl.u32 %v3494, 7
  %v3496 = vsub.s32 0, %v3495
  %v3497 = vrot.slane %v3492, %v3496
  %v3499 = vadd.f32 %v3459, %v3497
  %v3500 = vadd.f32 %v3460, %v3497
  %v3501 = vadd.f32 %v3461, %v3497
  %v3502 = vadd.f32 %v3462, %v3497
  %v3503 = vadd.f32 %v3463, %v3497
  %v3504 = vadd.f32 %v3464, %v3497
  %v3505 = vadd.f32 %v3465, %v3497
  %v3506 = vadd.f32 %v3466, %v3497
  %v3507 = vadd.f32 %v3467, %v3497
  %v3508 = vadd.f32 %v3468, %v3497
  %v3509 = vadd.f32 %v3469, %v3497
  %v3510 = vadd.f32 %v3470, %v3497
  %v3511 = vadd.f32 %v3471, %v3497
  %v3512 = vadd.f32 %v3472, %v3497
  %v3513 = vadd.f32 %v3473, %v3497
  %v3514 = vadd.f32 %v3474, %v3497
  %v3515 = vadd.f32 %v3475, %v3497
  %v3516 = vadd.f32 %v3476, %v3497
  %v3517 = vadd.f32 %v3477, %v3497
  %v3518 = vadd.f32 %v3478, %v3497
  %v3519 = vadd.f32 %v3479, %v3497
  %v3520 = vadd.f32 %v3480, %v3497
  %v3521 = vadd.f32 %v3481, %v3497
  %v3522 = vadd.f32 %v3482, %v3497
  %v3523 = vadd.f32 %v3483, %v3497
  %v3524 = vadd.f32 %v3484, %v3497
  %v3525 = vadd.f32 %v3485, %v3497
  %v3526 = vadd.f32 %v3486, %v3497
  %v3527 = vadd.f32 %v3487, %v3497
  %v3528 = vadd.f32 %v3488, %v3497
  %v3529 = vadd.f32 %v3489, %v3497
  %v3530 = vadd.f32 %v3490, %v3497
  %vm3531 = vcmp.gt.f32.partialorder %v3499, 0.0
  %vm3532 = vcmp.gt.f32.partialorder %v3500, 0.0
  %vm3533 = vcmp.gt.f32.partialorder %v3501, 0.0
  %vm3534 = vcmp.gt.f32.partialorder %v3502, 0.0
  %vm3535 = vcmp.gt.f32.partialorder %v3503, 0.0
  %vm3536 = vcmp.gt.f32.partialorder %v3504, 0.0
  %vm3537 = vcmp.gt.f32.partialorder %v3505, 0.0
  %vm3538 = vcmp.gt.f32.partialorder %v3506, 0.0
  %vm3539 = vcmp.gt.f32.partialorder %v3507, 0.0
  %vm3540 = vcmp.gt.f32.partialorder %v3508, 0.0
  %vm3541 = vcmp.gt.f32.partialorder %v3509, 0.0
  %vm3542 = vcmp.gt.f32.partialorder %v3510, 0.0
  %vm3543 = vcmp.gt.f32.partialorder %v3511, 0.0
  %vm3544 = vcmp.gt.f32.partialorder %v3512, 0.0
  %vm3545 = vcmp.gt.f32.partialorder %v3513, 0.0
  %vm3546 = vcmp.gt.f32.partialorder %v3514, 0.0
  %vm3547 = vcmp.gt.f32.partialorder %v3515, 0.0
  %vm3548 = vcmp.gt.f32.partialorder %v3516, 0.0
  %vm3549 = vcmp.gt.f32.partialorder %v3517, 0.0
  %vm3550 = vcmp.gt.f32.partialorder %v3518, 0.0
  %vm3551 = vcmp.gt.f32.partialorder %v3519, 0.0
  %vm3552 = vcmp.gt.f32.partialorder %v3520, 0.0
  %vm3553 = vcmp.gt.f32.partialorder %v3521, 0.0
  %vm3554 = vcmp.gt.f32.partialorder %v3522, 0.0
  %vm3555 = vcmp.gt.f32.partialorder %v3523, 0.0
  %vm3556 = vcmp.gt.f32.partialorder %v3524, 0.0
  %vm3557 = vcmp.gt.f32.partialorder %v3525, 0.0
  %vm3558 = vcmp.gt.f32.partialorder %v3526, 0.0
  %vm3559 = vcmp.gt.f32.partialorder %v3527, 0.0
  %vm3560 = vcmp.gt.f32.partialorder %v3528, 0.0
  %vm3561 = vcmp.gt.f32.partialorder %v3529, 0.0
  %vm3562 = vcmp.gt.f32.partialorder %v3530, 0.0
  %v3563 = vmul.f32 %v3499, 0.01
  %v3564 = vmul.f32 %v3500, 0.01
  %v3565 = vmul.f32 %v3501, 0.01
  %v3566 = vmul.f32 %v3502, 0.01
  %v3567 = vmul.f32 %v3503, 0.01
  %v3568 = vmul.f32 %v3504, 0.01
  %v3569 = vmul.f32 %v3505, 0.01
  %v3570 = vmul.f32 %v3506, 0.01
  %v3571 = vmul.f32 %v3507, 0.01
  %v3572 = vmul.f32 %v3508, 0.01
  %v3573 = vmul.f32 %v3509, 0.01
  %v3574 = vmul.f32 %v3510, 0.01
  %v3575 = vmul.f32 %v3511, 0.01
  %v3576 = vmul.f32 %v3512, 0.01
  %v3577 = vmul.f32 %v3513, 0.01
  %v3578 = vmul.f32 %v3514, 0.01
  %v3579 = vmul.f32 %v3515, 0.01
  %v3580 = vmul.f32 %v3516, 0.01
  %v3581 = vmul.f32 %v3517, 0.01
  %v3582 = vmul.f32 %v3518, 0.01
  %v3583 = vmul.f32 %v3519, 0.01
  %v3584 = vmul.f32 %v3520, 0.01
  %v3585 = vmul.f32 %v3521, 0.01
  %v3586 = vmul.f32 %v3522, 0.01
  %v3587 = vmul.f32 %v3523, 0.01
  %v3588 = vmul.f32 %v3524, 0.01
  %v3589 = vmul.f32 %v3525, 0.01
  %v3590 = vmul.f32 %v3526, 0.01
  %v3591 = vmul.f32 %v3527, 0.01
  %v3592 = vmul.f32 %v3528, 0.01
  %v3593 = vmul.f32 %v3529, 0.01
  %v3594 = vmul.f32 %v3530, 0.01
  %v3595 = vsel %vm3531, %v3499, %v3563
  %v3596 = vsel %vm3532, %v3500, %v3564
  %v3597 = vsel %vm3533, %v3501, %v3565
  %v3598 = vsel %vm3534, %v3502, %v3566
  %v3599 = vsel %vm3535, %v3503, %v3567
  %v3600 = vsel %vm3536, %v3504, %v3568
  %v3601 = vsel %vm3537, %v3505, %v3569
  %v3602 = vsel %vm3538, %v3506, %v3570
  %v3603 = vsel %vm3539, %v3507, %v3571
  %v3604 = vsel %vm3540, %v3508, %v3572
  %v3605 = vsel %vm3541, %v3509, %v3573
  %v3606 = vsel %vm3542, %v3510, %v3574
  %v3607 = vsel %vm3543, %v3511, %v3575
  %v3608 = vsel %vm3544, %v3512, %v3576
  %v3609 = vsel %vm3545, %v3513, %v3577
  %v3610 = vsel %vm3546, %v3514, %v3578
  %v3611 = vsel %vm3547, %v3515, %v3579
  %v3612 = vsel %vm3548, %v3516, %v3580
  %v3613 = vsel %vm3549, %v3517, %v3581
  %v3614 = vsel %vm3550, %v3518, %v3582
  %v3615 = vsel %vm3551, %v3519, %v3583
  %v3616 = vsel %vm3552, %v3520, %v3584
  %v3617 = vsel %vm3553, %v3521, %v3585
  %v3618 = vsel %vm3554, %v3522, %v3586
  %v3619 = vsel %vm3555, %v3523, %v3587
  %v3620 = vsel %vm3556, %v3524, %v3588
  %v3621 = vsel %vm3557, %v3525, %v3589
  %v3622 = vsel %vm3558, %v3526, %v3590
  %v3623 = vsel %vm3559, %v3527, %v3591
  %v3624 = vsel %vm3560, %v3528, %v3592
  %v3625 = vsel %vm3561, %v3529, %v3593
  %v3626 = vsel %vm3562, %v3530, %v3594
  %s3627 = scalar_lea.vmem %s13, 64
  %v3628 = vld [vmem:[%s3627] sm:$0xff]
  %v3629 = vld [vmem:[%s3627 + $0x8] sm:$0xff]
  %v3630 = vld [vmem:[%s3627 + $0x10] sm:$0xff]
  %v3631 = vld [vmem:[%s3627 + $0x18] sm:$0xff]
  %v3632 = vld [vmem:[%s3627 + $0x20] sm:$0xff]
  %v3633 = vld [vmem:[%s3627 + $0x28] sm:$0xff]
  %v3634 = vld [vmem:[%s3627 + $0x30] sm:$0xff]
  %v3635 = vld [vmem:[%s3627 + $0x38] sm:$0xff]
  %v3637 = vsel %vm1615, %v3595, 0
  %v3640 = vsel %vm1615, %v3596, 0
  %v3643 = vsel %vm1615, %v3597, 0
  %v3646 = vsel %vm1615, %v3598, 0
  %v3649 = vsel %vm1615, %v3599, 0
  %v3652 = vsel %vm1615, %v3600, 0
  %v3655 = vsel %vm1615, %v3601, 0
  %v3658 = vsel %vm1615, %v3602, 0
  %v3661 = vsel %vm1615, %v3603, 0
  %v3664 = vsel %vm1615, %v3604, 0
  %v3667 = vsel %vm1615, %v3605, 0
  %v3670 = vsel %vm1615, %v3606, 0
  %v3673 = vsel %vm1615, %v3607, 0
  %v3676 = vsel %vm1615, %v3608, 0
  %v3679 = vsel %vm1615, %v3609, 0
  %v3682 = vsel %vm1615, %v3610, 0
  %v3685 = vsel %vm1615, %v3611, 0
  %v3688 = vsel %vm1615, %v3612, 0
  %v3691 = vsel %vm1615, %v3613, 0
  %v3694 = vsel %vm1615, %v3614, 0
  %v3697 = vsel %vm1615, %v3615, 0
  %v3700 = vsel %vm1615, %v3616, 0
  %v3703 = vsel %vm1615, %v3617, 0
  %v3706 = vsel %vm1615, %v3618, 0
  %v3709 = vsel %vm1615, %v3619, 0
  %v3712 = vsel %vm1615, %v3620, 0
  %v3715 = vsel %vm1615, %v3621, 0
  %v3718 = vsel %vm1615, %v3622, 0
  %v3721 = vsel %vm1615, %v3623, 0
  %v3724 = vsel %vm1615, %v3624, 0
  %v3727 = vsel %vm1615, %v3625, 0
  %v3730 = vsel %vm1615, %v3626, 0
  %3732 = vmatprep.subr.mxu0 0.0
  %3733 = vmatpush1.msra.mxu0 %v3628
  %3734 = vmatprep.subr.mxu0 0.0
  %3735 = vmatpush1.msra.mxu0 %v3629
  %3736 = vmatprep.subr.mxu0 0.0
  %3737 = vmatpush1.msra.mxu0 %v3630
  %3738 = vmatprep.subr.mxu0 0.0
  %3739 = vmatpush1.msra.mxu0 %v3631
  %3740 = vmatprep.subr.mxu0 0.0
  %3741 = vmatpush1.msra.mxu0 %v3632
  %3742 = vmatprep.subr.mxu0 0.0
  %3743 = vmatpush1.msra.mxu0 %v3633
  %3744 = vmatprep.subr.mxu0 0.0
  %3745 = vmatpush1.msra.mxu0 %v3634
  %3746 = vmatprep.subr.mxu0 0.0
  %3747 = vmatpush1.msra.mxu0 %v3635
  %3748 = vmatprep.subr.mxu0 0.0
  %3749 = vmatpush1.msra.mxu0 0.0
  %3750 = vmatprep.subr.mxu0 0.0
  %3751 = vmatpush1.msra.mxu0 0.0
  %3752 = vmatprep.subr.mxu0 0.0
  %3753 = vmatpush1.msra.mxu0 0.0
  %3754 = vmatprep.subr.mxu0 0.0
  %3755 = vmatpush1.msra.mxu0 0.0
  %3756 = vmatprep.subr.mxu0 0.0
  %3757 = vmatpush1.msra.mxu0 0.0
  %3758 = vmatprep.subr.mxu0 0.0
  %3759 = vmatpush1.msra.mxu0 0.0
  %3760 = vmatprep.subr.mxu0 0.0
  %3761 = vmatpush1.msra.mxu0 0.0
  %3762 = vmatprep.subr.mxu0 0.0
  %3763 = vmatpush1.msra.mxu0 0.0
  %3764 = vmatprep.subr.mxu0 0.0
  %3765 = vmatpush1.msra.mxu0 0.0
  %3766 = vmatprep.subr.mxu0 0.0
  %3767 = vmatpush1.msra.mxu0 0.0
  %3768 = vmatprep.subr.mxu0 0.0
  %3769 = vmatpush1.msra.mxu0 0.0
  %3770 = vmatprep.subr.mxu0 0.0
  %3771 = vmatpush1.msra.mxu0 0.0
  %3772 = vmatprep.subr.mxu0 0.0
  %3773 = vmatpush1.msra.mxu0 0.0
  %3774 = vmatprep.subr.mxu0 0.0
  %3775 = vmatpush1.msra.mxu0 0.0
  %3776 = vmatprep.subr.mxu0 0.0
  %3777 = vmatpush1.msra.mxu0 0.0
  %3778 = vmatprep.subr.mxu0 0.0
  %3779 = vmatpush1.msra.mxu0 0.0
  %3780 = vmatprep.subr.mxu0 0.0
  %3781 = vmatpush1.msra.mxu0 0.0
  %3782 = vmatprep.subr.mxu0 0.0
  %3783 = vmatpush1.msra.mxu0 0.0
  %3784 = vmatprep.subr.mxu0 0.0
  %3785 = vmatpush1.msra.mxu0 0.0
  %3786 = vmatprep.subr.mxu0 0.0
  %3787 = vmatpush1.msra.mxu0 0.0
  %3788 = vmatprep.subr.mxu0 0.0
  %3789 = vmatpush1.msra.mxu0 0.0
  %3790 = vmatprep.subr.mxu0 0.0
  %3791 = vmatpush1.msra.mxu0 0.0
  %3792 = vmatprep.subr.mxu0 0.0
  %3793 = vmatpush1.msra.mxu0 0.0
  %3794 = vmatprep.subr.mxu0 0.0
  %3795 = vmatpush1.msra.mxu0 0.0
  %3796 = vmatprep.mubr.f32.mxu0 0.0
  %3797 = vmatmul.mubr.f32.gmra.mrb[0].mxu0 %v3637
  %v3798 = vpop.f32.mrb[0].mxu0
  %v3799 = vadd.f32 0.0, %v3798
  %v3800 = vpop.f32.mrb[0].mxu0
  %3801 = vmatprep.mubr.f32.mxu0 0.0
  %3802 = vmatmul.mubr.f32.gmra.mrb[0].mxu0 %v3640
  %v3803 = vpop.f32.mrb[0].mxu0
  %v3804 = vadd.f32 0.0, %v3803
  %v3805 = vpop.f32.mrb[0].mxu0
  %3806 = vmatprep.mubr.f32.mxu0 0.0
  %3807 = vmatmul.mubr.f32.gmra.mrb[0].mxu0 %v3643
  %v3808 = vpop.f32.mrb[0].mxu0
  %v3809 = vadd.f32 0.0, %v3808
  %v3810 = vpop.f32.mrb[0].mxu0
  %3811 = vmatprep.mubr.f32.mxu0 0.0
  %3812 = vmatmul.mubr.f32.gmra.mrb[0].mxu0 %v3646
  %v3813 = vpop.f32.mrb[0].mxu0
  %v3814 = vadd.f32 0.0, %v3813
  %v3815 = vpop.f32.mrb[0].mxu0
  %3816 = vmatprep.mubr.f32.mxu0 0.0
  %3817 = vmatmul.mubr.f32.gmra.mrb[0].mxu0 %v3649
  %v3818 = vpop.f32.mrb[0].mxu0
  %v3819 = vadd.f32 0.0, %v3818
  %v3820 = vpop.f32.mrb[0].mxu0
  %3821 = vmatprep.mubr.f32.mxu0 0.0
  %3822 = vmatmul.mubr.f32.gmra.mrb[0].mxu0 %v3652
  %v3823 = vpop.f32.mrb[0].mxu0
  %v3824 = vadd.f32 0.0, %v3823
  %v3825 = vpop.f32.mrb[0].mxu0
  %3826 = vmatprep.mubr.f32.mxu0 0.0
  %3827 = vmatmul.mubr.f32.gmra.mrb[0].mxu0 %v3655
  %v3828 = vpop.f32.mrb[0].mxu0
  %v3829 = vadd.f32 0.0, %v3828
  %v3830 = vpop.f32.mrb[0].mxu0
  %3831 = vmatprep.mubr.f32.mxu0 0.0
  %3832 = vmatmul.mubr.f32.gmra.mrb[0].mxu0 %v3658
  %v3833 = vpop.f32.mrb[0].mxu0
  %v3834 = vadd.f32 0.0, %v3833
  %v3835 = vpop.f32.mrb[0].mxu0
  %3836 = vmatprep.mubr.f32.mxu0 0.0
  %3837 = vmatmul.mubr.f32.gmra.mrb[0].mxu0 %v3661
  %v3838 = vpop.f32.mrb[0].mxu0
  %v3839 = vadd.f32 0.0, %v3838
  %v3840 = vpop.f32.mrb[0].mxu0
  %3841 = vmatprep.mubr.f32.mxu0 0.0
  %3842 = vmatmul.mubr.f32.gmra.mrb[0].mxu0 %v3664
  %v3843 = vpop.f32.mrb[0].mxu0
  %v3844 = vadd.f32 0.0, %v3843
  %v3845 = vpop.f32.mrb[0].mxu0
  %3846 = vmatprep.mubr.f32.mxu0 0.0
  %3847 = vmatmul.mubr.f32.gmra.mrb[0].mxu0 %v3667
  %v3848 = vpop.f32.mrb[0].mxu0
  %v3849 = vadd.f32 0.0, %v3848
  %v3850 = vpop.f32.mrb[0].mxu0
  %3851 = vmatprep.mubr.f32.mxu0 0.0
  %3852 = vmatmul.mubr.f32.gmra.mrb[0].mxu0 %v3670
  %v3853 = vpop.f32.mrb[0].mxu0
  %v3854 = vadd.f32 0.0, %v3853
  %v3855 = vpop.f32.mrb[0].mxu0
  %3856 = vmatprep.mubr.f32.mxu0 0.0
  %3857 = vmatmul.mubr.f32.gmra.mrb[0].mxu0 %v3673
  %v3858 = vpop.f32.mrb[0].mxu0
  %v3859 = vadd.f32 0.0, %v3858
  %v3860 = vpop.f32.mrb[0].mxu0
  %3861 = vmatprep.mubr.f32.mxu0 0.0
  %3862 = vmatmul.mubr.f32.gmra.mrb[0].mxu0 %v3676
  %v3863 = vpop.f32.mrb[0].mxu0
  %v3864 = vadd.f32 0.0, %v3863
  %v3865 = vpop.f32.mrb[0].mxu0
  %3866 = vmatprep.mubr.f32.mxu0 0.0
  %3867 = vmatmul.mubr.f32.gmra.mrb[0].mxu0 %v3679
  %v3868 = vpop.f32.mrb[0].mxu0
  %v3869 = vadd.f32 0.0, %v3868
  %v3870 = vpop.f32.mrb[0].mxu0
  %3871 = vmatprep.mubr.f32.mxu0 0.0
  %3872 = vmatmul.mubr.f32.gmra.mrb[0].mxu0 %v3682
  %v3873 = vpop.f32.mrb[0].mxu0
  %v3874 = vadd.f32 0.0, %v3873
  %v3875 = vpop.f32.mrb[0].mxu0
  %3876 = vmatprep.mubr.f32.mxu0 0.0
  %3877 = vmatmul.mubr.f32.gmra.mrb[0].mxu0 %v3685
  %v3878 = vpop.f32.mrb[0].mxu0
  %v3879 = vadd.f32 0.0, %v3878
  %v3880 = vpop.f32.mrb[0].mxu0
  %3881 = vmatprep.mubr.f32.mxu0 0.0
  %3882 = vmatmul.mubr.f32.gmra.mrb[0].mxu0 %v3688
  %v3883 = vpop.f32.mrb[0].mxu0
  %v3884 = vadd.f32 0.0, %v3883
  %v3885 = vpop.f32.mrb[0].mxu0
  %3886 = vmatprep.mubr.f32.mxu0 0.0
  %3887 = vmatmul.mubr.f32.gmra.mrb[0].mxu0 %v3691
  %v3888 = vpop.f32.mrb[0].mxu0
  %v3889 = vadd.f32 0.0, %v3888
  %v3890 = vpop.f32.mrb[0].mxu0
  %3891 = vmatprep.mubr.f32.mxu0 0.0
  %3892 = vmatmul.mubr.f32.gmra.mrb[0].mxu0 %v3694
  %v3893 = vpop.f32.mrb[0].mxu0
  %v3894 = vadd.f32 0.0, %v3893
  %v3895 = vpop.f32.mrb[0].mxu0
  %3896 = vmatprep.mubr.f32.mxu0 0.0
  %3897 = vmatmul.mubr.f32.gmra.mrb[0].mxu0 %v3697
  %v3898 = vpop.f32.mrb[0].mxu0
  %v3899 = vadd.f32 0.0, %v3898
  %v3900 = vpop.f32.mrb[0].mxu0
  %3901 = vmatprep.mubr.f32.mxu0 0.0
  %3902 = vmatmul.mubr.f32.gmra.mrb[0].mxu0 %v3700
  %v3903 = vpop.f32.mrb[0].mxu0
  %v3904 = vadd.f32 0.0, %v3903
  %v3905 = vpop.f32.mrb[0].mxu0
  %3906 = vmatprep.mubr.f32.mxu0 0.0
  %3907 = vmatmul.mubr.f32.gmra.mrb[0].mxu0 %v3703
  %v3908 = vpop.f32.mrb[0].mxu0
  %v3909 = vadd.f32 0.0, %v3908
  %v3910 = vpop.f32.mrb[0].mxu0
  %3911 = vmatprep.mubr.f32.mxu0 0.0
  %3912 = vmatmul.mubr.f32.gmra.mrb[0].mxu0 %v3706
  %v3913 = vpop.f32.mrb[0].mxu0
  %v3914 = vadd.f32 0.0, %v3913
  %v3915 = vpop.f32.mrb[0].mxu0
  %3916 = vmatprep.mubr.f32.mxu0 0.0
  %3917 = vmatmul.mubr.f32.gmra.mrb[0].mxu0 %v3709
  %v3918 = vpop.f32.mrb[0].mxu0
  %v3919 = vadd.f32 0.0, %v3918
  %v3920 = vpop.f32.mrb[0].mxu0
  %3921 = vmatprep.mubr.f32.mxu0 0.0
  %3922 = vmatmul.mubr.f32.gmra.mrb[0].mxu0 %v3712
  %v3923 = vpop.f32.mrb[0].mxu0
  %v3924 = vadd.f32 0.0, %v3923
  %v3925 = vpop.f32.mrb[0].mxu0
  %3926 = vmatprep.mubr.f32.mxu0 0.0
  %3927 = vmatmul.mubr.f32.gmra.mrb[0].mxu0 %v3715
  %v3928 = vpop.f32.mrb[0].mxu0
  %v3929 = vadd.f32 0.0, %v3928
  %v3930 = vpop.f32.mrb[0].mxu0
  %3931 = vmatprep.mubr.f32.mxu0 0.0
  %3932 = vmatmul.mubr.f32.gmra.mrb[0].mxu0 %v3718
  %v3933 = vpop.f32.mrb[0].mxu0
  %v3934 = vadd.f32 0.0, %v3933
  %v3935 = vpop.f32.mrb[0].mxu0
  %3936 = vmatprep.mubr.f32.mxu0 0.0
  %3937 = vmatmul.mubr.f32.gmra.mrb[0].mxu0 %v3721
  %v3938 = vpop.f32.mrb[0].mxu0
  %v3939 = vadd.f32 0.0, %v3938
  %v3940 = vpop.f32.mrb[0].mxu0
  %3941 = vmatprep.mubr.f32.mxu0 0.0
  %3942 = vmatmul.mubr.f32.gmra.mrb[0].mxu0 %v3724
  %v3943 = vpop.f32.mrb[0].mxu0
  %v3944 = vadd.f32 0.0, %v3943
  %v3945 = vpop.f32.mrb[0].mxu0
  %3946 = vmatprep.mubr.f32.mxu0 0.0
  %3947 = vmatmul.mubr.f32.gmra.mrb[0].mxu0 %v3727
  %v3948 = vpop.f32.mrb[0].mxu0
  %v3949 = vadd.f32 0.0, %v3948
  %v3950 = vpop.f32.mrb[0].mxu0
  %3951 = vmatprep.mubr.f32.mxu0 0.0
  %3952 = vmatmul.mubr.f32.gmra.mrb[0].mxu0 %v3730
  %v3953 = vpop.f32.mrb[0].mxu0
  %v3954 = vadd.f32 0.0, %v3953
  %v3955 = vpop.f32.mrb[0].mxu0
  %3956 = vdwg.mxu0
  %3989 = vset.pattern.permute.xlu0 0
  %3990 = vperm.xlu0 %3989, %v3799
  %v3991 = vpop.permute.xlu0 %3990
  %3992 = vset.pattern.permute.xlu0 0
  %3993 = vperm.xlu0 %3992, %v3804
  %v3994 = vpop.permute.xlu0 %3993
  %3995 = vset.pattern.permute.xlu0 0
  %3996 = vperm.xlu0 %3995, %v3809
  %v3997 = vpop.permute.xlu0 %3996
  %3998 = vset.pattern.permute.xlu0 0
  %3999 = vperm.xlu0 %3998, %v3814
  %v4000 = vpop.permute.xlu0 %3999
  %4001 = vset.pattern.permute.xlu0 0
  %4002 = vperm.xlu0 %4001, %v3819
  %v4003 = vpop.permute.xlu0 %4002
  %4004 = vset.pattern.permute.xlu0 0
  %4005 = vperm.xlu0 %4004, %v3824
  %v4006 = vpop.permute.xlu0 %4005
  %4007 = vset.pattern.permute.xlu0 0
  %4008 = vperm.xlu0 %4007, %v3829
  %v4009 = vpop.permute.xlu0 %4008
  %4010 = vset.pattern.permute.xlu0 0
  %4011 = vperm.xlu0 %4010, %v3834
  %v4012 = vpop.permute.xlu0 %4011
  %4013 = vset.pattern.permute.xlu0 0
  %4014 = vperm.xlu0 %4013, %v3839
  %v4015 = vpop.permute.xlu0 %4014
  %4016 = vset.pattern.permute.xlu0 0
  %4017 = vperm.xlu0 %4016, %v3844
  %v4018 = vpop.permute.xlu0 %4017
  %4019 = vset.pattern.permute.xlu0 0
  %4020 = vperm.xlu0 %4019, %v3849
  %v4021 = vpop.permute.xlu0 %4020
  %4022 = vset.pattern.permute.xlu0 0
  %4023 = vperm.xlu0 %4022, %v3854
  %v4024 = vpop.permute.xlu0 %4023
  %4025 = vset.pattern.permute.xlu0 0
  %4026 = vperm.xlu0 %4025, %v3859
  %v4027 = vpop.permute.xlu0 %4026
  %4028 = vset.pattern.permute.xlu0 0
  %4029 = vperm.xlu0 %4028, %v3864
  %v4030 = vpop.permute.xlu0 %4029
  %4031 = vset.pattern.permute.xlu0 0
  %4032 = vperm.xlu0 %4031, %v3869
  %v4033 = vpop.permute.xlu0 %4032
  %4034 = vset.pattern.permute.xlu0 0
  %4035 = vperm.xlu0 %4034, %v3874
  %v4036 = vpop.permute.xlu0 %4035
  %4037 = vset.pattern.permute.xlu0 0
  %4038 = vperm.xlu0 %4037, %v3879
  %v4039 = vpop.permute.xlu0 %4038
  %4040 = vset.pattern.permute.xlu0 0
  %4041 = vperm.xlu0 %4040, %v3884
  %v4042 = vpop.permute.xlu0 %4041
  %4043 = vset.pattern.permute.xlu0 0
  %4044 = vperm.xlu0 %4043, %v3889
  %v4045 = vpop.permute.xlu0 %4044
  %4046 = vset.pattern.permute.xlu0 0
  %4047 = vperm.xlu0 %4046, %v3894
  %v4048 = vpop.permute.xlu0 %4047
  %4049 = vset.pattern.permute.xlu0 0
  %4050 = vperm.xlu0 %4049, %v3899
  %v4051 = vpop.permute.xlu0 %4050
  %4052 = vset.pattern.permute.xlu0 0
  %4053 = vperm.xlu0 %4052, %v3904
  %v4054 = vpop.permute.xlu0 %4053
  %4055 = vset.pattern.permute.xlu0 0
  %4056 = vperm.xlu0 %4055, %v3909
  %v4057 = vpop.permute.xlu0 %4056
  %4058 = vset.pattern.permute.xlu0 0
  %4059 = vperm.xlu0 %4058, %v3914
  %v4060 = vpop.permute.xlu0 %4059
  %4061 = vset.pattern.permute.xlu0 0
  %4062 = vperm.xlu0 %4061, %v3919
  %v4063 = vpop.permute.xlu0 %4062
  %4064 = vset.pattern.permute.xlu0 0
  %4065 = vperm.xlu0 %4064, %v3924
  %v4066 = vpop.permute.xlu0 %4065
  %4067 = vset.pattern.permute.xlu0 0
  %4068 = vperm.xlu0 %4067, %v3929
  %v4069 = vpop.permute.xlu0 %4068
  %4070 = vset.pattern.permute.xlu0 0
  %4071 = vperm.xlu0 %4070, %v3934
  %v4072 = vpop.permute.xlu0 %4071
  %4073 = vset.pattern.permute.xlu0 0
  %4074 = vperm.xlu0 %4073, %v3939
  %v4075 = vpop.permute.xlu0 %4074
  %4076 = vset.pattern.permute.xlu0 0
  %4077 = vperm.xlu0 %4076, %v3944
  %v4078 = vpop.permute.xlu0 %4077
  %4079 = vset.pattern.permute.xlu0 0
  %4080 = vperm.xlu0 %4079, %v3949
  %v4081 = vpop.permute.xlu0 %4080
  %4082 = vset.pattern.permute.xlu0 0
  %4083 = vperm.xlu0 %4082, %v3954
  %v4084 = vpop.permute.xlu0 %4083
  %v4085 = vlaneseq
  %v4086 = vshrl.u32 %v4085, 7
  %v4087 = vsub.s32 %v2066, %v4086
  %v4088 = vrot.slane %v3991, %v4087
  %v4089 = vlaneseq
  %v4090 = vshrl.u32 %v4089, 7
  %v4091 = vsub.s32 %v2071, %v4090
  %v4092 = vrot.slane %v3994, %v4091
  %v4093 = vsel %vm2076, %v4092, %v4088
  %v4094 = vlaneseq
  %v4095 = vshrl.u32 %v4094, 7
  %v4096 = vsub.s32 %v2066, %v4095
  %v4097 = vrot.slane %v3997, %v4096
  %v4098 = vlaneseq
  %v4099 = vshrl.u32 %v4098, 7
  %v4100 = vsub.s32 %v2071, %v4099
  %v4101 = vrot.slane %v4000, %v4100
  %v4102 = vsel %vm2076, %v4101, %v4097
  %v4103 = vlaneseq
  %v4104 = vshrl.u32 %v4103, 7
  %v4105 = vsub.s32 %v2066, %v4104
  %v4106 = vrot.slane %v4003, %v4105
  %v4107 = vlaneseq
  %v4108 = vshrl.u32 %v4107, 7
  %v4109 = vsub.s32 %v2071, %v4108
  %v4110 = vrot.slane %v4006, %v4109
  %v4111 = vsel %vm2076, %v4110, %v4106
  %v4112 = vlaneseq
  %v4113 = vshrl.u32 %v4112, 7
  %v4114 = vsub.s32 %v2066, %v4113
  %v4115 = vrot.slane %v4009, %v4114
  %v4116 = vlaneseq
  %v4117 = vshrl.u32 %v4116, 7
  %v4118 = vsub.s32 %v2071, %v4117
  %v4119 = vrot.slane %v4012, %v4118
  %v4120 = vsel %vm2076, %v4119, %v4115
  %v4121 = vlaneseq
  %v4122 = vshrl.u32 %v4121, 7
  %v4123 = vsub.s32 %v2066, %v4122
  %v4124 = vrot.slane %v4015, %v4123
  %v4125 = vlaneseq
  %v4126 = vshrl.u32 %v4125, 7
  %v4127 = vsub.s32 %v2071, %v4126
  %v4128 = vrot.slane %v4018, %v4127
  %v4129 = vsel %vm2076, %v4128, %v4124
  %v4130 = vlaneseq
  %v4131 = vshrl.u32 %v4130, 7
  %v4132 = vsub.s32 %v2066, %v4131
  %v4133 = vrot.slane %v4021, %v4132
  %v4134 = vlaneseq
  %v4135 = vshrl.u32 %v4134, 7
  %v4136 = vsub.s32 %v2071, %v4135
  %v4137 = vrot.slane %v4024, %v4136
  %v4138 = vsel %vm2076, %v4137, %v4133
  %v4139 = vlaneseq
  %v4140 = vshrl.u32 %v4139, 7
  %v4141 = vsub.s32 %v2066, %v4140
  %v4142 = vrot.slane %v4027, %v4141
  %v4143 = vlaneseq
  %v4144 = vshrl.u32 %v4143, 7
  %v4145 = vsub.s32 %v2071, %v4144
  %v4146 = vrot.slane %v4030, %v4145
  %v4147 = vsel %vm2076, %v4146, %v4142
  %v4148 = vlaneseq
  %v4149 = vshrl.u32 %v4148, 7
  %v4150 = vsub.s32 %v2066, %v4149
  %v4151 = vrot.slane %v4033, %v4150
  %v4152 = vlaneseq
  %v4153 = vshrl.u32 %v4152, 7
  %v4154 = vsub.s32 %v2071, %v4153
  %v4155 = vrot.slane %v4036, %v4154
  %v4156 = vsel %vm2076, %v4155, %v4151
  %v4157 = vlaneseq
  %v4158 = vshrl.u32 %v4157, 7
  %v4159 = vsub.s32 %v2066, %v4158
  %v4160 = vrot.slane %v4039, %v4159
  %v4161 = vlaneseq
  %v4162 = vshrl.u32 %v4161, 7
  %v4163 = vsub.s32 %v2071, %v4162
  %v4164 = vrot.slane %v4042, %v4163
  %v4165 = vsel %vm2076, %v4164, %v4160
  %v4166 = vlaneseq
  %v4167 = vshrl.u32 %v4166, 7
  %v4168 = vsub.s32 %v2066, %v4167
  %v4169 = vrot.slane %v4045, %v4168
  %v4170 = vlaneseq
  %v4171 = vshrl.u32 %v4170, 7
  %v4172 = vsub.s32 %v2071, %v4171
  %v4173 = vrot.slane %v4048, %v4172
  %v4174 = vsel %vm2076, %v4173, %v4169
  %v4175 = vlaneseq
  %v4176 = vshrl.u32 %v4175, 7
  %v4177 = vsub.s32 %v2066, %v4176
  %v4178 = vrot.slane %v4051, %v4177
  %v4179 = vlaneseq
  %v4180 = vshrl.u32 %v4179, 7
  %v4181 = vsub.s32 %v2071, %v4180
  %v4182 = vrot.slane %v4054, %v4181
  %v4183 = vsel %vm2076, %v4182, %v4178
  %v4184 = vlaneseq
  %v4185 = vshrl.u32 %v4184, 7
  %v4186 = vsub.s32 %v2066, %v4185
  %v4187 = vrot.slane %v4057, %v4186
  %v4188 = vlaneseq
  %v4189 = vshrl.u32 %v4188, 7
  %v4190 = vsub.s32 %v2071, %v4189
  %v4191 = vrot.slane %v4060, %v4190
  %v4192 = vsel %vm2076, %v4191, %v4187
  %v4193 = vlaneseq
  %v4194 = vshrl.u32 %v4193, 7
  %v4195 = vsub.s32 %v2066, %v4194
  %v4196 = vrot.slane %v4063, %v4195
  %v4197 = vlaneseq
  %v4198 = vshrl.u32 %v4197, 7
  %v4199 = vsub.s32 %v2071, %v4198
  %v4200 = vrot.slane %v4066, %v4199
  %v4201 = vsel %vm2076, %v4200, %v4196
  %v4202 = vlaneseq
  %v4203 = vshrl.u32 %v4202, 7
  %v4204 = vsub.s32 %v2066, %v4203
  %v4205 = vrot.slane %v4069, %v4204
  %v4206 = vlaneseq
  %v4207 = vshrl.u32 %v4206, 7
  %v4208 = vsub.s32 %v2071, %v4207
  %v4209 = vrot.slane %v4072, %v4208
  %v4210 = vsel %vm2076, %v4209, %v4205
  %v4211 = vlaneseq
  %v4212 = vshrl.u32 %v4211, 7
  %v4213 = vsub.s32 %v2066, %v4212
  %v4214 = vrot.slane %v4075, %v4213
  %v4215 = vlaneseq
  %v4216 = vshrl.u32 %v4215, 7
  %v4217 = vsub.s32 %v2071, %v4216
  %v4218 = vrot.slane %v4078, %v4217
  %v4219 = vsel %vm2076, %v4218, %v4214
  %v4220 = vlaneseq
  %v4221 = vshrl.u32 %v4220, 7
  %v4222 = vsub.s32 %v2066, %v4221
  %v4223 = vrot.slane %v4081, %v4222
  %v4224 = vlaneseq
  %v4225 = vshrl.u32 %v4224, 7
  %v4226 = vsub.s32 %v2071, %v4225
  %v4227 = vrot.slane %v4084, %v4226
  %v4228 = vsel %vm2076, %v4227, %v4223
  %v4229 = vsel %vm2213, %v4102, %v4093
  %v4230 = vsel %vm2215, %v4111, %v4229
  %v4231 = vsel %vm2217, %v4120, %v4230
  %v4232 = vsel %vm2219, %v4129, %v4231
  %v4233 = vsel %vm2221, %v4138, %v4232
  %v4234 = vsel %vm2223, %v4147, %v4233
  %v4235 = vsel %vm2225, %v4156, %v4234
  %v4236 = vsel %vm2213, %v4174, %v4165
  %v4237 = vsel %vm2215, %v4183, %v4236
  %v4238 = vsel %vm2217, %v4192, %v4237
  %v4239 = vsel %vm2219, %v4201, %v4238
  %v4240 = vsel %vm2221, %v4210, %v4239
  %v4241 = vsel %vm2223, %v4219, %v4240
  %v4242 = vsel %vm2225, %v4228, %v4241
  %4245 = vset.pattern.permute.xlu0 1
  %4246 = vperm.xlu0 %4245, %v3799
  %v4247 = vpop.permute.xlu0 %4246
  %4248 = vset.pattern.permute.xlu0 1
  %4249 = vperm.xlu0 %4248, %v3804
  %v4250 = vpop.permute.xlu0 %4249
  %4251 = vset.pattern.permute.xlu0 1
  %4252 = vperm.xlu0 %4251, %v3809
  %v4253 = vpop.permute.xlu0 %4252
  %4254 = vset.pattern.permute.xlu0 1
  %4255 = vperm.xlu0 %4254, %v3814
  %v4256 = vpop.permute.xlu0 %4255
  %4257 = vset.pattern.permute.xlu0 1
  %4258 = vperm.xlu0 %4257, %v3819
  %v4259 = vpop.permute.xlu0 %4258
  %4260 = vset.pattern.permute.xlu0 1
  %4261 = vperm.xlu0 %4260, %v3824
  %v4262 = vpop.permute.xlu0 %4261
  %4263 = vset.pattern.permute.xlu0 1
  %4264 = vperm.xlu0 %4263, %v3829
  %v4265 = vpop.permute.xlu0 %4264
  %4266 = vset.pattern.permute.xlu0 1
  %4267 = vperm.xlu0 %4266, %v3834
  %v4268 = vpop.permute.xlu0 %4267
  %4269 = vset.pattern.permute.xlu0 1
  %4270 = vperm.xlu0 %4269, %v3839
  %v4271 = vpop.permute.xlu0 %4270
  %4272 = vset.pattern.permute.xlu0 1
  %4273 = vperm.xlu0 %4272, %v3844
  %v4274 = vpop.permute.xlu0 %4273
  %4275 = vset.pattern.permute.xlu0 1
  %4276 = vperm.xlu0 %4275, %v3849
  %v4277 = vpop.permute.xlu0 %4276
  %4278 = vset.pattern.permute.xlu0 1
  %4279 = vperm.xlu0 %4278, %v3854
  %v4280 = vpop.permute.xlu0 %4279
  %4281 = vset.pattern.permute.xlu0 1
  %4282 = vperm.xlu0 %4281, %v3859
  %v4283 = vpop.permute.xlu0 %4282
  %4284 = vset.pattern.permute.xlu0 1
  %4285 = vperm.xlu0 %4284, %v3864
  %v4286 = vpop.permute.xlu0 %4285
  %4287 = vset.pattern.permute.xlu0 1
  %4288 = vperm.xlu0 %4287, %v3869
  %v4289 = vpop.permute.xlu0 %4288
  %4290 = vset.pattern.permute.xlu0 1
  %4291 = vperm.xlu0 %4290, %v3874
  %v4292 = vpop.permute.xlu0 %4291
  %4293 = vset.pattern.permute.xlu0 1
  %4294 = vperm.xlu0 %4293, %v3879
  %v4295 = vpop.permute.xlu0 %4294
  %4296 = vset.pattern.permute.xlu0 1
  %4297 = vperm.xlu0 %4296, %v3884
  %v4298 = vpop.permute.xlu0 %4297
  %4299 = vset.pattern.permute.xlu0 1
  %4300 = vperm.xlu0 %4299, %v3889
  %v4301 = vpop.permute.xlu0 %4300
  %4302 = vset.pattern.permute.xlu0 1
  %4303 = vperm.xlu0 %4302, %v3894
  %v4304 = vpop.permute.xlu0 %4303
  %4305 = vset.pattern.permute.xlu0 1
  %4306 = vperm.xlu0 %4305, %v3899
  %v4307 = vpop.permute.xlu0 %4306
  %4308 = vset.pattern.permute.xlu0 1
  %4309 = vperm.xlu0 %4308, %v3904
  %v4310 = vpop.permute.xlu0 %4309
  %4311 = vset.pattern.permute.xlu0 1
  %4312 = vperm.xlu0 %4311, %v3909
  %v4313 = vpop.permute.xlu0 %4312
  %4314 = vset.pattern.permute.xlu0 1
  %4315 = vperm.xlu0 %4314, %v3914
  %v4316 = vpop.permute.xlu0 %4315
  %4317 = vset.pattern.permute.xlu0 1
  %4318 = vperm.xlu0 %4317, %v3919
  %v4319 = vpop.permute.xlu0 %4318
  %4320 = vset.pattern.permute.xlu0 1
  %4321 = vperm.xlu0 %4320, %v3924
  %v4322 = vpop.permute.xlu0 %4321
  %4323 = vset.pattern.permute.xlu0 1
  %4324 = vperm.xlu0 %4323, %v3929
  %v4325 = vpop.permute.xlu0 %4324
  %4326 = vset.pattern.permute.xlu0 1
  %4327 = vperm.xlu0 %4326, %v3934
  %v4328 = vpop.permute.xlu0 %4327
  %4329 = vset.pattern.permute.xlu0 1
  %4330 = vperm.xlu0 %4329, %v3939
  %v4331 = vpop.permute.xlu0 %4330
  %4332 = vset.pattern.permute.xlu0 1
  %4333 = vperm.xlu0 %4332, %v3944
  %v4334 = vpop.permute.xlu0 %4333
  %4335 = vset.pattern.permute.xlu0 1
  %4336 = vperm.xlu0 %4335, %v3949
  %v4337 = vpop.permute.xlu0 %4336
  %4338 = vset.pattern.permute.xlu0 1
  %4339 = vperm.xlu0 %4338, %v3954
  %v4340 = vpop.permute.xlu0 %4339
  %v4341 = vlaneseq
  %v4342 = vshrl.u32 %v4341, 7
  %v4343 = vsub.s32 %v2066, %v4342
  %v4344 = vrot.slane %v4247, %v4343
  %v4345 = vlaneseq
  %v4346 = vshrl.u32 %v4345, 7
  %v4347 = vsub.s32 %v2071, %v4346
  %v4348 = vrot.slane %v4250, %v4347
  %v4349 = vsel %vm2076, %v4348, %v4344
  %v4350 = vlaneseq
  %v4351 = vshrl.u32 %v4350, 7
  %v4352 = vsub.s32 %v2066, %v4351
  %v4353 = vrot.slane %v4253, %v4352
  %v4354 = vlaneseq
  %v4355 = vshrl.u32 %v4354, 7
  %v4356 = vsub.s32 %v2071, %v4355
  %v4357 = vrot.slane %v4256, %v4356
  %v4358 = vsel %vm2076, %v4357, %v4353
  %v4359 = vlaneseq
  %v4360 = vshrl.u32 %v4359, 7
  %v4361 = vsub.s32 %v2066, %v4360
  %v4362 = vrot.slane %v4259, %v4361
  %v4363 = vlaneseq
  %v4364 = vshrl.u32 %v4363, 7
  %v4365 = vsub.s32 %v2071, %v4364
  %v4366 = vrot.slane %v4262, %v4365
  %v4367 = vsel %vm2076, %v4366, %v4362
  %v4368 = vlaneseq
  %v4369 = vshrl.u32 %v4368, 7
  %v4370 = vsub.s32 %v2066, %v4369
  %v4371 = vrot.slane %v4265, %v4370
  %v4372 = vlaneseq
  %v4373 = vshrl.u32 %v4372, 7
  %v4374 = vsub.s32 %v2071, %v4373
  %v4375 = vrot.slane %v4268, %v4374
  %v4376 = vsel %vm2076, %v4375, %v4371
  %v4377 = vlaneseq
  %v4378 = vshrl.u32 %v4377, 7
  %v4379 = vsub.s32 %v2066, %v4378
  %v4380 = vrot.slane %v4271, %v4379
  %v4381 = vlaneseq
  %v4382 = vshrl.u32 %v4381, 7
  %v4383 = vsub.s32 %v2071, %v4382
  %v4384 = vrot.slane %v4274, %v4383
  %v4385 = vsel %vm2076, %v4384, %v4380
  %v4386 = vlaneseq
  %v4387 = vshrl.u32 %v4386, 7
  %v4388 = vsub.s32 %v2066, %v4387
  %v4389 = vrot.slane %v4277, %v4388
  %v4390 = vlaneseq
  %v4391 = vshrl.u32 %v4390, 7
  %v4392 = vsub.s32 %v2071, %v4391
  %v4393 = vrot.slane %v4280, %v4392
  %v4394 = vsel %vm2076, %v4393, %v4389
  %v4395 = vlaneseq
  %v4396 = vshrl.u32 %v4395, 7
  %v4397 = vsub.s32 %v2066, %v4396
  %v4398 = vrot.slane %v4283, %v4397
  %v4399 = vlaneseq
  %v4400 = vshrl.u32 %v4399, 7
  %v4401 = vsub.s32 %v2071, %v4400
  %v4402 = vrot.slane %v4286, %v4401
  %v4403 = vsel %vm2076, %v4402, %v4398
  %v4404 = vlaneseq
  %v4405 = vshrl.u32 %v4404, 7
  %v4406 = vsub.s32 %v2066, %v4405
  %v4407 = vrot.slane %v4289, %v4406
  %v4408 = vlaneseq
  %v4409 = vshrl.u32 %v4408, 7
  %v4410 = vsub.s32 %v2071, %v4409
  %v4411 = vrot.slane %v4292, %v4410
  %v4412 = vsel %vm2076, %v4411, %v4407
  %v4413 = vlaneseq
  %v4414 = vshrl.u32 %v4413, 7
  %v4415 = vsub.s32 %v2066, %v4414
  %v4416 = vrot.slane %v4295, %v4415
  %v4417 = vlaneseq
  %v4418 = vshrl.u32 %v4417, 7
  %v4419 = vsub.s32 %v2071, %v4418
  %v4420 = vrot.slane %v4298, %v4419
  %v4421 = vsel %vm2076, %v4420, %v4416
  %v4422 = vlaneseq
  %v4423 = vshrl.u32 %v4422, 7
  %v4424 = vsub.s32 %v2066, %v4423
  %v4425 = vrot.slane %v4301, %v4424
  %v4426 = vlaneseq
  %v4427 = vshrl.u32 %v4426, 7
  %v4428 = vsub.s32 %v2071, %v4427
  %v4429 = vrot.slane %v4304, %v4428
  %v4430 = vsel %vm2076, %v4429, %v4425
  %v4431 = vlaneseq
  %v4432 = vshrl.u32 %v4431, 7
  %v4433 = vsub.s32 %v2066, %v4432
  %v4434 = vrot.slane %v4307, %v4433
  %v4435 = vlaneseq
  %v4436 = vshrl.u32 %v4435, 7
  %v4437 = vsub.s32 %v2071, %v4436
  %v4438 = vrot.slane %v4310, %v4437
  %v4439 = vsel %vm2076, %v4438, %v4434
  %v4440 = vlaneseq
  %v4441 = vshrl.u32 %v4440, 7
  %v4442 = vsub.s32 %v2066, %v4441
  %v4443 = vrot.slane %v4313, %v4442
  %v4444 = vlaneseq
  %v4445 = vshrl.u32 %v4444, 7
  %v4446 = vsub.s32 %v2071, %v4445
  %v4447 = vrot.slane %v4316, %v4446
  %v4448 = vsel %vm2076, %v4447, %v4443
  %v4449 = vlaneseq
  %v4450 = vshrl.u32 %v4449, 7
  %v4451 = vsub.s32 %v2066, %v4450
  %v4452 = vrot.slane %v4319, %v4451
  %v4453 = vlaneseq
  %v4454 = vshrl.u32 %v4453, 7
  %v4455 = vsub.s32 %v2071, %v4454
  %v4456 = vrot.slane %v4322, %v4455
  %v4457 = vsel %vm2076, %v4456, %v4452
  %v4458 = vlaneseq
  %v4459 = vshrl.u32 %v4458, 7
  %v4460 = vsub.s32 %v2066, %v4459
  %v4461 = vrot.slane %v4325, %v4460
  %v4462 = vlaneseq
  %v4463 = vshrl.u32 %v4462, 7
  %v4464 = vsub.s32 %v2071, %v4463
  %v4465 = vrot.slane %v4328, %v4464
  %v4466 = vsel %vm2076, %v4465, %v4461
  %v4467 = vlaneseq
  %v4468 = vshrl.u32 %v4467, 7
  %v4469 = vsub.s32 %v2066, %v4468
  %v4470 = vrot.slane %v4331, %v4469
  %v4471 = vlaneseq
  %v4472 = vshrl.u32 %v4471, 7
  %v4473 = vsub.s32 %v2071, %v4472
  %v4474 = vrot.slane %v4334, %v4473
  %v4475 = vsel %vm2076, %v4474, %v4470
  %v4476 = vlaneseq
  %v4477 = vshrl.u32 %v4476, 7
  %v4478 = vsub.s32 %v2066, %v4477
  %v4479 = vrot.slane %v4337, %v4478
  %v4480 = vlaneseq
  %v4481 = vshrl.u32 %v4480, 7
  %v4482 = vsub.s32 %v2071, %v4481
  %v4483 = vrot.slane %v4340, %v4482
  %v4484 = vsel %vm2076, %v4483, %v4479
  %v4485 = vsel %vm2213, %v4358, %v4349
  %v4486 = vsel %vm2215, %v4367, %v4485
  %v4487 = vsel %vm2217, %v4376, %v4486
  %v4488 = vsel %vm2219, %v4385, %v4487
  %v4489 = vsel %vm2221, %v4394, %v4488
  %v4490 = vsel %vm2223, %v4403, %v4489
  %v4491 = vsel %vm2225, %v4412, %v4490
  %v4492 = vsel %vm2213, %v4430, %v4421
  %v4493 = vsel %vm2215, %v4439, %v4492
  %v4494 = vsel %vm2217, %v4448, %v4493
  %v4495 = vsel %vm2219, %v4457, %v4494
  %v4496 = vsel %vm2221, %v4466, %v4495
  %v4497 = vsel %vm2223, %v4475, %v4496
  %v4498 = vsel %vm2225, %v4484, %v4497
  %v4501 = vsel %vm713, %v4235, -1e+30
  %v4502 = vsel %vm714, %v4242, -1e+30
  %v4503 = vsel %vm713, %v4491, -1e+30
  %v4504 = vsel %vm714, %v4498, -1e+30
  %v4505 = vsel %vm2496, %v4501, -inf
  %4506 = vmax.xlane.f32.xlu0 %v4505
  %v4507 = vpop.xlane.xlu0 %4506
  %v4508 = vsel %vm2496, %v4502, -inf
  %4509 = vmax.xlane.f32.xlu0 %v4508
  %v4510 = vpop.xlane.xlu0 %4509
  %v4511 = vsel %vm2496, %v4503, -inf
  %4512 = vmax.xlane.f32.xlu0 %v4511
  %v4513 = vpop.xlane.xlu0 %4512
  %v4514 = vsel %vm2496, %v4504, -inf
  %4515 = vmax.xlane.f32.xlu0 %v4514
  %v4516 = vpop.xlane.xlu0 %4515
  %v4517 = vsub.f32 %v4501, %v4507
  %v4518 = vsub.f32 %v4502, %v4510
  %v4519 = vsub.f32 %v4503, %v4513
  %v4520 = vsub.f32 %v4504, %v4516
  %v4521 = vmul.f32 %v4517, 1.442695
  %v4522 = vpow.pop %v4521
  %v4523 = vmul.f32 %v4518, 1.442695
  %v4524 = vpow.pop %v4523
  %v4525 = vmul.f32 %v4519, 1.442695
  %v4526 = vpow.pop %v4525
  %v4527 = vmul.f32 %v4520, 1.442695
  %v4528 = vpow.pop %v4527
  %v4529 = vmul.f32 %v4522, %v711
  %v4530 = vmul.f32 %v4524, %v712
  %v4531 = vmul.f32 %v4526, %v711
  %v4532 = vmul.f32 %v4528, %v712
  %v4533 = vsel %vm2496, %v4529, 0.0
  %4534 = vadd.xlane.f32.xlu0 %v4533
  %v4535 = vpop.xlane.xlu0 %4534
  %v4536 = vsel %vm2496, %v4530, 0.0
  %4537 = vadd.xlane.f32.xlu0 %v4536
  %v4538 = vpop.xlane.xlu0 %4537
  %v4539 = vsel %vm2496, %v4531, 0.0
  %4540 = vadd.xlane.f32.xlu0 %v4539
  %v4541 = vpop.xlane.xlu0 %4540
  %v4542 = vsel %vm2496, %v4532, 0.0
  %4543 = vadd.xlane.f32.xlu0 %v4542
  %v4544 = vpop.xlane.xlu0 %4543
  %vm4545 = vcmp.gt.f32.partialorder %v4535, 0.0
  %vm4546 = vcmp.gt.f32.partialorder %v4538, 0.0
  %vm4547 = vcmp.gt.f32.partialorder %v4541, 0.0
  %vm4548 = vcmp.gt.f32.partialorder %v4544, 0.0
  %v4549 = vsel %vm4545, %v4535, 1.0
  %v4550 = vsel %vm4546, %v4538, 1.0
  %v4551 = vsel %vm4547, %v4541, 1.0
  %v4552 = vsel %vm4548, %v4544, 1.0
  %v4553 = vrcp.pop %v4549
  %v4554 = vrcp.pop %v4550
  %v4555 = vrcp.pop %v4551
  %v4556 = vrcp.pop %v4552
  %v4557 = vmul.f32 %v4529, %v4553
  %v4558 = vmul.f32 %v4530, %v4554
  %v4559 = vmul.f32 %v4531, %v4555
  %v4560 = vmul.f32 %v4532, %v4556
  %v4562 = vsel %vm2496, %v4559, 0
  %v4565 = vsel %vm2496, %v4560, 0
  %4567 = vmatprep.subr.mxu0 0.0
  %4568 = vmatpush1.msra.mxu0 %v3009
  %4569 = vmatprep.subr.mxu0 0.0
  %4570 = vmatpush1.msra.mxu0 %v3015
  %4571 = vmatprep.subr.mxu0 0.0
  %4572 = vmatpush1.msra.mxu0 0.0
  %4573 = vmatprep.subr.mxu0 0.0
  %4574 = vmatpush1.msra.mxu0 0.0
  %4575 = vmatprep.subr.mxu0 0.0
  %4576 = vmatpush1.msra.mxu0 0.0
  %4577 = vmatprep.subr.mxu0 0.0
  %4578 = vmatpush1.msra.mxu0 0.0
  %4579 = vmatprep.subr.mxu0 0.0
  %4580 = vmatpush1.msra.mxu0 0.0
  %4581 = vmatprep.subr.mxu0 0.0
  %4582 = vmatpush1.msra.mxu0 0.0
  %4583 = vmatprep.subr.mxu0 0.0
  %4584 = vmatpush1.msra.mxu0 0.0
  %4585 = vmatprep.subr.mxu0 0.0
  %4586 = vmatpush1.msra.mxu0 0.0
  %4587 = vmatprep.subr.mxu0 0.0
  %4588 = vmatpush1.msra.mxu0 0.0
  %4589 = vmatprep.subr.mxu0 0.0
  %4590 = vmatpush1.msra.mxu0 0.0
  %4591 = vmatprep.subr.mxu0 0.0
  %4592 = vmatpush1.msra.mxu0 0.0
  %4593 = vmatprep.subr.mxu0 0.0
  %4594 = vmatpush1.msra.mxu0 0.0
  %4595 = vmatprep.subr.mxu0 0.0
  %4596 = vmatpush1.msra.mxu0 0.0
  %4597 = vmatprep.subr.mxu0 0.0
  %4598 = vmatpush1.msra.mxu0 0.0
  %4599 = vmatprep.subr.mxu0 0.0
  %4600 = vmatpush1.msra.mxu0 0.0
  %4601 = vmatprep.subr.mxu0 0.0
  %4602 = vmatpush1.msra.mxu0 0.0
  %4603 = vmatprep.subr.mxu0 0.0
  %4604 = vmatpush1.msra.mxu0 0.0
  %4605 = vmatprep.subr.mxu0 0.0
  %4606 = vmatpush1.msra.mxu0 0.0
  %4607 = vmatprep.subr.mxu0 0.0
  %4608 = vmatpush1.msra.mxu0 0.0
  %4609 = vmatprep.subr.mxu0 0.0
  %4610 = vmatpush1.msra.mxu0 0.0
  %4611 = vmatprep.subr.mxu0 0.0
  %4612 = vmatpush1.msra.mxu0 0.0
  %4613 = vmatprep.subr.mxu0 0.0
  %4614 = vmatpush1.msra.mxu0 0.0
  %4615 = vmatprep.subr.mxu0 0.0
  %4616 = vmatpush1.msra.mxu0 0.0
  %4617 = vmatprep.subr.mxu0 0.0
  %4618 = vmatpush1.msra.mxu0 0.0
  %4619 = vmatprep.subr.mxu0 0.0
  %4620 = vmatpush1.msra.mxu0 0.0
  %4621 = vmatprep.subr.mxu0 0.0
  %4622 = vmatpush1.msra.mxu0 0.0
  %4623 = vmatprep.subr.mxu0 0.0
  %4624 = vmatpush1.msra.mxu0 0.0
  %4625 = vmatprep.subr.mxu0 0.0
  %4626 = vmatpush1.msra.mxu0 0.0
  %4627 = vmatprep.subr.mxu0 0.0
  %4628 = vmatpush1.msra.mxu0 0.0
  %4629 = vmatprep.subr.mxu0 0.0
  %4630 = vmatpush1.msra.mxu0 0.0
  %4631 = vmatprep.mubr.f32.mxu0 0.0
  %4632 = vmatmul.mubr.f32.gmra.mrb[0].mxu0 %v4562
  %v4633 = vpop.f32.mrb[0].mxu0
  %v4634 = vadd.f32 0.0, %v4633
  %v4635 = vpop.f32.mrb[0].mxu0
  %4636 = vmatprep.mubr.f32.mxu0 0.0
  %4637 = vmatmul.mubr.f32.gmra.mrb[0].mxu0 %v4565
  %v4638 = vpop.f32.mrb[0].mxu0
  %v4639 = vadd.f32 0.0, %v4638
  %v4640 = vpop.f32.mrb[0].mxu0
  %4641 = vdwg.mxu0
  %v4643 = vsel %vm2496, %v4557, 0
  %v4646 = vsel %vm2496, %v4558, 0
  %4648 = vmatprep.subr.mxu0 0.0
  %4649 = vmatpush1.msra.mxu0 %v3007
  %4650 = vmatprep.subr.mxu0 0.0
  %4651 = vmatpush1.msra.mxu0 %v3013
  %4652 = vmatprep.subr.mxu0 0.0
  %4653 = vmatpush1.msra.mxu0 0.0
  %4654 = vmatprep.subr.mxu0 0.0
  %4655 = vmatpush1.msra.mxu0 0.0
  %4656 = vmatprep.subr.mxu0 0.0
  %4657 = vmatpush1.msra.mxu0 0.0
  %4658 = vmatprep.subr.mxu0 0.0
  %4659 = vmatpush1.msra.mxu0 0.0
  %4660 = vmatprep.subr.mxu0 0.0
  %4661 = vmatpush1.msra.mxu0 0.0
  %4662 = vmatprep.subr.mxu0 0.0
  %4663 = vmatpush1.msra.mxu0 0.0
  %4664 = vmatprep.subr.mxu0 0.0
  %4665 = vmatpush1.msra.mxu0 0.0
  %4666 = vmatprep.subr.mxu0 0.0
  %4667 = vmatpush1.msra.mxu0 0.0
  %4668 = vmatprep.subr.mxu0 0.0
  %4669 = vmatpush1.msra.mxu0 0.0
  %4670 = vmatprep.subr.mxu0 0.0
  %4671 = vmatpush1.msra.mxu0 0.0
  %4672 = vmatprep.subr.mxu0 0.0
  %4673 = vmatpush1.msra.mxu0 0.0
  %4674 = vmatprep.subr.mxu0 0.0
  %4675 = vmatpush1.msra.mxu0 0.0
  %4676 = vmatprep.subr.mxu0 0.0
  %4677 = vmatpush1.msra.mxu0 0.0
  %4678 = vmatprep.subr.mxu0 0.0
  %4679 = vmatpush1.msra.mxu0 0.0
  %4680 = vmatprep.subr.mxu0 0.0
  %4681 = vmatpush1.msra.mxu0 0.0
  %4682 = vmatprep.subr.mxu0 0.0
  %4683 = vmatpush1.msra.mxu0 0.0
  %4684 = vmatprep.subr.mxu0 0.0
  %4685 = vmatpush1.msra.mxu0 0.0
  %4686 = vmatprep.subr.mxu0 0.0
  %4687 = vmatpush1.msra.mxu0 0.0
  %4688 = vmatprep.subr.mxu0 0.0
  %4689 = vmatpush1.msra.mxu0 0.0
  %4690 = vmatprep.subr.mxu0 0.0
  %4691 = vmatpush1.msra.mxu0 0.0
  %4692 = vmatprep.subr.mxu0 0.0
  %4693 = vmatpush1.msra.mxu0 0.0
  %4694 = vmatprep.subr.mxu0 0.0
  %4695 = vmatpush1.msra.mxu0 0.0
  %4696 = vmatprep.subr.mxu0 0.0
  %4697 = vmatpush1.msra.mxu0 0.0
  %4698 = vmatprep.subr.mxu0 0.0
  %4699 = vmatpush1.msra.mxu0 0.0
  %4700 = vmatprep.subr.mxu0 0.0
  %4701 = vmatpush1.msra.mxu0 0.0
  %4702 = vmatprep.subr.mxu0 0.0
  %4703 = vmatpush1.msra.mxu0 0.0
  %4704 = vmatprep.subr.mxu0 0.0
  %4705 = vmatpush1.msra.mxu0 0.0
  %4706 = vmatprep.subr.mxu0 0.0
  %4707 = vmatpush1.msra.mxu0 0.0
  %4708 = vmatprep.subr.mxu0 0.0
  %4709 = vmatpush1.msra.mxu0 0.0
  %4710 = vmatprep.subr.mxu0 0.0
  %4711 = vmatpush1.msra.mxu0 0.0
  %4712 = vmatprep.mubr.f32.mxu0 0.0
  %4713 = vmatmul.mubr.f32.gmra.mrb[0].mxu0 %v4643
  %v4714 = vpop.f32.mrb[0].mxu0
  %v4715 = vadd.f32 %v4634, %v4714
  %v4716 = vpop.f32.mrb[0].mxu0
  %4717 = vmatprep.mubr.f32.mxu0 0.0
  %4718 = vmatmul.mubr.f32.gmra.mrb[0].mxu0 %v4646
  %v4719 = vpop.f32.mrb[0].mxu0
  %v4720 = vadd.f32 %v4639, %v4719
  %v4721 = vpop.f32.mrb[0].mxu0
  %4722 = vdwg.mxu0
  %s4723 = scalar_lea.vmem %s16, 1
  %v4724 = vld [vmem:[%s4723] sm:$0x1]
  %v4726 = vlaneseq
  %v4727 = vshrl.u32 %v4726, 7
  %v4728 = vsub.s32 0, %v4727
  %v4729 = vrot.slane %v4724, %v4728
  %v4731 = vadd.f32 %v4715, %v4729
  %v4732 = vadd.f32 %v4720, %v4729
  %v4733 = vmax.f32 %v4731, 0.0
  %v4734 = vmax.f32 %v4732, 0.0
  %s4735 = scalar_lea.vmem %s17, 128
  %v4736 = vld [vmem:[%s4735] sm:$0xff]
  %v4737 = vld [vmem:[%s4735 + $0x8] sm:$0xff]
  %v4738 = vld [vmem:[%s4735 + $0x10] sm:$0xff]
  %v4739 = vld [vmem:[%s4735 + $0x18] sm:$0xff]
  %v4740 = vld [vmem:[%s4735 + $0x20] sm:$0xff]
  %v4741 = vld [vmem:[%s4735 + $0x28] sm:$0xff]
  %v4742 = vld [vmem:[%s4735 + $0x30] sm:$0xff]
  %v4743 = vld [vmem:[%s4735 + $0x38] sm:$0xff]
  %v4744 = vld [vmem:[%s4735 + $0x40] sm:$0xff]
  %v4745 = vld [vmem:[%s4735 + $0x48] sm:$0xff]
  %v4746 = vld [vmem:[%s4735 + $0x50] sm:$0xff]
  %v4747 = vld [vmem:[%s4735 + $0x58] sm:$0xff]
  %v4748 = vld [vmem:[%s4735 + $0x60] sm:$0xff]
  %v4749 = vld [vmem:[%s4735 + $0x68] sm:$0xff]
  %v4750 = vld [vmem:[%s4735 + $0x70] sm:$0xff]
  %v4751 = vld [vmem:[%s4735 + $0x78] sm:$0xff]
  %s4752 = scalar_lea.vmem %s18, 1
  %v4753 = vld [vmem:[%s4752] sm:$0x1]
  %v4755 = vlaneseq
  %v4756 = vshrl.u32 %v4755, 7
  %v4757 = vsub.s32 0, %v4756
  %v4758 = vrot.slane %v4753, %v4757
  %4760 = vmatprep.subr.mxu0 0.0
  %4761 = vmatpush1.msra.mxu0 %v4736
  %4762 = vmatprep.subr.mxu0 0.0
  %4763 = vmatpush1.msra.mxu0 %v4737
  %4764 = vmatprep.subr.mxu0 0.0
  %4765 = vmatpush1.msra.mxu0 %v4738
  %4766 = vmatprep.subr.mxu0 0.0
  %4767 = vmatpush1.msra.mxu0 %v4739
  %4768 = vmatprep.subr.mxu0 0.0
  %4769 = vmatpush1.msra.mxu0 %v4740
  %4770 = vmatprep.subr.mxu0 0.0
  %4771 = vmatpush1.msra.mxu0 %v4741
  %4772 = vmatprep.subr.mxu0 0.0
  %4773 = vmatpush1.msra.mxu0 %v4742
  %4774 = vmatprep.subr.mxu0 0.0
  %4775 = vmatpush1.msra.mxu0 %v4743
  %4776 = vmatprep.subr.mxu0 0.0
  %4777 = vmatpush1.msra.mxu0 %v4744
  %4778 = vmatprep.subr.mxu0 0.0
  %4779 = vmatpush1.msra.mxu0 %v4745
  %4780 = vmatprep.subr.mxu0 0.0
  %4781 = vmatpush1.msra.mxu0 %v4746
  %4782 = vmatprep.subr.mxu0 0.0
  %4783 = vmatpush1.msra.mxu0 %v4747
  %4784 = vmatprep.subr.mxu0 0.0
  %4785 = vmatpush1.msra.mxu0 %v4748
  %4786 = vmatprep.subr.mxu0 0.0
  %4787 = vmatpush1.msra.mxu0 %v4749
  %4788 = vmatprep.subr.mxu0 0.0
  %4789 = vmatpush1.msra.mxu0 %v4750
  %4790 = vmatprep.subr.mxu0 0.0
  %4791 = vmatpush1.msra.mxu0 %v4751
  %4792 = vmatprep.subr.mxu0 0.0
  %4793 = vmatpush1.msra.mxu0 0.0
  %4794 = vmatprep.subr.mxu0 0.0
  %4795 = vmatpush1.msra.mxu0 0.0
  %4796 = vmatprep.subr.mxu0 0.0
  %4797 = vmatpush1.msra.mxu0 0.0
  %4798 = vmatprep.subr.mxu0 0.0
  %4799 = vmatpush1.msra.mxu0 0.0
  %4800 = vmatprep.subr.mxu0 0.0
  %4801 = vmatpush1.msra.mxu0 0.0
  %4802 = vmatprep.subr.mxu0 0.0
  %4803 = vmatpush1.msra.mxu0 0.0
  %4804 = vmatprep.subr.mxu0 0.0
  %4805 = vmatpush1.msra.mxu0 0.0
  %4806 = vmatprep.subr.mxu0 0.0
  %4807 = vmatpush1.msra.mxu0 0.0
  %4808 = vmatprep.subr.mxu0 0.0
  %4809 = vmatpush1.msra.mxu0 0.0
  %4810 = vmatprep.subr.mxu0 0.0
  %4811 = vmatpush1.msra.mxu0 0.0
  %4812 = vmatprep.subr.mxu0 0.0
  %4813 = vmatpush1.msra.mxu0 0.0
  %4814 = vmatprep.subr.mxu0 0.0
  %4815 = vmatpush1.msra.mxu0 0.0
  %4816 = vmatprep.subr.mxu0 0.0
  %4817 = vmatpush1.msra.mxu0 0.0
  %4818 = vmatprep.subr.mxu0 0.0
  %4819 = vmatpush1.msra.mxu0 0.0
  %4820 = vmatprep.subr.mxu0 0.0
  %4821 = vmatpush1.msra.mxu0 0.0
  %4822 = vmatprep.subr.mxu0 0.0
  %4823 = vmatpush1.msra.mxu0 0.0
  %4824 = vmatprep.mubr.f32.mxu0 0.0
  %4825 = vmatmul.mubr.f32.gmra.mrb[0].mxu0 %v4733
  %v4826 = vpop.f32.mrb[0].mxu0
  %v4827 = vadd.f32 %v4758, %v4826
  %v4828 = vpop.f32.mrb[0].mxu0
  %4829 = vmatprep.mubr.f32.mxu0 0.0
  %4830 = vmatmul.mubr.f32.gmra.mrb[0].mxu0 %v4734
  %v4831 = vpop.f32.mrb[0].mxu0
  %v4832 = vadd.f32 %v4758, %v4831
  %v4833 = vpop.f32.mrb[0].mxu0
  %4834 = vdwg.mxu0
  %v4835 = vadd.f32 %v4827, %v2824
  %v4836 = vadd.f32 %v4832, %v2825
  %4837 = vrot.lane.b32.xlu0 %v245, 4
  %v4838 = vpop.permute.xlu0 %4837
  %4839 = vrot.lane.b32.xlu0 %v250, 4
  %v4840 = vpop.permute.xlu0 %4839
  %4843 = vrot.lane.b32.xlu0 %v2824, 36
  %v4844 = vpop.permute.xlu0 %4843
  %4845 = vrot.lane.b32.xlu0 %v2825, 36
  %v4846 = vpop.permute.xlu0 %4845
  %4851 = vrot.lane.b32.xlu0 %v4835, 68
  %v4852 = vpop.permute.xlu0 %4851
  %4853 = vrot.lane.b32.xlu0 %v4836, 68
  %v4854 = vpop.permute.xlu0 %4853
  %v4857 = vsel %vm72, %v62, %v4838
  %v4858 = vsel %vm72, %v63, %v4840
  %vm4859 = vcmask 293888
  %v4860 = vsel %vm4859, %v4857, %v4844
  %v4861 = vsel %vm4859, %v4858, %v4846
  %vm4862 = vcmask 556032
  %v4863 = vsel %vm4862, %v4860, %v4852
  %v4864 = vsel %vm4862, %v4861, %v4854
  %4865 = vst [vmem:[%s19] sm:$0xff] 0.0
  %4866 = vst [vmem:[%s19 + $0x8] sm:$0xff] 0.0
  %4867 = vst [vmem:[%s19 + $0x10] sm:$0xf] 0.0
  %4868 = vst [vmem:[%s19 + $0x18] sm:$0xf] 0.0
  %4869 = vst [vmem:[%s19 + $0x20] sm:$0xff] 0.0
  %4870 = vst [vmem:[%s19 + $0x28] sm:$0xff] 0.0
  %4871 = vst [vmem:[%s19 + $0x30] sm:$0xf] 0.0
  %4872 = vst [vmem:[%s19 + $0x38] sm:$0xf] 0.0
  %vm4873 = vcmask 818176
  %v4874 = vsel %vm4873, %v4863, -inf
  %v4875 = vrot.slane %v4874, 4
  %v4876 = vmax.f32 %v4874, %v4875
  %v4877 = vrot.slane %v4876, 2
  %v4878 = vmax.f32 %v4876, %v4877
  %v4879 = vrot.slane %v4878, 1
  %v4880 = vmax.f32 %v4878, %v4879
  %4881 = vst.msk [vmem:[%s19] sm:$0xff] %vm4873, %v4863
  %4882 = vst.msk [vmem:[%s19 + $0x8] sm:$0xff] %vm4873, %v4880
  %vm4883 = vcmask 814080
  %4884 = vst.msk [vmem:[%s19 + $0x18] sm:$0xf] %vm4883, %v4880
  %v4885 = vsel %vm4873, %v4864, -inf
  %v4886 = vrot.slane %v4885, 4
  %v4887 = vmax.f32 %v4885, %v4886
  %v4888 = vrot.slane %v4887, 2
  %v4889 = vmax.f32 %v4887, %v4888
  %v4890 = vrot.slane %v4889, 1
  %v4891 = vmax.f32 %v4889, %v4890
  %s4892 = scalar_lea.vmem %s19, 32
  %4893 = vst.msk [vmem:[%s4892] sm:$0xff] %vm4873, %v4864
  %4894 = vst.msk [vmem:[%s4892 + $0x8] sm:$0xff] %vm4873, %v4891
  %4895 = vst.msk [vmem:[%s4892 + $0x18] sm:$0xf] %vm4883, %v4891
  // Predicated region
  $region78: #{psp_gnn_forward.1} parent=0 // pred_check
    _
  $region79: #{psp_gnn_forward.1} parent=0 // pred_check_branch
    %4897 = sbr.rel (0) target = $region81
  $region80: #{psp_gnn_forward.1} parent=0 // pred_region
    _
  $region81: #{psp_gnn_forward.1} parent=0 // pred_fallthru
    _
  // Predicated region
  $region82: #{psp_gnn_forward.1} parent=0 // pred_check
    _
  $region83: #{psp_gnn_forward.1} parent=0 // pred_check_branch
    %4899 = sbr.rel (0) target = $region85
  $region84: #{psp_gnn_forward.1} parent=0 // pred_region
    _
  $region85: #{psp_gnn_forward.1} parent=0 // pred_fallthru
    _

</llo_original>
